<compile_context>
chip_gen: v6e
topology: v6e:2x2x1
jax: 0.10.0
libtpu: 0.0.40
codegen_flags: <defaults>
</compile_context>

<pallas_src>
import jax
import jax.numpy as jnp
from jax import lax
from jax.experimental import pallas as pl
from jax.experimental.pallas import tpu as pltpu

# ----------------------------- config ---------------------------------------
BATCH = 2                # independent graphs per call (grid axis, "parallel")
N_POINTS = 64            # graph nodes (per graph)
IN_CHANNELS = 16         # raw input feature dim
CHANNELS = 32            # cfg.n_filters
K = 4                    # cfg.k
N_BLOCKS = 3             # cfg.n_blocks (head + 2 Res blocks)
N_CLASSES = 5            # cfg.n_classes
FUSION_DIMS = CHANNELS * N_BLOCKS   # 'res' fusion: channels + c_growth*(n_blocks-1)
TAIL_PAD = 128           # tail output padded to a full lane tile (unmasked stores)


# ----------------------------- kernel helpers (traced inside the kernel) ------
def _edge_conv(cur, w1, w2, b, col_f, ones_col):
    """EdgeConv2d with in-kernel kNN.

    out_i = max_{j in knn(i)} relu(W1 x_i + W2 (x_j - x_i) + b)
          = relu( (cW1 - cW2)_i + max_j (cW2)_j )   with cW1 = x@W1+b, cW2 = x@W2.

    cur:(N,C); w1,w2:(C,C); b:(1,C); col_f:(N,N) column iota; ones_col:(N,1).
    """
    n, c = N_POINTS, CHANNELS

    # Center-branch projections, computed once per block.
    cw1 = jnp.dot(cur, w1, preferred_element_type=jnp.float32) + b        # (N,C)
    cw2 = jnp.dot(cur, w2, preferred_element_type=jnp.float32)            # (N,C)
    base = cw1 - cw2                                                      # (N,C)

    # Ranking-equivalent pairwise distance (per-row): d[n,m] = |x_m|^2 - 2 x_n.x_m
    # (per-row |x_n|^2 term dropped — row-constant, cannot change top-k ranking).
    # Single augmented matmul: [-2x ; 1] @ [x ; |x|^2]^T.
    sumsq = jnp.sum(cur * cur, axis=-1, keepdims=True)                    # (N,1)
    a_aug = jnp.concatenate([cur * (-2.0), ones_col], axis=-1)            # (N,C+1)
    b_aug = jnp.concatenate([cur, sumsq], axis=-1)                        # (N,C+1)
    d = lax.dot_general(a_aug, b_aug, (((1,), (1,)), ((), ())),
                        preferred_element_type=jnp.float32)               # (N,N)

    # K iterative per-row argmin passes (first-occurrence tie-break). The one-hot selection
    # masks are stacked and the K gathers are batched into ONE MXU matmul in projected space.
    sels = []
    for _ in range(K):
        mn = jnp.min(d, axis=-1, keepdims=True)                           # (N,1) row min
        cand = jnp.where(d <= mn, col_f, jnp.float32(n))
        amin = jnp.min(cand, axis=-1, keepdims=True)                      # first-occurrence argmin
        sel = col_f == amin                                               # (N,N) one-hot mask
        sels.append(sel.astype(jnp.float32))
        d = jnp.where(sel, jnp.float32(jnp.inf), d)                       # mask for next pass

    sel_all = jnp.concatenate(sels, axis=0)                               # (K*N, N)
    nbr_w2 = jnp.dot(sel_all, cw2, preferred_element_type=jnp.float32)    # (K*N, C) gathered W2-proj

    # max over the k neighbors (rows are neighbor-major: p = j*N + n), then add center + ReLU
    # (max and ReLU commute with the per-row-constant center term).
    mx = nbr_w2[0:n, :]
    for j in range(1, K):
        mx = jnp.maximum(mx, nbr_w2[j * n:(j + 1) * n, :])
    return jnp.maximum(base + mx, 0.0)                                    # (N,C)


# ----------------------------- fused kernel -----------------------------------
def _gcn_kernel(x_ref, emb_w_ref, emb_b_ref, conv_w_ref, conv_b_ref, tail_w_ref, o_ref):
    n, c = N_POINTS, CHANNELS

    # block-invariant constants, built once per grid step
    col_f = lax.broadcasted_iota(jnp.int32, (n, n), 1).astype(jnp.float32)
    ones_col = jnp.ones((n, 1), jnp.float32)

    # embedding = ReLU(Linear(inputs))
    cur = jnp.maximum(
        jnp.dot(x_ref[...], emb_w_ref[...], preferred_element_type=jnp.float32)
        + emb_b_ref[...], 0.0)                                            # (N,C)

    # head EdgeConv + 'res' backbone blocks; tail logits accumulated incrementally
    # against static 32-row slices of the 128-lane-padded tail weight.
    o_acc = jnp.zeros((n, TAIL_PAD), jnp.float32)
    for blk in range(N_BLOCKS):
        w1 = conv_w_ref[blk, 0:c, :]                                      # (C,C)
        w2 = conv_w_ref[blk, c:2 * c, :]                                  # (C,C)
        b = conv_b_ref[blk]                                               # (1,C)
        y = _edge_conv(cur, w1, w2, b, col_f, ones_col)
        cur = y if blk == 0 else cur + y                                  # ResDynBlock: x + conv(x)
        o_acc = o_acc + jnp.dot(cur, tail_w_ref[blk * c:(blk + 1) * c, :],
                                preferred_element_type=jnp.float32)       # (N,128)

    o_ref[...] = o_acc                                                    # lane-dense store


# ----------------------------- wrapper ----------------------------------------
def gcn_npcic_forward(inputs, params):
    """inputs: (B, N_POINTS, IN_CHANNELS) — B independent graphs. Returns (B, N, n_classes)."""
    bsz = inputs.shape[0]

    scores_pad = pl.pallas_call(
        _gcn_kernel,
        out_shape=jax.ShapeDtypeStruct((bsz, N_POINTS, TAIL_PAD), jnp.float32),
        grid=(bsz,),
        in_specs=[
            pl.BlockSpec((None, N_POINTS, IN_CHANNELS), lambda b: (b, 0, 0)),
            pl.BlockSpec((IN_CHANNELS, CHANNELS), lambda b: (0, 0)),
            pl.BlockSpec((1, CHANNELS), lambda b: (0, 0)),
            pl.BlockSpec((N_BLOCKS, 2 * CHANNELS, CHANNELS), lambda b: (0, 0, 0)),
            pl.BlockSpec((N_BLOCKS, 1, CHANNELS), lambda b: (0, 0, 0)),
            pl.BlockSpec((FUSION_DIMS, TAIL_PAD), lambda b: (0, 0)),
        ],
        out_specs=pl.BlockSpec((None, N_POINTS, TAIL_PAD), lambda b: (b, 0, 0)),
        compiler_params=pltpu.CompilerParams(dimension_semantics=("parallel",)),
    )(inputs, params["emb_w"], params["emb_b"],
      params["conv_w"], params["conv_b"], params["tail_w_pad"])

    return scores_pad[:, :, :N_CLASSES]                                   # (B, N, n_classes)


# ----------------------------- parameters -------------------------------------
def init_params(key):
    """Deterministic synthetic init (fan-in scaled normal, zero biases).

    The tail weight is zero-padded to 128 output lanes here (parameter-only constant),
    so the kernel's output store is unmasked lane-dense and no per-call pad op is needed.
    """
    def dense(k, fan_in, shape):
        return jax.random.normal(k, shape, jnp.float32) / jnp.sqrt(float(fan_in))

    keys = jax.random.split(key, 2 + N_BLOCKS)
    tail_w = dense(keys[1], FUSION_DIMS, (FUSION_DIMS, N_CLASSES))        # Linear(bias=False)
    tail_w_pad = jnp.zeros((FUSION_DIMS, TAIL_PAD), jnp.float32).at[:, :N_CLASSES].set(tail_w)
    return {
        "emb_w": dense(keys[0], IN_CHANNELS, (IN_CHANNELS, CHANNELS)),
        "emb_b": jnp.zeros((1, CHANNELS), jnp.float32),
        "tail_w_pad": tail_w_pad,
        # merged EdgeConv 1x1-conv weights: [W1 ; W2] stacked along the 2C contraction dim
        "conv_w": jnp.stack([dense(keys[2 + i], 2 * CHANNELS, (2 * CHANNELS, CHANNELS))
                             for i in range(N_BLOCKS)]),                  # (N_BLOCKS, 2C, C)
        "conv_b": jnp.zeros((N_BLOCKS, 1, CHANNELS), jnp.float32),
    }


# ----------------------------- main -------------------------------------------
if __name__ == "__main__":
    key = jax.random.PRNGKey(0)
    k_in, k_par = jax.random.split(key)
    inputs = jax.random.normal(k_in, (BATCH, N_POINTS, IN_CHANNELS), jnp.float32)
    params = init_params(k_par)

    scores = jax.jit(gcn_npcic_forward)(inputs, params)
    scores = jax.block_until_ready(scores)

    assert scores.shape == (BATCH, N_POINTS, N_CLASSES), scores.shape
    assert bool(jnp.all(jnp.isfinite(scores)))
    print("KERNEL_OK")
</pallas_src>

<mosaic_0001>
module attributes {stable_mosaic.version = 11 : i64} {
  func.func @_gcn_kernel(%arg0: i32, %arg1: memref<1x64x16xf32, #tpu.memory_space<vmem>>, %arg2: memref<16x32xf32, #tpu.memory_space<vmem>>, %arg3: memref<1x32xf32, #tpu.memory_space<vmem>>, %arg4: memref<3x64x32xf32, #tpu.memory_space<vmem>>, %arg5: memref<3x1x32xf32, #tpu.memory_space<vmem>>, %arg6: memref<96x128xf32, #tpu.memory_space<vmem>>, %arg7: memref<1x64x128xf32, #tpu.memory_space<vmem>>) attributes {dimension_semantics = [#tpu.dimension_semantics<parallel>], iteration_bounds = array<i64: 2>, scalar_prefetch = 0 : i64, scratch_operands = 0 : i64, tpu.core_type = #tpu.core_type<tc>, window_params = [{transform_indices = @transform_0, window_bounds = array<i64: 1, 64, 16>}, {pipeline_mode = #tpu.pipeline_mode<synchronous>, transform_indices = @transform_1, window_bounds = array<i64: 16, 32>}, {pipeline_mode = #tpu.pipeline_mode<synchronous>, transform_indices = @transform_2, window_bounds = array<i64: 1, 32>}, {pipeline_mode = #tpu.pipeline_mode<synchronous>, transform_indices = @transform_3, window_bounds = array<i64: 3, 64, 32>}, {pipeline_mode = #tpu.pipeline_mode<synchronous>, transform_indices = @transform_4, window_bounds = array<i64: 3, 1, 32>}, {pipeline_mode = #tpu.pipeline_mode<synchronous>, transform_indices = @transform_5, window_bounds = array<i64: 96, 128>}, {transform_indices = @transform_6, window_bounds = array<i64: 1, 64, 128>}]} {
    %0 = tpu.iota {dimensions = array<i32: 1>} : vector<64x64xi32>
    %1 = arith.sitofp %0 : vector<64x64xi32> to vector<64x64xf32>
    %cst = arith.constant 1.000000e+00 : f32
    %2 = vector.broadcast %cst : f32 to vector<64x1xf32>
    %c0 = arith.constant 0 : index
    %c0_0 = arith.constant 0 : index
    %c0_1 = arith.constant 0 : index
    %3 = vector.load %arg1[%c0, %c0_0, %c0_1] : memref<1x64x16xf32, #tpu.memory_space<vmem>>, vector<1x64x16xf32>
    %4 = vector.shape_cast %3 : vector<1x64x16xf32> to vector<64x16xf32>
    %c0_2 = arith.constant 0 : index
    %c0_3 = arith.constant 0 : index
    %5 = vector.load %arg2[%c0_2, %c0_3] : memref<16x32xf32, #tpu.memory_space<vmem>>, vector<16x32xf32>
    %cst_4 = arith.constant dense<0.000000e+00> : vector<64x32xf32>
    %6 = tpu.matmul %4, %5, %cst_4 {dimension_numbers = #tpu.dot_dimension_numbers<[1], [0], [0], [1], [0, 0, 1, 1], [], []>} : vector<64x16xf32>, vector<16x32xf32>, vector<64x32xf32> -> vector<64x32xf32>
    %c0_5 = arith.constant 0 : index
    %c0_6 = arith.constant 0 : index
    %7 = vector.load %arg3[%c0_5, %c0_6] : memref<1x32xf32, #tpu.memory_space<vmem>>, vector<1x32xf32>
    %8 = vector.broadcast %7 : vector<1x32xf32> to vector<64x32xf32>
    %9 = arith.addf %6, %8 : vector<64x32xf32>
    %cst_7 = arith.constant 0.000000e+00 : f32
    %10 = vector.broadcast %cst_7 : f32 to vector<64x32xf32>
    %11 = arith.maximumf %9, %10 : vector<64x32xf32>
    %cst_8 = arith.constant 0.000000e+00 : f32
    %12 = vector.broadcast %cst_8 : f32 to vector<64x128xf32>
    %c0_9 = arith.constant 0 : index
    %c0_10 = arith.constant 0 : index
    %c0_11 = arith.constant 0 : index
    %13 = vector.load %arg4[%c0_9, %c0_10, %c0_11] : memref<3x64x32xf32, #tpu.memory_space<vmem>>, vector<1x32x32xf32>
    %14 = vector.shape_cast %13 : vector<1x32x32xf32> to vector<32x32xf32>
    %c0_12 = arith.constant 0 : index
    %c32 = arith.constant 32 : index
    %c0_13 = arith.constant 0 : index
    %15 = vector.load %arg4[%c0_12, %c32, %c0_13] : memref<3x64x32xf32, #tpu.memory_space<vmem>>, vector<1x32x32xf32>
    %16 = vector.shape_cast %15 : vector<1x32x32xf32> to vector<32x32xf32>
    %c0_14 = arith.constant 0 : index
    %c0_15 = arith.constant 0 : index
    %c0_16 = arith.constant 0 : index
    %17 = vector.load %arg5[%c0_14, %c0_15, %c0_16] : memref<3x1x32xf32, #tpu.memory_space<vmem>>, vector<1x1x32xf32>
    %18 = vector.shape_cast %17 : vector<1x1x32xf32> to vector<1x32xf32>
    %cst_17 = arith.constant dense<0.000000e+00> : vector<64x32xf32>
    %19 = tpu.matmul %11, %14, %cst_17 {dimension_numbers = #tpu.dot_dimension_numbers<[1], [0], [0], [1], [0, 0, 1, 1], [], []>} : vector<64x32xf32>, vector<32x32xf32>, vector<64x32xf32> -> vector<64x32xf32>
    %20 = vector.broadcast %18 : vector<1x32xf32> to vector<64x32xf32>
    %21 = arith.addf %19, %20 : vector<64x32xf32>
    %cst_18 = arith.constant dense<0.000000e+00> : vector<64x32xf32>
    %22 = tpu.matmul %11, %16, %cst_18 {dimension_numbers = #tpu.dot_dimension_numbers<[1], [0], [0], [1], [0, 0, 1, 1], [], []>} : vector<64x32xf32>, vector<32x32xf32>, vector<64x32xf32> -> vector<64x32xf32>
    %23 = arith.subf %21, %22 : vector<64x32xf32>
    %24 = arith.mulf %11, %11 : vector<64x32xf32>
    %cst_19 = arith.constant dense<0.000000e+00> : vector<64xf32>
    %25 = vector.multi_reduction <add>, %24, %cst_19 [1] : vector<64x32xf32> to vector<64xf32>
    %26 = vector.shape_cast %25 : vector<64xf32> to vector<64x1xf32>
    %cst_20 = arith.constant -2.000000e+00 : f32
    %27 = vector.broadcast %cst_20 : f32 to vector<64x32xf32>
    %28 = arith.mulf %11, %27 : vector<64x32xf32>
    %29 = tpu.concatenate %28, %2 in 1 : vector<64x32xf32>, vector<64x1xf32> -> vector<64x33xf32>
    %30 = tpu.concatenate %11, %26 in 1 : vector<64x32xf32>, vector<64x1xf32> -> vector<64x33xf32>
    %cst_21 = arith.constant dense<0.000000e+00> : vector<64x64xf32>
    %31 = tpu.matmul %29, %30, %cst_21 {dimension_numbers = #tpu.dot_dimension_numbers<[1], [1], [0], [0], [0, 0, 1, 0], [], []>} : vector<64x33xf32>, vector<64x33xf32>, vector<64x64xf32> -> vector<64x64xf32>
    %cst_22 = arith.constant dense<0x7F800000> : vector<64xf32>
    %32 = vector.multi_reduction <minimumf>, %31, %cst_22 [1] : vector<64x64xf32> to vector<64xf32>
    %33 = vector.shape_cast %32 : vector<64xf32> to vector<64x1xf32>
    %34 = vector.broadcast %33 : vector<64x1xf32> to vector<64x64xf32>
    %35 = arith.cmpf ole, %31, %34 : vector<64x64xf32>
    %cst_23 = arith.constant 6.400000e+01 : f32
    %36 = vector.broadcast %cst_23 : f32 to vector<64x64xf32>
    %37 = arith.select %35, %1, %36 : vector<64x64xi1>, vector<64x64xf32>
    %cst_24 = arith.constant dense<0x7F800000> : vector<64xf32>
    %38 = vector.multi_reduction <minimumf>, %37, %cst_24 [1] : vector<64x64xf32> to vector<64xf32>
    %39 = vector.shape_cast %38 : vector<64xf32> to vector<64x1xf32>
    %40 = vector.broadcast %39 : vector<64x1xf32> to vector<64x64xf32>
    %41 = arith.cmpf oeq, %1, %40 : vector<64x64xf32>
    %42 = arith.extui %41 : vector<64x64xi1> to vector<64x64xi32>
    %43 = arith.sitofp %42 : vector<64x64xi32> to vector<64x64xf32>
    %cst_25 = arith.constant 0x7F800000 : f32
    %44 = vector.broadcast %cst_25 : f32 to vector<64x64xf32>
    %45 = arith.select %41, %44, %31 : vector<64x64xi1>, vector<64x64xf32>
    %cst_26 = arith.constant dense<0x7F800000> : vector<64xf32>
    %46 = vector.multi_reduction <minimumf>, %45, %cst_26 [1] : vector<64x64xf32> to vector<64xf32>
    %47 = vector.shape_cast %46 : vector<64xf32> to vector<64x1xf32>
    %48 = vector.broadcast %47 : vector<64x1xf32> to vector<64x64xf32>
    %49 = arith.cmpf ole, %45, %48 : vector<64x64xf32>
    %cst_27 = arith.constant 6.400000e+01 : f32
    %50 = vector.broadcast %cst_27 : f32 to vector<64x64xf32>
    %51 = arith.select %49, %1, %50 : vector<64x64xi1>, vector<64x64xf32>
    %cst_28 = arith.constant dense<0x7F800000> : vector<64xf32>
    %52 = vector.multi_reduction <minimumf>, %51, %cst_28 [1] : vector<64x64xf32> to vector<64xf32>
    %53 = vector.shape_cast %52 : vector<64xf32> to vector<64x1xf32>
    %54 = vector.broadcast %53 : vector<64x1xf32> to vector<64x64xf32>
    %55 = arith.cmpf oeq, %1, %54 : vector<64x64xf32>
    %56 = arith.extui %55 : vector<64x64xi1> to vector<64x64xi32>
    %57 = arith.sitofp %56 : vector<64x64xi32> to vector<64x64xf32>
    %cst_29 = arith.constant 0x7F800000 : f32
    %58 = vector.broadcast %cst_29 : f32 to vector<64x64xf32>
    %59 = arith.select %55, %58, %45 : vector<64x64xi1>, vector<64x64xf32>
    %cst_30 = arith.constant dense<0x7F800000> : vector<64xf32>
    %60 = vector.multi_reduction <minimumf>, %59, %cst_30 [1] : vector<64x64xf32> to vector<64xf32>
    %61 = vector.shape_cast %60 : vector<64xf32> to vector<64x1xf32>
    %62 = vector.broadcast %61 : vector<64x1xf32> to vector<64x64xf32>
    %63 = arith.cmpf ole, %59, %62 : vector<64x64xf32>
    %cst_31 = arith.constant 6.400000e+01 : f32
    %64 = vector.broadcast %cst_31 : f32 to vector<64x64xf32>
    %65 = arith.select %63, %1, %64 : vector<64x64xi1>, vector<64x64xf32>
    %cst_32 = arith.constant dense<0x7F800000> : vector<64xf32>
    %66 = vector.multi_reduction <minimumf>, %65, %cst_32 [1] : vector<64x64xf32> to vector<64xf32>
    %67 = vector.shape_cast %66 : vector<64xf32> to vector<64x1xf32>
    %68 = vector.broadcast %67 : vector<64x1xf32> to vector<64x64xf32>
    %69 = arith.cmpf oeq, %1, %68 : vector<64x64xf32>
    %70 = arith.extui %69 : vector<64x64xi1> to vector<64x64xi32>
    %71 = arith.sitofp %70 : vector<64x64xi32> to vector<64x64xf32>
    %cst_33 = arith.constant 0x7F800000 : f32
    %72 = vector.broadcast %cst_33 : f32 to vector<64x64xf32>
    %73 = arith.select %69, %72, %59 : vector<64x64xi1>, vector<64x64xf32>
    %cst_34 = arith.constant dense<0x7F800000> : vector<64xf32>
    %74 = vector.multi_reduction <minimumf>, %73, %cst_34 [1] : vector<64x64xf32> to vector<64xf32>
    %75 = vector.shape_cast %74 : vector<64xf32> to vector<64x1xf32>
    %76 = vector.broadcast %75 : vector<64x1xf32> to vector<64x64xf32>
    %77 = arith.cmpf ole, %73, %76 : vector<64x64xf32>
    %cst_35 = arith.constant 6.400000e+01 : f32
    %78 = vector.broadcast %cst_35 : f32 to vector<64x64xf32>
    %79 = arith.select %77, %1, %78 : vector<64x64xi1>, vector<64x64xf32>
    %cst_36 = arith.constant dense<0x7F800000> : vector<64xf32>
    %80 = vector.multi_reduction <minimumf>, %79, %cst_36 [1] : vector<64x64xf32> to vector<64xf32>
    %81 = vector.shape_cast %80 : vector<64xf32> to vector<64x1xf32>
    %82 = vector.broadcast %81 : vector<64x1xf32> to vector<64x64xf32>
    %83 = arith.cmpf oeq, %1, %82 : vector<64x64xf32>
    %84 = arith.extui %83 : vector<64x64xi1> to vector<64x64xi32>
    %85 = arith.sitofp %84 : vector<64x64xi32> to vector<64x64xf32>
    %86 = tpu.concatenate %43, %57, %71, %85 in 0 : vector<64x64xf32>, vector<64x64xf32>, vector<64x64xf32>, vector<64x64xf32> -> vector<256x64xf32>
    %cst_37 = arith.constant dense<0.000000e+00> : vector<256x32xf32>
    %87 = tpu.matmul %86, %22, %cst_37 {dimension_numbers = #tpu.dot_dimension_numbers<[1], [0], [0], [1], [0, 0, 1, 1], [], []>} : vector<256x64xf32>, vector<64x32xf32>, vector<256x32xf32> -> vector<256x32xf32>
    %88 = vector.extract_strided_slice %87 {offsets = [0, 0], sizes = [64, 32], strides = [1, 1]} : vector<256x32xf32> to vector<64x32xf32>
    %89 = vector.extract_strided_slice %87 {offsets = [64, 0], sizes = [64, 32], strides = [1, 1]} : vector<256x32xf32> to vector<64x32xf32>
    %90 = arith.maximumf %88, %89 : vector<64x32xf32>
    %91 = vector.extract_strided_slice %87 {offsets = [128, 0], sizes = [64, 32], strides = [1, 1]} : vector<256x32xf32> to vector<64x32xf32>
    %92 = arith.maximumf %90, %91 : vector<64x32xf32>
    %93 = vector.extract_strided_slice %87 {offsets = [192, 0], sizes = [64, 32], strides = [1, 1]} : vector<256x32xf32> to vector<64x32xf32>
    %94 = arith.maximumf %92, %93 : vector<64x32xf32>
    %95 = arith.addf %23, %94 : vector<64x32xf32>
    %cst_38 = arith.constant 0.000000e+00 : f32
    %96 = vector.broadcast %cst_38 : f32 to vector<64x32xf32>
    %97 = arith.maximumf %95, %96 : vector<64x32xf32>
    %c0_39 = arith.constant 0 : index
    %c0_40 = arith.constant 0 : index
    %98 = vector.load %arg6[%c0_39, %c0_40] : memref<96x128xf32, #tpu.memory_space<vmem>>, vector<32x128xf32>
    %cst_41 = arith.constant dense<0.000000e+00> : vector<64x128xf32>
    %99 = tpu.matmul %97, %98, %cst_41 {dimension_numbers = #tpu.dot_dimension_numbers<[1], [0], [0], [1], [0, 0, 1, 1], [], []>} : vector<64x32xf32>, vector<32x128xf32>, vector<64x128xf32> -> vector<64x128xf32>
    %100 = arith.addf %12, %99 : vector<64x128xf32>
    %c1 = arith.constant 1 : index
    %c0_42 = arith.constant 0 : index
    %c0_43 = arith.constant 0 : index
    %101 = vector.load %arg4[%c1, %c0_42, %c0_43] : memref<3x64x32xf32, #tpu.memory_space<vmem>>, vector<1x32x32xf32>
    %102 = vector.shape_cast %101 : vector<1x32x32xf32> to vector<32x32xf32>
    %c1_44 = arith.constant 1 : index
    %c32_45 = arith.constant 32 : index
    %c0_46 = arith.constant 0 : index
    %103 = vector.load %arg4[%c1_44, %c32_45, %c0_46] : memref<3x64x32xf32, #tpu.memory_space<vmem>>, vector<1x32x32xf32>
    %104 = vector.shape_cast %103 : vector<1x32x32xf32> to vector<32x32xf32>
    %c1_47 = arith.constant 1 : index
    %c0_48 = arith.constant 0 : index
    %c0_49 = arith.constant 0 : index
    %105 = vector.load %arg5[%c1_47, %c0_48, %c0_49] : memref<3x1x32xf32, #tpu.memory_space<vmem>>, vector<1x1x32xf32>
    %106 = vector.shape_cast %105 : vector<1x1x32xf32> to vector<1x32xf32>
    %cst_50 = arith.constant dense<0.000000e+00> : vector<64x32xf32>
    %107 = tpu.matmul %97, %102, %cst_50 {dimension_numbers = #tpu.dot_dimension_numbers<[1], [0], [0], [1], [0, 0, 1, 1], [], []>} : vector<64x32xf32>, vector<32x32xf32>, vector<64x32xf32> -> vector<64x32xf32>
    %108 = vector.broadcast %106 : vector<1x32xf32> to vector<64x32xf32>
    %109 = arith.addf %107, %108 : vector<64x32xf32>
    %cst_51 = arith.constant dense<0.000000e+00> : vector<64x32xf32>
    %110 = tpu.matmul %97, %104, %cst_51 {dimension_numbers = #tpu.dot_dimension_numbers<[1], [0], [0], [1], [0, 0, 1, 1], [], []>} : vector<64x32xf32>, vector<32x32xf32>, vector<64x32xf32> -> vector<64x32xf32>
    %111 = arith.subf %109, %110 : vector<64x32xf32>
    %112 = arith.mulf %97, %97 : vector<64x32xf32>
    %cst_52 = arith.constant dense<0.000000e+00> : vector<64xf32>
    %113 = vector.multi_reduction <add>, %112, %cst_52 [1] : vector<64x32xf32> to vector<64xf32>
    %114 = vector.shape_cast %113 : vector<64xf32> to vector<64x1xf32>
    %cst_53 = arith.constant -2.000000e+00 : f32
    %115 = vector.broadcast %cst_53 : f32 to vector<64x32xf32>
    %116 = arith.mulf %97, %115 : vector<64x32xf32>
    %117 = tpu.concatenate %116, %2 in 1 : vector<64x32xf32>, vector<64x1xf32> -> vector<64x33xf32>
    %118 = tpu.concatenate %97, %114 in 1 : vector<64x32xf32>, vector<64x1xf32> -> vector<64x33xf32>
    %cst_54 = arith.constant dense<0.000000e+00> : vector<64x64xf32>
    %119 = tpu.matmul %117, %118, %cst_54 {dimension_numbers = #tpu.dot_dimension_numbers<[1], [1], [0], [0], [0, 0, 1, 0], [], []>} : vector<64x33xf32>, vector<64x33xf32>, vector<64x64xf32> -> vector<64x64xf32>
    %cst_55 = arith.constant dense<0x7F800000> : vector<64xf32>
    %120 = vector.multi_reduction <minimumf>, %119, %cst_55 [1] : vector<64x64xf32> to vector<64xf32>
    %121 = vector.shape_cast %120 : vector<64xf32> to vector<64x1xf32>
    %122 = vector.broadcast %121 : vector<64x1xf32> to vector<64x64xf32>
    %123 = arith.cmpf ole, %119, %122 : vector<64x64xf32>
    %cst_56 = arith.constant 6.400000e+01 : f32
    %124 = vector.broadcast %cst_56 : f32 to vector<64x64xf32>
    %125 = arith.select %123, %1, %124 : vector<64x64xi1>, vector<64x64xf32>
    %cst_57 = arith.constant dense<0x7F800000> : vector<64xf32>
    %126 = vector.multi_reduction <minimumf>, %125, %cst_57 [1] : vector<64x64xf32> to vector<64xf32>
    %127 = vector.shape_cast %126 : vector<64xf32> to vector<64x1xf32>
    %128 = vector.broadcast %127 : vector<64x1xf32> to vector<64x64xf32>
    %129 = arith.cmpf oeq, %1, %128 : vector<64x64xf32>
    %130 = arith.extui %129 : vector<64x64xi1> to vector<64x64xi32>
    %131 = arith.sitofp %130 : vector<64x64xi32> to vector<64x64xf32>
    %cst_58 = arith.constant 0x7F800000 : f32
    %132 = vector.broadcast %cst_58 : f32 to vector<64x64xf32>
    %133 = arith.select %129, %132, %119 : vector<64x64xi1>, vector<64x64xf32>
    %cst_59 = arith.constant dense<0x7F800000> : vector<64xf32>
    %134 = vector.multi_reduction <minimumf>, %133, %cst_59 [1] : vector<64x64xf32> to vector<64xf32>
    %135 = vector.shape_cast %134 : vector<64xf32> to vector<64x1xf32>
    %136 = vector.broadcast %135 : vector<64x1xf32> to vector<64x64xf32>
    %137 = arith.cmpf ole, %133, %136 : vector<64x64xf32>
    %cst_60 = arith.constant 6.400000e+01 : f32
    %138 = vector.broadcast %cst_60 : f32 to vector<64x64xf32>
    %139 = arith.select %137, %1, %138 : vector<64x64xi1>, vector<64x64xf32>
    %cst_61 = arith.constant dense<0x7F800000> : vector<64xf32>
    %140 = vector.multi_reduction <minimumf>, %139, %cst_61 [1] : vector<64x64xf32> to vector<64xf32>
    %141 = vector.shape_cast %140 : vector<64xf32> to vector<64x1xf32>
    %142 = vector.broadcast %141 : vector<64x1xf32> to vector<64x64xf32>
    %143 = arith.cmpf oeq, %1, %142 : vector<64x64xf32>
    %144 = arith.extui %143 : vector<64x64xi1> to vector<64x64xi32>
    %145 = arith.sitofp %144 : vector<64x64xi32> to vector<64x64xf32>
    %cst_62 = arith.constant 0x7F800000 : f32
    %146 = vector.broadcast %cst_62 : f32 to vector<64x64xf32>
    %147 = arith.select %143, %146, %133 : vector<64x64xi1>, vector<64x64xf32>
    %cst_63 = arith.constant dense<0x7F800000> : vector<64xf32>
    %148 = vector.multi_reduction <minimumf>, %147, %cst_63 [1] : vector<64x64xf32> to vector<64xf32>
    %149 = vector.shape_cast %148 : vector<64xf32> to vector<64x1xf32>
    %150 = vector.broadcast %149 : vector<64x1xf32> to vector<64x64xf32>
    %151 = arith.cmpf ole, %147, %150 : vector<64x64xf32>
    %cst_64 = arith.constant 6.400000e+01 : f32
    %152 = vector.broadcast %cst_64 : f32 to vector<64x64xf32>
    %153 = arith.select %151, %1, %152 : vector<64x64xi1>, vector<64x64xf32>
    %cst_65 = arith.constant dense<0x7F800000> : vector<64xf32>
    %154 = vector.multi_reduction <minimumf>, %153, %cst_65 [1] : vector<64x64xf32> to vector<64xf32>
    %155 = vector.shape_cast %154 : vector<64xf32> to vector<64x1xf32>
    %156 = vector.broadcast %155 : vector<64x1xf32> to vector<64x64xf32>
    %157 = arith.cmpf oeq, %1, %156 : vector<64x64xf32>
    %158 = arith.extui %157 : vector<64x64xi1> to vector<64x64xi32>
    %159 = arith.sitofp %158 : vector<64x64xi32> to vector<64x64xf32>
    %cst_66 = arith.constant 0x7F800000 : f32
    %160 = vector.broadcast %cst_66 : f32 to vector<64x64xf32>
    %161 = arith.select %157, %160, %147 : vector<64x64xi1>, vector<64x64xf32>
    %cst_67 = arith.constant dense<0x7F800000> : vector<64xf32>
    %162 = vector.multi_reduction <minimumf>, %161, %cst_67 [1] : vector<64x64xf32> to vector<64xf32>
    %163 = vector.shape_cast %162 : vector<64xf32> to vector<64x1xf32>
    %164 = vector.broadcast %163 : vector<64x1xf32> to vector<64x64xf32>
    %165 = arith.cmpf ole, %161, %164 : vector<64x64xf32>
    %cst_68 = arith.constant 6.400000e+01 : f32
    %166 = vector.broadcast %cst_68 : f32 to vector<64x64xf32>
    %167 = arith.select %165, %1, %166 : vector<64x64xi1>, vector<64x64xf32>
    %cst_69 = arith.constant dense<0x7F800000> : vector<64xf32>
    %168 = vector.multi_reduction <minimumf>, %167, %cst_69 [1] : vector<64x64xf32> to vector<64xf32>
    %169 = vector.shape_cast %168 : vector<64xf32> to vector<64x1xf32>
    %170 = vector.broadcast %169 : vector<64x1xf32> to vector<64x64xf32>
    %171 = arith.cmpf oeq, %1, %170 : vector<64x64xf32>
    %172 = arith.extui %171 : vector<64x64xi1> to vector<64x64xi32>
    %173 = arith.sitofp %172 : vector<64x64xi32> to vector<64x64xf32>
    %174 = tpu.concatenate %131, %145, %159, %173 in 0 : vector<64x64xf32>, vector<64x64xf32>, vector<64x64xf32>, vector<64x64xf32> -> vector<256x64xf32>
    %cst_70 = arith.constant dense<0.000000e+00> : vector<256x32xf32>
    %175 = tpu.matmul %174, %110, %cst_70 {dimension_numbers = #tpu.dot_dimension_numbers<[1], [0], [0], [1], [0, 0, 1, 1], [], []>} : vector<256x64xf32>, vector<64x32xf32>, vector<256x32xf32> -> vector<256x32xf32>
    %176 = vector.extract_strided_slice %175 {offsets = [0, 0], sizes = [64, 32], strides = [1, 1]} : vector<256x32xf32> to vector<64x32xf32>
    %177 = vector.extract_strided_slice %175 {offsets = [64, 0], sizes = [64, 32], strides = [1, 1]} : vector<256x32xf32> to vector<64x32xf32>
    %178 = arith.maximumf %176, %177 : vector<64x32xf32>
    %179 = vector.extract_strided_slice %175 {offsets = [128, 0], sizes = [64, 32], strides = [1, 1]} : vector<256x32xf32> to vector<64x32xf32>
    %180 = arith.maximumf %178, %179 : vector<64x32xf32>
    %181 = vector.extract_strided_slice %175 {offsets = [192, 0], sizes = [64, 32], strides = [1, 1]} : vector<256x32xf32> to vector<64x32xf32>
    %182 = arith.maximumf %180, %181 : vector<64x32xf32>
    %183 = arith.addf %111, %182 : vector<64x32xf32>
    %cst_71 = arith.constant 0.000000e+00 : f32
    %184 = vector.broadcast %cst_71 : f32 to vector<64x32xf32>
    %185 = arith.maximumf %183, %184 : vector<64x32xf32>
    %186 = arith.addf %97, %185 : vector<64x32xf32>
    %c32_72 = arith.constant 32 : index
    %c0_73 = arith.constant 0 : index
    %187 = vector.load %arg6[%c32_72, %c0_73] : memref<96x128xf32, #tpu.memory_space<vmem>>, vector<32x128xf32>
    %cst_74 = arith.constant dense<0.000000e+00> : vector<64x128xf32>
    %188 = tpu.matmul %186, %187, %cst_74 {dimension_numbers = #tpu.dot_dimension_numbers<[1], [0], [0], [1], [0, 0, 1, 1], [], []>} : vector<64x32xf32>, vector<32x128xf32>, vector<64x128xf32> -> vector<64x128xf32>
    %189 = arith.addf %100, %188 : vector<64x128xf32>
    %c2 = arith.constant 2 : index
    %c0_75 = arith.constant 0 : index
    %c0_76 = arith.constant 0 : index
    %190 = vector.load %arg4[%c2, %c0_75, %c0_76] : memref<3x64x32xf32, #tpu.memory_space<vmem>>, vector<1x32x32xf32>
    %191 = vector.shape_cast %190 : vector<1x32x32xf32> to vector<32x32xf32>
    %c2_77 = arith.constant 2 : index
    %c32_78 = arith.constant 32 : index
    %c0_79 = arith.constant 0 : index
    %192 = vector.load %arg4[%c2_77, %c32_78, %c0_79] : memref<3x64x32xf32, #tpu.memory_space<vmem>>, vector<1x32x32xf32>
    %193 = vector.shape_cast %192 : vector<1x32x32xf32> to vector<32x32xf32>
    %c2_80 = arith.constant 2 : index
    %c0_81 = arith.constant 0 : index
    %c0_82 = arith.constant 0 : index
    %194 = vector.load %arg5[%c2_80, %c0_81, %c0_82] : memref<3x1x32xf32, #tpu.memory_space<vmem>>, vector<1x1x32xf32>
    %195 = vector.shape_cast %194 : vector<1x1x32xf32> to vector<1x32xf32>
    %cst_83 = arith.constant dense<0.000000e+00> : vector<64x32xf32>
    %196 = tpu.matmul %186, %191, %cst_83 {dimension_numbers = #tpu.dot_dimension_numbers<[1], [0], [0], [1], [0, 0, 1, 1], [], []>} : vector<64x32xf32>, vector<32x32xf32>, vector<64x32xf32> -> vector<64x32xf32>
    %197 = vector.broadcast %195 : vector<1x32xf32> to vector<64x32xf32>
    %198 = arith.addf %196, %197 : vector<64x32xf32>
    %cst_84 = arith.constant dense<0.000000e+00> : vector<64x32xf32>
    %199 = tpu.matmul %186, %193, %cst_84 {dimension_numbers = #tpu.dot_dimension_numbers<[1], [0], [0], [1], [0, 0, 1, 1], [], []>} : vector<64x32xf32>, vector<32x32xf32>, vector<64x32xf32> -> vector<64x32xf32>
    %200 = arith.subf %198, %199 : vector<64x32xf32>
    %201 = arith.mulf %186, %186 : vector<64x32xf32>
    %cst_85 = arith.constant dense<0.000000e+00> : vector<64xf32>
    %202 = vector.multi_reduction <add>, %201, %cst_85 [1] : vector<64x32xf32> to vector<64xf32>
    %203 = vector.shape_cast %202 : vector<64xf32> to vector<64x1xf32>
    %cst_86 = arith.constant -2.000000e+00 : f32
    %204 = vector.broadcast %cst_86 : f32 to vector<64x32xf32>
    %205 = arith.mulf %186, %204 : vector<64x32xf32>
    %206 = tpu.concatenate %205, %2 in 1 : vector<64x32xf32>, vector<64x1xf32> -> vector<64x33xf32>
    %207 = tpu.concatenate %186, %203 in 1 : vector<64x32xf32>, vector<64x1xf32> -> vector<64x33xf32>
    %cst_87 = arith.constant dense<0.000000e+00> : vector<64x64xf32>
    %208 = tpu.matmul %206, %207, %cst_87 {dimension_numbers = #tpu.dot_dimension_numbers<[1], [1], [0], [0], [0, 0, 1, 0], [], []>} : vector<64x33xf32>, vector<64x33xf32>, vector<64x64xf32> -> vector<64x64xf32>
    %cst_88 = arith.constant dense<0x7F800000> : vector<64xf32>
    %209 = vector.multi_reduction <minimumf>, %208, %cst_88 [1] : vector<64x64xf32> to vector<64xf32>
    %210 = vector.shape_cast %209 : vector<64xf32> to vector<64x1xf32>
    %211 = vector.broadcast %210 : vector<64x1xf32> to vector<64x64xf32>
    %212 = arith.cmpf ole, %208, %211 : vector<64x64xf32>
    %cst_89 = arith.constant 6.400000e+01 : f32
    %213 = vector.broadcast %cst_89 : f32 to vector<64x64xf32>
    %214 = arith.select %212, %1, %213 : vector<64x64xi1>, vector<64x64xf32>
    %cst_90 = arith.constant dense<0x7F800000> : vector<64xf32>
    %215 = vector.multi_reduction <minimumf>, %214, %cst_90 [1] : vector<64x64xf32> to vector<64xf32>
    %216 = vector.shape_cast %215 : vector<64xf32> to vector<64x1xf32>
    %217 = vector.broadcast %216 : vector<64x1xf32> to vector<64x64xf32>
    %218 = arith.cmpf oeq, %1, %217 : vector<64x64xf32>
    %219 = arith.extui %218 : vector<64x64xi1> to vector<64x64xi32>
    %220 = arith.sitofp %219 : vector<64x64xi32> to vector<64x64xf32>
    %cst_91 = arith.constant 0x7F800000 : f32
    %221 = vector.broadcast %cst_91 : f32 to vector<64x64xf32>
    %222 = arith.select %218, %221, %208 : vector<64x64xi1>, vector<64x64xf32>
    %cst_92 = arith.constant dense<0x7F800000> : vector<64xf32>
    %223 = vector.multi_reduction <minimumf>, %222, %cst_92 [1] : vector<64x64xf32> to vector<64xf32>
    %224 = vector.shape_cast %223 : vector<64xf32> to vector<64x1xf32>
    %225 = vector.broadcast %224 : vector<64x1xf32> to vector<64x64xf32>
    %226 = arith.cmpf ole, %222, %225 : vector<64x64xf32>
    %cst_93 = arith.constant 6.400000e+01 : f32
    %227 = vector.broadcast %cst_93 : f32 to vector<64x64xf32>
    %228 = arith.select %226, %1, %227 : vector<64x64xi1>, vector<64x64xf32>
    %cst_94 = arith.constant dense<0x7F800000> : vector<64xf32>
    %229 = vector.multi_reduction <minimumf>, %228, %cst_94 [1] : vector<64x64xf32> to vector<64xf32>
    %230 = vector.shape_cast %229 : vector<64xf32> to vector<64x1xf32>
    %231 = vector.broadcast %230 : vector<64x1xf32> to vector<64x64xf32>
    %232 = arith.cmpf oeq, %1, %231 : vector<64x64xf32>
    %233 = arith.extui %232 : vector<64x64xi1> to vector<64x64xi32>
    %234 = arith.sitofp %233 : vector<64x64xi32> to vector<64x64xf32>
    %cst_95 = arith.constant 0x7F800000 : f32
    %235 = vector.broadcast %cst_95 : f32 to vector<64x64xf32>
    %236 = arith.select %232, %235, %222 : vector<64x64xi1>, vector<64x64xf32>
    %cst_96 = arith.constant dense<0x7F800000> : vector<64xf32>
    %237 = vector.multi_reduction <minimumf>, %236, %cst_96 [1] : vector<64x64xf32> to vector<64xf32>
    %238 = vector.shape_cast %237 : vector<64xf32> to vector<64x1xf32>
    %239 = vector.broadcast %238 : vector<64x1xf32> to vector<64x64xf32>
    %240 = arith.cmpf ole, %236, %239 : vector<64x64xf32>
    %cst_97 = arith.constant 6.400000e+01 : f32
    %241 = vector.broadcast %cst_97 : f32 to vector<64x64xf32>
    %242 = arith.select %240, %1, %241 : vector<64x64xi1>, vector<64x64xf32>
    %cst_98 = arith.constant dense<0x7F800000> : vector<64xf32>
    %243 = vector.multi_reduction <minimumf>, %242, %cst_98 [1] : vector<64x64xf32> to vector<64xf32>
    %244 = vector.shape_cast %243 : vector<64xf32> to vector<64x1xf32>
    %245 = vector.broadcast %244 : vector<64x1xf32> to vector<64x64xf32>
    %246 = arith.cmpf oeq, %1, %245 : vector<64x64xf32>
    %247 = arith.extui %246 : vector<64x64xi1> to vector<64x64xi32>
    %248 = arith.sitofp %247 : vector<64x64xi32> to vector<64x64xf32>
    %cst_99 = arith.constant 0x7F800000 : f32
    %249 = vector.broadcast %cst_99 : f32 to vector<64x64xf32>
    %250 = arith.select %246, %249, %236 : vector<64x64xi1>, vector<64x64xf32>
    %cst_100 = arith.constant dense<0x7F800000> : vector<64xf32>
    %251 = vector.multi_reduction <minimumf>, %250, %cst_100 [1] : vector<64x64xf32> to vector<64xf32>
    %252 = vector.shape_cast %251 : vector<64xf32> to vector<64x1xf32>
    %253 = vector.broadcast %252 : vector<64x1xf32> to vector<64x64xf32>
    %254 = arith.cmpf ole, %250, %253 : vector<64x64xf32>
    %cst_101 = arith.constant 6.400000e+01 : f32
    %255 = vector.broadcast %cst_101 : f32 to vector<64x64xf32>
    %256 = arith.select %254, %1, %255 : vector<64x64xi1>, vector<64x64xf32>
    %cst_102 = arith.constant dense<0x7F800000> : vector<64xf32>
    %257 = vector.multi_reduction <minimumf>, %256, %cst_102 [1] : vector<64x64xf32> to vector<64xf32>
    %258 = vector.shape_cast %257 : vector<64xf32> to vector<64x1xf32>
    %259 = vector.broadcast %258 : vector<64x1xf32> to vector<64x64xf32>
    %260 = arith.cmpf oeq, %1, %259 : vector<64x64xf32>
    %261 = arith.extui %260 : vector<64x64xi1> to vector<64x64xi32>
    %262 = arith.sitofp %261 : vector<64x64xi32> to vector<64x64xf32>
    %263 = tpu.concatenate %220, %234, %248, %262 in 0 : vector<64x64xf32>, vector<64x64xf32>, vector<64x64xf32>, vector<64x64xf32> -> vector<256x64xf32>
    %cst_103 = arith.constant dense<0.000000e+00> : vector<256x32xf32>
    %264 = tpu.matmul %263, %199, %cst_103 {dimension_numbers = #tpu.dot_dimension_numbers<[1], [0], [0], [1], [0, 0, 1, 1], [], []>} : vector<256x64xf32>, vector<64x32xf32>, vector<256x32xf32> -> vector<256x32xf32>
    %265 = vector.extract_strided_slice %264 {offsets = [0, 0], sizes = [64, 32], strides = [1, 1]} : vector<256x32xf32> to vector<64x32xf32>
    %266 = vector.extract_strided_slice %264 {offsets = [64, 0], sizes = [64, 32], strides = [1, 1]} : vector<256x32xf32> to vector<64x32xf32>
    %267 = arith.maximumf %265, %266 : vector<64x32xf32>
    %268 = vector.extract_strided_slice %264 {offsets = [128, 0], sizes = [64, 32], strides = [1, 1]} : vector<256x32xf32> to vector<64x32xf32>
    %269 = arith.maximumf %267, %268 : vector<64x32xf32>
    %270 = vector.extract_strided_slice %264 {offsets = [192, 0], sizes = [64, 32], strides = [1, 1]} : vector<256x32xf32> to vector<64x32xf32>
    %271 = arith.maximumf %269, %270 : vector<64x32xf32>
    %272 = arith.addf %200, %271 : vector<64x32xf32>
    %cst_104 = arith.constant 0.000000e+00 : f32
    %273 = vector.broadcast %cst_104 : f32 to vector<64x32xf32>
    %274 = arith.maximumf %272, %273 : vector<64x32xf32>
    %275 = arith.addf %186, %274 : vector<64x32xf32>
    %c64 = arith.constant 64 : index
    %c0_105 = arith.constant 0 : index
    %276 = vector.load %arg6[%c64, %c0_105] : memref<96x128xf32, #tpu.memory_space<vmem>>, vector<32x128xf32>
    %cst_106 = arith.constant dense<0.000000e+00> : vector<64x128xf32>
    %277 = tpu.matmul %275, %276, %cst_106 {dimension_numbers = #tpu.dot_dimension_numbers<[1], [0], [0], [1], [0, 0, 1, 1], [], []>} : vector<64x32xf32>, vector<32x128xf32>, vector<64x128xf32> -> vector<64x128xf32>
    %278 = arith.addf %189, %277 : vector<64x128xf32>
    %c0_107 = arith.constant 0 : index
    %c0_108 = arith.constant 0 : index
    %c0_109 = arith.constant 0 : index
    %279 = vector.load %arg7[%c0_107, %c0_108, %c0_109] : memref<1x64x128xf32, #tpu.memory_space<vmem>>, vector<1x64x128xf32>
    %280 = vector.shape_cast %279 : vector<1x64x128xf32> to vector<64x128xf32>
    %281 = vector.shape_cast %278 : vector<64x128xf32> to vector<1x64x128xf32>
    tpu.vector_store %arg7[%c0_107, %c0_108, %c0_109], %281 {strides = array<i32>} : memref<1x64x128xf32, #tpu.memory_space<vmem>>, vector<1x64x128xf32>,
    return
  }
  func.func @transform_0(%arg0: i32) -> (i32, i32, i32) {
    %c0_i32 = arith.constant 0 : i32
    %c0_i32_0 = arith.constant 0 : i32
    %c0_i32_1 = arith.constant 0 : i32
    return %arg0, %c0_i32, %c0_i32_0 : i32, i32, i32
  }
  func.func @transform_1(%arg0: i32) -> (i32, i32) {
    %c0_i32 = arith.constant 0 : i32
    %c0_i32_0 = arith.constant 0 : i32
    %c0_i32_1 = arith.constant 0 : i32
    return %c0_i32, %c0_i32_0 : i32, i32
  }
  func.func @transform_2(%arg0: i32) -> (i32, i32) {
    %c0_i32 = arith.constant 0 : i32
    %c0_i32_0 = arith.constant 0 : i32
    %c0_i32_1 = arith.constant 0 : i32
    return %c0_i32, %c0_i32_0 : i32, i32
  }
  func.func @transform_3(%arg0: i32) -> (i32, i32, i32) {
    %c0_i32 = arith.constant 0 : i32
    %c0_i32_0 = arith.constant 0 : i32
    %c0_i32_1 = arith.constant 0 : i32
    %c0_i32_2 = arith.constant 0 : i32
    return %c0_i32, %c0_i32_0, %c0_i32_1 : i32, i32, i32
  }
  func.func @transform_4(%arg0: i32) -> (i32, i32, i32) {
    %c0_i32 = arith.constant 0 : i32
    %c0_i32_0 = arith.constant 0 : i32
    %c0_i32_1 = arith.constant 0 : i32
    %c0_i32_2 = arith.constant 0 : i32
    return %c0_i32, %c0_i32_0, %c0_i32_1 : i32, i32, i32
  }
  func.func @transform_5(%arg0: i32) -> (i32, i32) {
    %c0_i32 = arith.constant 0 : i32
    %c0_i32_0 = arith.constant 0 : i32
    %c0_i32_1 = arith.constant 0 : i32
    return %c0_i32, %c0_i32_0 : i32, i32
  }
  func.func @transform_6(%arg0: i32) -> (i32, i32, i32) {
    %c0_i32 = arith.constant 0 : i32
    %c0_i32_0 = arith.constant 0 : i32
    %c0_i32_1 = arith.constant 0 : i32
    return %arg0, %c0_i32, %c0_i32_0 : i32, i32, i32
  }
}

</mosaic_0001>

<llo_original>
// kernel: gcn_npcic_forward.1
$region0: #{gcn_npcic_forward.1}
  #allocation0 [shape = 'u32[]', space=smem, size = 0x4, offset = 0x4, fixed_abs, tag = 'smem constant byte address 0x4 - core index']
  #allocation1 [shape = 'u32[144,128]{1,0:T(1,128)}', space=vmem, size = 0x12000, scoped, tag = 'internal scratch']
  %s0 = inlined_call_operand.vmem [shape: f32[2,64,16], index: 0, kind: input, shape index: {}]
  %s1 = inlined_call_operand.vmem [shape: f32[16,32], index: 1, kind: input, shape index: {}]
  %s2 = inlined_call_operand.vmem [shape: f32[1,32], index: 2, kind: input, shape index: {}]
  %s3 = inlined_call_operand.vmem [shape: f32[3,64,32], index: 3, kind: input, shape index: {}]
  %s4 = inlined_call_operand.vmem [shape: f32[3,1,32], index: 4, kind: input, shape index: {}]
  %s5 = inlined_call_operand.vmem [shape: f32[96,128], index: 5, kind: input, shape index: {}]
  %s6 = inlined_call_operand.vmem [shape: f32[2,64,128], index: 6, kind: output, shape index: {}]
  %s7 = sld [smem:[#allocation0]]
  $region57: #{gcn_npcic_forward.1} parent=0
    _
  %s9 = ssub.s32 1, %s7
  %s10 = scalar_select 0, %s9, %s7
  loop: start=0, step=1, limit=4
  $region2: #{gcn_npcic_forward.1} parent=0 // loop_pre_header
    _
  $region3: #{gcn_npcic_forward.1} parent=0 // loop_header
    %s12 = sphi 0, %s16
    %p13 = scmp.ge.s32.totalorder %s12, 4
    %s22 = sphi 0, %s24
    %s25 = sphi 0, %s22
    %s26 = sphi 0, %s25
    %s42 = sphi 0, %s26
    %s46 = sphi 0, %s46
    %s48 = sphi 0, %s46
    %s49 = sphi 0, %s48
    %s63 = sphi 0, %s49
    %s67 = sphi 0, %s67
    %s69 = sphi 0, %s67
    %s70 = sphi 0, %s69
    %s84 = sphi 0, %s70
    %s88 = sphi 0, %s88
    %s90 = sphi 0, %s88
    %s91 = sphi 0, %s90
    %s105 = sphi 0, %s91
    %s109 = sphi 0, %s109
    %s111 = sphi 0, %s109
    %s112 = sphi 0, %s111
    %s126 = sphi 0, %s112
    %s130 = sphi 0, %s130
    %s132 = sphi 0, %s130
    %s133 = sphi 0, %s132
    %s147 = sphi 0, %s133
    %s153 = sphi 0, %s155
    %s156 = sphi 0, %s153
    %s157 = sphi 0, %s156
    %s173 = sphi 0, %s157
  $region4: #{gcn_npcic_forward.1} parent=0 // loop_header_branch
    %15 = sbr.rel (%p13) target = $region8
  $region5: #{gcn_npcic_forward.1} parent=0 // loop_body
    %s17 = ssub.s32 %s12, 1
    %s18 = ssub.s32 %s12, 2
    %s19 = sadd.s32 %s12, 1
    %s20 = ssub.s32 %s12, %s19
    %p21 = scmp.eq.s32.totalorder %s20, 0
    %s23 = sadd.s32 %s22, 1
    %s24 = scalar_select %p21, %s22, %s23
    %p27 = pneg %p21
    %p28 = scmp.eq.s32.totalorder %s12, 1
    %p29 = por %p27, %p28
    %p30 = scmp.ne.s32.totalorder %s22, %s25
    %p31 = scmp.eq.s32.totalorder %s12, 0
    %p32 = por %p30, %p31
    %p33 = scmp.ne.s32.totalorder %s22, %s25
    %p34 = scmp.eq.s32.totalorder %s17, 1
    %p35 = por %p33, %p34
    %p36 = scmp.ne.s32.totalorder %s25, %s26
    %p37 = scmp.eq.s32.totalorder %s17, 0
    %p38 = por %p36, %p37
    %p39 = scmp.ne.s32.totalorder %s25, %s26
    %p40 = scmp.eq.s32.totalorder %s18, 1
    %p41 = por %p39, %p40
    %p43 = scmp.ne.s32.totalorder %s26, %s42
    %p44 = scmp.eq.s32.totalorder %s18, 0
    %p45 = por %p43, %p44
    %s47 = sadd.s32 %s46, 1
    %p50 = scmp.eq.s32.totalorder %s12, 1
    %p51 = scmp.ne.s32.totalorder %s46, %s48
    %p52 = scmp.eq.s32.totalorder %s12, 0
    %p53 = por %p51, %p52
    %p54 = scmp.ne.s32.totalorder %s46, %s48
    %p55 = scmp.eq.s32.totalorder %s17, 1
    %p56 = por %p54, %p55
    %p57 = scmp.ne.s32.totalorder %s48, %s49
    %p58 = scmp.eq.s32.totalorder %s17, 0
    %p59 = por %p57, %p58
    %p60 = scmp.ne.s32.totalorder %s48, %s49
    %p61 = scmp.eq.s32.totalorder %s18, 1
    %p62 = por %p60, %p61
    %p64 = scmp.ne.s32.totalorder %s49, %s63
    %p65 = scmp.eq.s32.totalorder %s18, 0
    %p66 = por %p64, %p65
    %s68 = sadd.s32 %s67, 1
    %p71 = scmp.eq.s32.totalorder %s12, 1
    %p72 = scmp.ne.s32.totalorder %s67, %s69
    %p73 = scmp.eq.s32.totalorder %s12, 0
    %p74 = por %p72, %p73
    %p75 = scmp.ne.s32.totalorder %s67, %s69
    %p76 = scmp.eq.s32.totalorder %s17, 1
    %p77 = por %p75, %p76
    %p78 = scmp.ne.s32.totalorder %s69, %s70
    %p79 = scmp.eq.s32.totalorder %s17, 0
    %p80 = por %p78, %p79
    %p81 = scmp.ne.s32.totalorder %s69, %s70
    %p82 = scmp.eq.s32.totalorder %s18, 1
    %p83 = por %p81, %p82
    %p85 = scmp.ne.s32.totalorder %s70, %s84
    %p86 = scmp.eq.s32.totalorder %s18, 0
    %p87 = por %p85, %p86
    %s89 = sadd.s32 %s88, 1
    %p92 = scmp.eq.s32.totalorder %s12, 1
    %p93 = scmp.ne.s32.totalorder %s88, %s90
    %p94 = scmp.eq.s32.totalorder %s12, 0
    %p95 = por %p93, %p94
    %p96 = scmp.ne.s32.totalorder %s88, %s90
    %p97 = scmp.eq.s32.totalorder %s17, 1
    %p98 = por %p96, %p97
    %p99 = scmp.ne.s32.totalorder %s90, %s91
    %p100 = scmp.eq.s32.totalorder %s17, 0
    %p101 = por %p99, %p100
    %p102 = scmp.ne.s32.totalorder %s90, %s91
    %p103 = scmp.eq.s32.totalorder %s18, 1
    %p104 = por %p102, %p103
    %p106 = scmp.ne.s32.totalorder %s91, %s105
    %p107 = scmp.eq.s32.totalorder %s18, 0
    %p108 = por %p106, %p107
    %s110 = sadd.s32 %s109, 1
    %p113 = scmp.eq.s32.totalorder %s12, 1
    %p114 = scmp.ne.s32.totalorder %s109, %s111
    %p115 = scmp.eq.s32.totalorder %s12, 0
    %p116 = por %p114, %p115
    %p117 = scmp.ne.s32.totalorder %s109, %s111
    %p118 = scmp.eq.s32.totalorder %s17, 1
    %p119 = por %p117, %p118
    %p120 = scmp.ne.s32.totalorder %s111, %s112
    %p121 = scmp.eq.s32.totalorder %s17, 0
    %p122 = por %p120, %p121
    %p123 = scmp.ne.s32.totalorder %s111, %s112
    %p124 = scmp.eq.s32.totalorder %s18, 1
    %p125 = por %p123, %p124
    %p127 = scmp.ne.s32.totalorder %s112, %s126
    %p128 = scmp.eq.s32.totalorder %s18, 0
    %p129 = por %p127, %p128
    %s131 = sadd.s32 %s130, 1
    %p134 = scmp.eq.s32.totalorder %s12, 1
    %p135 = scmp.ne.s32.totalorder %s130, %s132
    %p136 = scmp.eq.s32.totalorder %s12, 0
    %p137 = por %p135, %p136
    %p138 = scmp.ne.s32.totalorder %s130, %s132
    %p139 = scmp.eq.s32.totalorder %s17, 1
    %p140 = por %p138, %p139
    %p141 = scmp.ne.s32.totalorder %s132, %s133
    %p142 = scmp.eq.s32.totalorder %s17, 0
    %p143 = por %p141, %p142
    %p144 = scmp.ne.s32.totalorder %s132, %s133
    %p145 = scmp.eq.s32.totalorder %s18, 1
    %p146 = por %p144, %p145
    %p148 = scmp.ne.s32.totalorder %s133, %s147
    %p149 = scmp.eq.s32.totalorder %s18, 0
    %p150 = por %p148, %p149
    %s151 = ssub.s32 %s12, %s19
    %p152 = scmp.eq.s32.totalorder %s151, 0
    %s154 = sadd.s32 %s153, 1
    %s155 = scalar_select %p152, %s153, %s154
    %p158 = pneg %p152
    %p159 = scmp.eq.s32.totalorder %s12, 1
    %p160 = por %p158, %p159
    %p161 = scmp.ne.s32.totalorder %s153, %s156
    %p162 = scmp.eq.s32.totalorder %s12, 0
    %p163 = por %p161, %p162
    %p164 = scmp.ne.s32.totalorder %s153, %s156
    %p165 = scmp.eq.s32.totalorder %s17, 1
    %p166 = por %p164, %p165
    %p167 = scmp.ne.s32.totalorder %s156, %s157
    %p168 = scmp.eq.s32.totalorder %s17, 0
    %p169 = por %p167, %p168
    %p170 = scmp.ne.s32.totalorder %s156, %s157
    %p171 = scmp.eq.s32.totalorder %s18, 1
    %p172 = por %p170, %p171
    %p174 = scmp.ne.s32.totalorder %s157, %s173
    %p175 = scmp.eq.s32.totalorder %s18, 0
    %p176 = por %p174, %p175
    %p177 = scmp.le.s32.totalorder 1, %s12
    %p178 = scmp.lt.s32.totalorder %s12, 3
    %p179 = pnand %p177, %p178
    %p180 = pneg %p179
    // Predicated region
    $region9: #{gcn_npcic_forward.1} parent=5 // pred_check
      _
    $region10: #{gcn_npcic_forward.1} parent=5 // pred_check_branch
      %182 = sbr.rel (%p179) target = $region12
    $region11: #{gcn_npcic_forward.1} parent=5 // pred_region
      %s183 = ssub.s32 %s12, 1
      // Predicated region
      $region13: #{gcn_npcic_forward.1} parent=11 // pred_check
        %p184 = pneg %p59
      $region14: #{gcn_npcic_forward.1} parent=11 // pred_check_branch
        %186 = sbr.rel (%p184) target = $region16
      $region15: #{gcn_npcic_forward.1} parent=11 // pred_region
        _
      $region16: #{gcn_npcic_forward.1} parent=11 // pred_fallthru
        _
      // Predicated region
      $region17: #{gcn_npcic_forward.1} parent=11 // pred_check
        %p187 = pneg %p80
      $region18: #{gcn_npcic_forward.1} parent=11 // pred_check_branch
        %189 = sbr.rel (%p187) target = $region20
      $region19: #{gcn_npcic_forward.1} parent=11 // pred_region
        _
      $region20: #{gcn_npcic_forward.1} parent=11 // pred_fallthru
        _
      // Predicated region
      $region21: #{gcn_npcic_forward.1} parent=11 // pred_check
        %p190 = pneg %p101
      $region22: #{gcn_npcic_forward.1} parent=11 // pred_check_branch
        %192 = sbr.rel (%p190) target = $region24
      $region23: #{gcn_npcic_forward.1} parent=11 // pred_region
        _
      $region24: #{gcn_npcic_forward.1} parent=11 // pred_fallthru
        _
      // Predicated region
      $region25: #{gcn_npcic_forward.1} parent=11 // pred_check
        %p193 = pneg %p122
      $region26: #{gcn_npcic_forward.1} parent=11 // pred_check_branch
        %195 = sbr.rel (%p193) target = $region28
      $region27: #{gcn_npcic_forward.1} parent=11 // pred_region
        _
      $region28: #{gcn_npcic_forward.1} parent=11 // pred_fallthru
        _
      // Predicated region
      $region29: #{gcn_npcic_forward.1} parent=11 // pred_check
        %p196 = pneg %p143
      $region30: #{gcn_npcic_forward.1} parent=11 // pred_check_branch
        %198 = sbr.rel (%p196) target = $region32
      $region31: #{gcn_npcic_forward.1} parent=11 // pred_region
        _
      $region32: #{gcn_npcic_forward.1} parent=11 // pred_fallthru
        _
    $region12: #{gcn_npcic_forward.1} parent=5 // pred_fallthru
      _
    %p199 = scmp.lt.s32.totalorder %s12, 2
    // Predicated region
    $region33: #{gcn_npcic_forward.1} parent=5 // pred_check
      %p200 = pneg %p199
    $region34: #{gcn_npcic_forward.1} parent=5 // pred_check_branch
      %202 = sbr.rel (%p200) target = $region36
    $region35: #{gcn_npcic_forward.1} parent=5 // pred_region
      // Predicated region
      $region37: #{gcn_npcic_forward.1} parent=35 // pred_check
        %p203 = pneg %p32
      $region38: #{gcn_npcic_forward.1} parent=35 // pred_check_branch
        %205 = sbr.rel (%p203) target = $region40
      $region39: #{gcn_npcic_forward.1} parent=35 // pred_region
        %p206 = scmp.lt.s32.totalorder %s12, 1
        %s207 = scalar_select %p206, %s12, 1
        %s208 = smul.addr %s207, 8
        %s209 = smul.addr %s208, 8
        %s210 = scalar_lea.vmem %s0, %s209
      $region40: #{gcn_npcic_forward.1} parent=35 // pred_fallthru
        _
    $region36: #{gcn_npcic_forward.1} parent=5 // pred_fallthru
      _
    %p211 = scmp.le.s32.totalorder 1, %s12
    %p212 = scmp.lt.s32.totalorder %s12, 3
    %p213 = pnand %p211, %p212
    %p214 = pneg %p213
    // Predicated region
    $region41: #{gcn_npcic_forward.1} parent=5 // pred_check
      _
    $region42: #{gcn_npcic_forward.1} parent=5 // pred_check_branch
      %216 = sbr.rel (%p213) target = $region44
    $region43: #{gcn_npcic_forward.1} parent=5 // pred_region
      %s217 = ssub.s32 %s12, 1
      %p218 = scmp.lt.s32.totalorder %s17, 1
      %s219 = scalar_select %p218, %s17, 1
      %s220 = smul.addr %s219, 8
      %s221 = smul.addr %s220, 8
      %s222 = scalar_lea.vmem %s0, %s221
      %p223 = pneg %p38
      %p224 = pneg %p35
      %p225 = pneg %p59
      %p226 = pneg %p56
      %p227 = pneg %p80
      %p228 = pneg %p77
      %p229 = pneg %p101
      %p230 = pneg %p98
      %p231 = pneg %p122
      %p232 = pneg %p119
      %p233 = pneg %p143
      %p234 = pneg %p140
      %p235 = pneg %p169
      %p236 = pneg %p166
      %p237 = scmp.lt.s32.totalorder %s17, 1
      %s238 = scalar_select %p237, %s17, 1
      %s239 = smul.addr %s238, 8
      %s240 = smul.addr %s239, 8
      %s241 = scalar_lea.vmem %s6, %s240
      %p242 = scmp.lt.s32.totalorder %s17, 1
      %s243 = scalar_select %p242, %s17, 1
      %s244 = smul.addr %s243, 8
      %s245 = smul.addr %s244, 8
      %s246 = scalar_lea.vmem %s0, %s245
      %p247 = scmp.lt.s32.totalorder %s17, 1
      %s248 = scalar_select %p247, %s17, 1
      %s249 = smul.addr %s248, 8
      %s250 = smul.addr %s249, 8
      %s251 = scalar_lea.vmem %s6, %s250
      %v252 = vlaneseq
      %v253 = vand.u32 %v252, 127
      %v254 = vcvt.s32.f32 %v253
      %v255 = vld [vmem:[%s246] sm:$0xff]
      %v256 = vld [vmem:[%s246 + $0x8] sm:$0xff]
      %v257 = vld [vmem:[%s246 + $0x10] sm:$0xff]
      %v258 = vld [vmem:[%s246 + $0x18] sm:$0xff]
      %v259 = vld [vmem:[%s246 + $0x20] sm:$0xff]
      %v260 = vld [vmem:[%s246 + $0x28] sm:$0xff]
      %v261 = vld [vmem:[%s246 + $0x30] sm:$0xff]
      %v262 = vld [vmem:[%s246 + $0x38] sm:$0xff]
      %v263 = vld [vmem:[%s1] sm:$0xff]
      %v264 = vld [vmem:[%s1 + $0x8] sm:$0xff]
      %v265 = vld [vmem:[%s2] sm:$0x1]
      %v267 = vlaneseq
      %v268 = vshrl.u32 %v267, 7
      %v269 = vsub.s32 0, %v268
      %v270 = vrot.slane %v265, %v269
      %vm272 = vcmask 130048
      %v274 = vsel %vm272, %v255, 0
      %v277 = vsel %vm272, %v256, 0
      %v280 = vsel %vm272, %v257, 0
      %v283 = vsel %vm272, %v258, 0
      %v286 = vsel %vm272, %v259, 0
      %v289 = vsel %vm272, %v260, 0
      %v292 = vsel %vm272, %v261, 0
      %v295 = vsel %vm272, %v262, 0
      %297 = vmatprep.subr.mxu0 0.0
      %298 = vmatpush1.msra.mxu0 0.0
      %299 = vmatprep.subr.mxu0 0.0
      %300 = vmatpush1.msra.mxu0 0.0
      %301 = vmatprep.subr.mxu0 0.0
      %302 = vmatpush1.msra.mxu0 0.0
      %303 = vmatprep.subr.mxu0 0.0
      %304 = vmatpush1.msra.mxu0 0.0
      %305 = vmatprep.subr.mxu0 0.0
      %306 = vmatpush1.msra.mxu0 0.0
      %307 = vmatprep.subr.mxu0 0.0
      %308 = vmatpush1.msra.mxu0 0.0
      %309 = vmatprep.subr.mxu0 0.0
      %310 = vmatpush1.msra.mxu0 0.0
      %311 = vmatprep.subr.mxu0 0.0
      %312 = vmatpush1.msra.mxu0 0.0
      %313 = vmatprep.subr.mxu0 0.0
      %314 = vmatpush1.msra.mxu0 0.0
      %315 = vmatprep.subr.mxu0 0.0
      %316 = vmatpush1.msra.mxu0 0.0
      %317 = vmatprep.subr.mxu0 0.0
      %318 = vmatpush1.msra.mxu0 0.0
      %319 = vmatprep.subr.mxu0 0.0
      %320 = vmatpush1.msra.mxu0 0.0
      %321 = vmatprep.subr.mxu0 0.0
      %322 = vmatpush1.msra.mxu0 0.0
      %323 = vmatprep.subr.mxu0 0.0
      %324 = vmatpush1.msra.mxu0 0.0
      %325 = vmatprep.subr.mxu0 0.0
      %326 = vmatpush1.msra.mxu0 %v264
      %327 = vmatprep.subr.mxu0 0.0
      %328 = vmatpush1.msra.mxu0 %v263
      %329 = vmatprep.subr.mxu0 0.0
      %330 = vmatpush2.msra.mxu0 0.0
      %331 = vmatprep.subr.mxu0 0.0
      %332 = vmatpush2.msra.mxu0 0.0
      %333 = vmatprep.subr.mxu0 0.0
      %334 = vmatpush2.msra.mxu0 0.0
      %335 = vmatprep.subr.mxu0 0.0
      %336 = vmatpush2.msra.mxu0 0.0
      %337 = vmatprep.subr.mxu0 0.0
      %338 = vmatpush2.msra.mxu0 0.0
      %339 = vmatprep.subr.mxu0 0.0
      %340 = vmatpush2.msra.mxu0 0.0
      %341 = vmatprep.subr.mxu0 0.0
      %342 = vmatpush2.msra.mxu0 0.0
      %343 = vmatprep.subr.mxu0 0.0
      %344 = vmatpush2.msra.mxu0 0.0
      %345 = vmatprep.subr.mxu0 0.0
      %346 = vmatpush2.msra.mxu0 0.0
      %347 = vmatprep.subr.mxu0 0.0
      %348 = vmatpush2.msra.mxu0 0.0
      %349 = vmatprep.subr.mxu0 0.0
      %350 = vmatpush2.msra.mxu0 0.0
      %351 = vmatprep.subr.mxu0 0.0
      %352 = vmatpush2.msra.mxu0 0.0
      %353 = vmatprep.subr.mxu0 0.0
      %354 = vmatpush2.msra.mxu0 0.0
      %355 = vmatprep.subr.mxu0 0.0
      %356 = vmatpush2.msra.mxu0 0.0
      %357 = vmatprep.subr.mxu0 0.0
      %358 = vmatpush2.msra.mxu0 0.0
      %359 = vmatprep.subr.mxu0 0.0
      %360 = vmatpush2.msra.mxu0 0.0
      %361 = vmatprep.mubr.f32.mxu0 0.0
      %362 = vmatmul.mubr.f32.gmra.mxu0 %v274
      %v363 = vpop.f32.mrf.mxu0
      %v364 = vadd.f32 %v270, %v363
      %v365 = vpop.f32.mrf.mxu0
      %366 = vmatprep.mubr.f32.mxu0 0.0
      %367 = vmatmul.mubr.f32.gmra.mxu0 %v277
      %v368 = vpop.f32.mrf.mxu0
      %v369 = vadd.f32 %v270, %v368
      %v370 = vpop.f32.mrf.mxu0
      %371 = vmatprep.mubr.f32.mxu0 0.0
      %372 = vmatmul.mubr.f32.gmra.mxu0 %v280
      %v373 = vpop.f32.mrf.mxu0
      %v374 = vadd.f32 %v270, %v373
      %v375 = vpop.f32.mrf.mxu0
      %376 = vmatprep.mubr.f32.mxu0 0.0
      %377 = vmatmul.mubr.f32.gmra.mxu0 %v283
      %v378 = vpop.f32.mrf.mxu0
      %v379 = vadd.f32 %v270, %v378
      %v380 = vpop.f32.mrf.mxu0
      %381 = vmatprep.mubr.f32.mxu0 0.0
      %382 = vmatmul.mubr.f32.gmra.mxu0 %v286
      %v383 = vpop.f32.mrf.mxu0
      %v384 = vadd.f32 %v270, %v383
      %v385 = vpop.f32.mrf.mxu0
      %386 = vmatprep.mubr.f32.mxu0 0.0
      %387 = vmatmul.mubr.f32.gmra.mxu0 %v289
      %v388 = vpop.f32.mrf.mxu0
      %v389 = vadd.f32 %v270, %v388
      %v390 = vpop.f32.mrf.mxu0
      %391 = vmatprep.mubr.f32.mxu0 0.0
      %392 = vmatmul.mubr.f32.gmra.mxu0 %v292
      %v393 = vpop.f32.mrf.mxu0
      %v394 = vadd.f32 %v270, %v393
      %v395 = vpop.f32.mrf.mxu0
      %396 = vmatprep.mubr.f32.mxu0 0.0
      %397 = vmatmul.mubr.f32.gmra.mxu0 %v295
      %v398 = vpop.f32.mrf.mxu0
      %v399 = vadd.f32 %v270, %v398
      %v400 = vpop.f32.mrf.mxu0
      %401 = vdwg.mxu0
      %v402 = vmax.f32 %v364, 0.0
      %v403 = vmax.f32 %v369, 0.0
      %v404 = vmax.f32 %v374, 0.0
      %v405 = vmax.f32 %v379, 0.0
      %v406 = vmax.f32 %v384, 0.0
      %v407 = vmax.f32 %v389, 0.0
      %v408 = vmax.f32 %v394, 0.0
      %v409 = vmax.f32 %v399, 0.0
      %v410 = vld [vmem:[%s3] sm:$0xff]
      %v411 = vld [vmem:[%s3 + $0x8] sm:$0xff]
      %v412 = vld [vmem:[%s3 + $0x10] sm:$0xff]
      %v413 = vld [vmem:[%s3 + $0x18] sm:$0xff]
      %v414 = vld [vmem:[%s3 + $0x20] sm:$0xff]
      %v415 = vld [vmem:[%s3 + $0x28] sm:$0xff]
      %v416 = vld [vmem:[%s3 + $0x30] sm:$0xff]
      %v417 = vld [vmem:[%s3 + $0x38] sm:$0xff]
      %v418 = vld [vmem:[%s4] sm:$0x1]
      %v420 = vlaneseq
      %v421 = vshrl.u32 %v420, 7
      %v422 = vsub.s32 0, %v421
      %v423 = vrot.slane %v418, %v422
      %vm425 = vcmask 261120
      %v427 = vsel %vm425, %v402, 0
      %v430 = vsel %vm425, %v403, 0
      %v433 = vsel %vm425, %v404, 0
      %v436 = vsel %vm425, %v405, 0
      %v439 = vsel %vm425, %v406, 0
      %v442 = vsel %vm425, %v407, 0
      %v445 = vsel %vm425, %v408, 0
      %v448 = vsel %vm425, %v409, 0
      %450 = vmatprep.subr.mxu0 0.0
      %451 = vmatpush1.msra.mxu0 0.0
      %452 = vmatprep.subr.mxu0 0.0
      %453 = vmatpush1.msra.mxu0 0.0
      %454 = vmatprep.subr.mxu0 0.0
      %455 = vmatpush1.msra.mxu0 0.0
      %456 = vmatprep.subr.mxu0 0.0
      %457 = vmatpush1.msra.mxu0 0.0
      %458 = vmatprep.subr.mxu0 0.0
      %459 = vmatpush1.msra.mxu0 0.0
      %460 = vmatprep.subr.mxu0 0.0
      %461 = vmatpush1.msra.mxu0 0.0
      %462 = vmatprep.subr.mxu0 0.0
      %463 = vmatpush1.msra.mxu0 0.0
      %464 = vmatprep.subr.mxu0 0.0
      %465 = vmatpush1.msra.mxu0 0.0
      %466 = vmatprep.subr.mxu0 0.0
      %467 = vmatpush1.msra.mxu0 0.0
      %468 = vmatprep.subr.mxu0 0.0
      %469 = vmatpush1.msra.mxu0 0.0
      %470 = vmatprep.subr.mxu0 0.0
      %471 = vmatpush1.msra.mxu0 0.0
      %472 = vmatprep.subr.mxu0 0.0
      %473 = vmatpush1.msra.mxu0 0.0
      %474 = vmatprep.subr.mxu0 0.0
      %475 = vmatpush1.msra.mxu0 %v413
      %476 = vmatprep.subr.mxu0 0.0
      %477 = vmatpush1.msra.mxu0 %v412
      %478 = vmatprep.subr.mxu0 0.0
      %479 = vmatpush1.msra.mxu0 %v411
      %480 = vmatprep.subr.mxu0 0.0
      %481 = vmatpush1.msra.mxu0 %v410
      %482 = vmatprep.subr.mxu0 0.0
      %483 = vmatpush2.msra.mxu0 0.0
      %484 = vmatprep.subr.mxu0 0.0
      %485 = vmatpush2.msra.mxu0 0.0
      %486 = vmatprep.subr.mxu0 0.0
      %487 = vmatpush2.msra.mxu0 0.0
      %488 = vmatprep.subr.mxu0 0.0
      %489 = vmatpush2.msra.mxu0 0.0
      %490 = vmatprep.subr.mxu0 0.0
      %491 = vmatpush2.msra.mxu0 0.0
      %492 = vmatprep.subr.mxu0 0.0
      %493 = vmatpush2.msra.mxu0 0.0
      %494 = vmatprep.subr.mxu0 0.0
      %495 = vmatpush2.msra.mxu0 0.0
      %496 = vmatprep.subr.mxu0 0.0
      %497 = vmatpush2.msra.mxu0 0.0
      %498 = vmatprep.subr.mxu0 0.0
      %499 = vmatpush2.msra.mxu0 0.0
      %500 = vmatprep.subr.mxu0 0.0
      %501 = vmatpush2.msra.mxu0 0.0
      %502 = vmatprep.subr.mxu0 0.0
      %503 = vmatpush2.msra.mxu0 0.0
      %504 = vmatprep.subr.mxu0 0.0
      %505 = vmatpush2.msra.mxu0 0.0
      %506 = vmatprep.subr.mxu0 0.0
      %507 = vmatpush2.msra.mxu0 0.0
      %508 = vmatprep.subr.mxu0 0.0
      %509 = vmatpush2.msra.mxu0 0.0
      %510 = vmatprep.subr.mxu0 0.0
      %511 = vmatpush2.msra.mxu0 0.0
      %512 = vmatprep.subr.mxu0 0.0
      %513 = vmatpush2.msra.mxu0 0.0
      %514 = vmatprep.mubr.f32.mxu0 0.0
      %515 = vmatmul.mubr.f32.gmra.mxu0 %v427
      %v516 = vpop.f32.mrf.mxu0
      %v517 = vadd.f32 %v423, %v516
      %v518 = vpop.f32.mrf.mxu0
      %519 = vmatprep.mubr.f32.mxu0 0.0
      %520 = vmatmul.mubr.f32.gmra.mxu0 %v430
      %v521 = vpop.f32.mrf.mxu0
      %v522 = vadd.f32 %v423, %v521
      %v523 = vpop.f32.mrf.mxu0
      %524 = vmatprep.mubr.f32.mxu0 0.0
      %525 = vmatmul.mubr.f32.gmra.mxu0 %v433
      %v526 = vpop.f32.mrf.mxu0
      %v527 = vadd.f32 %v423, %v526
      %v528 = vpop.f32.mrf.mxu0
      %529 = vmatprep.mubr.f32.mxu0 0.0
      %530 = vmatmul.mubr.f32.gmra.mxu0 %v436
      %v531 = vpop.f32.mrf.mxu0
      %v532 = vadd.f32 %v423, %v531
      %v533 = vpop.f32.mrf.mxu0
      %534 = vmatprep.mubr.f32.mxu0 0.0
      %535 = vmatmul.mubr.f32.gmra.mxu0 %v439
      %v536 = vpop.f32.mrf.mxu0
      %v537 = vadd.f32 %v423, %v536
      %v538 = vpop.f32.mrf.mxu0
      %539 = vmatprep.mubr.f32.mxu0 0.0
      %540 = vmatmul.mubr.f32.gmra.mxu0 %v442
      %v541 = vpop.f32.mrf.mxu0
      %v542 = vadd.f32 %v423, %v541
      %v543 = vpop.f32.mrf.mxu0
      %544 = vmatprep.mubr.f32.mxu0 0.0
      %545 = vmatmul.mubr.f32.gmra.mxu0 %v445
      %v546 = vpop.f32.mrf.mxu0
      %v547 = vadd.f32 %v423, %v546
      %v548 = vpop.f32.mrf.mxu0
      %549 = vmatprep.mubr.f32.mxu0 0.0
      %550 = vmatmul.mubr.f32.gmra.mxu0 %v448
      %v551 = vpop.f32.mrf.mxu0
      %v552 = vadd.f32 %v423, %v551
      %v553 = vpop.f32.mrf.mxu0
      %554 = vdwg.mxu0
      %555 = vmatprep.subr.mxu0 0.0
      %556 = vmatpush1.msra.mxu0 0.0
      %557 = vmatprep.subr.mxu0 0.0
      %558 = vmatpush1.msra.mxu0 0.0
      %559 = vmatprep.subr.mxu0 0.0
      %560 = vmatpush1.msra.mxu0 0.0
      %561 = vmatprep.subr.mxu0 0.0
      %562 = vmatpush1.msra.mxu0 0.0
      %563 = vmatprep.subr.mxu0 0.0
      %564 = vmatpush1.msra.mxu0 0.0
      %565 = vmatprep.subr.mxu0 0.0
      %566 = vmatpush1.msra.mxu0 0.0
      %567 = vmatprep.subr.mxu0 0.0
      %568 = vmatpush1.msra.mxu0 0.0
      %569 = vmatprep.subr.mxu0 0.0
      %570 = vmatpush1.msra.mxu0 0.0
      %571 = vmatprep.subr.mxu0 0.0
      %572 = vmatpush1.msra.mxu0 0.0
      %573 = vmatprep.subr.mxu0 0.0
      %574 = vmatpush1.msra.mxu0 0.0
      %575 = vmatprep.subr.mxu0 0.0
      %576 = vmatpush1.msra.mxu0 0.0
      %577 = vmatprep.subr.mxu0 0.0
      %578 = vmatpush1.msra.mxu0 0.0
      %579 = vmatprep.subr.mxu0 0.0
      %580 = vmatpush1.msra.mxu0 %v417
      %581 = vmatprep.subr.mxu0 0.0
      %582 = vmatpush1.msra.mxu0 %v416
      %583 = vmatprep.subr.mxu0 0.0
      %584 = vmatpush1.msra.mxu0 %v415
      %585 = vmatprep.subr.mxu0 0.0
      %586 = vmatpush1.msra.mxu0 %v414
      %587 = vmatprep.subr.mxu0 0.0
      %588 = vmatpush2.msra.mxu0 0.0
      %589 = vmatprep.subr.mxu0 0.0
      %590 = vmatpush2.msra.mxu0 0.0
      %591 = vmatprep.subr.mxu0 0.0
      %592 = vmatpush2.msra.mxu0 0.0
      %593 = vmatprep.subr.mxu0 0.0
      %594 = vmatpush2.msra.mxu0 0.0
      %595 = vmatprep.subr.mxu0 0.0
      %596 = vmatpush2.msra.mxu0 0.0
      %597 = vmatprep.subr.mxu0 0.0
      %598 = vmatpush2.msra.mxu0 0.0
      %599 = vmatprep.subr.mxu0 0.0
      %600 = vmatpush2.msra.mxu0 0.0
      %601 = vmatprep.subr.mxu0 0.0
      %602 = vmatpush2.msra.mxu0 0.0
      %603 = vmatprep.subr.mxu0 0.0
      %604 = vmatpush2.msra.mxu0 0.0
      %605 = vmatprep.subr.mxu0 0.0
      %606 = vmatpush2.msra.mxu0 0.0
      %607 = vmatprep.subr.mxu0 0.0
      %608 = vmatpush2.msra.mxu0 0.0
      %609 = vmatprep.subr.mxu0 0.0
      %610 = vmatpush2.msra.mxu0 0.0
      %611 = vmatprep.subr.mxu0 0.0
      %612 = vmatpush2.msra.mxu0 0.0
      %613 = vmatprep.subr.mxu0 0.0
      %614 = vmatpush2.msra.mxu0 0.0
      %615 = vmatprep.subr.mxu0 0.0
      %616 = vmatpush2.msra.mxu0 0.0
      %617 = vmatprep.subr.mxu0 0.0
      %618 = vmatpush2.msra.mxu0 0.0
      %619 = vmatprep.mubr.f32.mxu0 0.0
      %620 = vmatmul.mubr.f32.gmra.mxu0 %v427
      %v621 = vpop.f32.mrf.mxu0
      %v622 = vadd.f32 0.0, %v621
      %v623 = vpop.f32.mrf.mxu0
      %624 = vmatprep.mubr.f32.mxu0 0.0
      %625 = vmatmul.mubr.f32.gmra.mxu0 %v430
      %v626 = vpop.f32.mrf.mxu0
      %v627 = vadd.f32 0.0, %v626
      %v628 = vpop.f32.mrf.mxu0
      %629 = vmatprep.mubr.f32.mxu0 0.0
      %630 = vmatmul.mubr.f32.gmra.mxu0 %v433
      %v631 = vpop.f32.mrf.mxu0
      %v632 = vadd.f32 0.0, %v631
      %v633 = vpop.f32.mrf.mxu0
      %634 = vmatprep.mubr.f32.mxu0 0.0
      %635 = vmatmul.mubr.f32.gmra.mxu0 %v436
      %v636 = vpop.f32.mrf.mxu0
      %v637 = vadd.f32 0.0, %v636
      %v638 = vpop.f32.mrf.mxu0
      %639 = vmatprep.mubr.f32.mxu0 0.0
      %640 = vmatmul.mubr.f32.gmra.mxu0 %v439
      %v641 = vpop.f32.mrf.mxu0
      %v642 = vadd.f32 0.0, %v641
      %v643 = vpop.f32.mrf.mxu0
      %644 = vmatprep.mubr.f32.mxu0 0.0
      %645 = vmatmul.mubr.f32.gmra.mxu0 %v442
      %v646 = vpop.f32.mrf.mxu0
      %v647 = vadd.f32 0.0, %v646
      %v648 = vpop.f32.mrf.mxu0
      %649 = vmatprep.mubr.f32.mxu0 0.0
      %650 = vmatmul.mubr.f32.gmra.mxu0 %v445
      %v651 = vpop.f32.mrf.mxu0
      %v652 = vadd.f32 0.0, %v651
      %v653 = vpop.f32.mrf.mxu0
      %654 = vmatprep.mubr.f32.mxu0 0.0
      %655 = vmatmul.mubr.f32.gmra.mxu0 %v448
      %v656 = vpop.f32.mrf.mxu0
      %v657 = vadd.f32 0.0, %v656
      %v658 = vpop.f32.mrf.mxu0
      %659 = vdwg.mxu0
      %v660 = vsub.f32 %v517, %v622
      %v661 = vsub.f32 %v522, %v627
      %v662 = vsub.f32 %v527, %v632
      %v663 = vsub.f32 %v532, %v637
      %v664 = vsub.f32 %v537, %v642
      %v665 = vsub.f32 %v542, %v647
      %v666 = vsub.f32 %v547, %v652
      %v667 = vsub.f32 %v552, %v657
      %v668 = vmul.f32 %v402, %v402
      %v669 = vmul.f32 %v403, %v403
      %v670 = vmul.f32 %v404, %v404
      %v671 = vmul.f32 %v405, %v405
      %v672 = vmul.f32 %v406, %v406
      %v673 = vmul.f32 %v407, %v407
      %v674 = vmul.f32 %v408, %v408
      %v675 = vmul.f32 %v409, %v409
      %v676 = vsel %vm425, %v668, 0.0
      %677 = vadd.xlane.f32.xlu0 %v676
      %v678 = vpop.xlane.xlu0 %677
      %v679 = vsel %vm425, %v669, 0.0
      %680 = vadd.xlane.f32.xlu0 %v679
      %v681 = vpop.xlane.xlu0 %680
      %v682 = vsel %vm425, %v670, 0.0
      %683 = vadd.xlane.f32.xlu0 %v682
      %v684 = vpop.xlane.xlu0 %683
      %v685 = vsel %vm425, %v671, 0.0
      %686 = vadd.xlane.f32.xlu0 %v685
      %v687 = vpop.xlane.xlu0 %686
      %v688 = vsel %vm425, %v672, 0.0
      %689 = vadd.xlane.f32.xlu0 %v688
      %v690 = vpop.xlane.xlu0 %689
      %v691 = vsel %vm425, %v673, 0.0
      %692 = vadd.xlane.f32.xlu0 %v691
      %v693 = vpop.xlane.xlu0 %692
      %v694 = vsel %vm425, %v674, 0.0
      %695 = vadd.xlane.f32.xlu0 %v694
      %v696 = vpop.xlane.xlu0 %695
      %v697 = vsel %vm425, %v675, 0.0
      %698 = vadd.xlane.f32.xlu0 %v697
      %v699 = vpop.xlane.xlu0 %698
      %v700 = vmul.f32 %v402, -2.0
      %v701 = vmul.f32 %v403, -2.0
      %v702 = vmul.f32 %v404, -2.0
      %v703 = vmul.f32 %v405, -2.0
      %v704 = vmul.f32 %v406, -2.0
      %v705 = vmul.f32 %v407, -2.0
      %v706 = vmul.f32 %v408, -2.0
      %v707 = vmul.f32 %v409, -2.0
      %v708 = vsel %vm425, %v700, 1.0
      %v709 = vsel %vm425, %v701, 1.0
      %v710 = vsel %vm425, %v702, 1.0
      %v711 = vsel %vm425, %v703, 1.0
      %v712 = vsel %vm425, %v704, 1.0
      %v713 = vsel %vm425, %v705, 1.0
      %v714 = vsel %vm425, %v706, 1.0
      %v715 = vsel %vm425, %v707, 1.0
      %v716 = vsel %vm425, %v402, %v678
      %v717 = vsel %vm425, %v403, %v681
      %v718 = vsel %vm425, %v404, %v684
      %v719 = vsel %vm425, %v405, %v687
      %v720 = vsel %vm425, %v406, %v690
      %v721 = vsel %vm425, %v407, %v693
      %v722 = vsel %vm425, %v408, %v696
      %v723 = vsel %vm425, %v409, %v699
      %vm724 = vcmask 269312
      %v726 = vsel %vm724, %v708, 0
      %v729 = vsel %vm724, %v709, 0
      %v732 = vsel %vm724, %v710, 0
      %v735 = vsel %vm724, %v711, 0
      %v738 = vsel %vm724, %v712, 0
      %v741 = vsel %vm724, %v713, 0
      %v744 = vsel %vm724, %v714, 0
      %v747 = vsel %vm724, %v715, 0
      %v750 = vsel %vm724, %v716, 0
      %v753 = vsel %vm724, %v717, 0
      %v756 = vsel %vm724, %v718, 0
      %v759 = vsel %vm724, %v719, 0
      %v762 = vsel %vm724, %v720, 0
      %v765 = vsel %vm724, %v721, 0
      %v768 = vsel %vm724, %v722, 0
      %v771 = vsel %vm724, %v723, 0
      %773 = vmatprep.subr.mxu0 0.0
      %774 = vmatpush1.xpose.msra.mxu0 0.0
      %775 = vmatprep.subr.mxu0 0.0
      %776 = vmatpush1.xpose.msra.mxu0 0.0
      %777 = vmatprep.subr.mxu0 0.0
      %778 = vmatpush1.xpose.msra.mxu0 0.0
      %779 = vmatprep.subr.mxu0 0.0
      %780 = vmatpush1.xpose.msra.mxu0 0.0
      %781 = vmatprep.subr.mxu0 0.0
      %782 = vmatpush1.xpose.msra.mxu0 0.0
      %783 = vmatprep.subr.mxu0 0.0
      %784 = vmatpush1.xpose.msra.mxu0 0.0
      %785 = vmatprep.subr.mxu0 0.0
      %786 = vmatpush1.xpose.msra.mxu0 0.0
      %787 = vmatprep.subr.mxu0 0.0
      %788 = vmatpush1.xpose.msra.mxu0 0.0
      %789 = vmatprep.subr.mxu0 0.0
      %790 = vmatpush1.xpose.msra.mxu0 %v771
      %791 = vmatprep.subr.mxu0 0.0
      %792 = vmatpush1.xpose.msra.mxu0 %v768
      %793 = vmatprep.subr.mxu0 0.0
      %794 = vmatpush1.xpose.msra.mxu0 %v765
      %795 = vmatprep.subr.mxu0 0.0
      %796 = vmatpush1.xpose.msra.mxu0 %v762
      %797 = vmatprep.subr.mxu0 0.0
      %798 = vmatpush1.xpose.msra.mxu0 %v759
      %799 = vmatprep.subr.mxu0 0.0
      %800 = vmatpush1.xpose.msra.mxu0 %v756
      %801 = vmatprep.subr.mxu0 0.0
      %802 = vmatpush1.xpose.msra.mxu0 %v753
      %803 = vmatprep.subr.mxu0 0.0
      %804 = vmatpush1.xpose.msra.mxu0 %v750
      %805 = vmatprep.subr.mxu0 0.0
      %806 = vmatpush2.xpose.msra.mxu0 0.0
      %807 = vmatprep.subr.mxu0 0.0
      %808 = vmatpush2.xpose.msra.mxu0 0.0
      %809 = vmatprep.subr.mxu0 0.0
      %810 = vmatpush2.xpose.msra.mxu0 0.0
      %811 = vmatprep.subr.mxu0 0.0
      %812 = vmatpush2.xpose.msra.mxu0 0.0
      %813 = vmatprep.subr.mxu0 0.0
      %814 = vmatpush2.xpose.msra.mxu0 0.0
      %815 = vmatprep.subr.mxu0 0.0
      %816 = vmatpush2.xpose.msra.mxu0 0.0
      %817 = vmatprep.subr.mxu0 0.0
      %818 = vmatpush2.xpose.msra.mxu0 0.0
      %819 = vmatprep.subr.mxu0 0.0
      %820 = vmatpush2.xpose.msra.mxu0 0.0
      %821 = vmatprep.subr.mxu0 0.0
      %822 = vmatpush2.xpose.msra.mxu0 0.0
      %823 = vmatprep.subr.mxu0 0.0
      %824 = vmatpush2.xpose.msra.mxu0 0.0
      %825 = vmatprep.subr.mxu0 0.0
      %826 = vmatpush2.xpose.msra.mxu0 0.0
      %827 = vmatprep.subr.mxu0 0.0
      %828 = vmatpush2.xpose.msra.mxu0 0.0
      %829 = vmatprep.subr.mxu0 0.0
      %830 = vmatpush2.xpose.msra.mxu0 0.0
      %831 = vmatprep.subr.mxu0 0.0
      %832 = vmatpush2.xpose.msra.mxu0 0.0
      %833 = vmatprep.subr.mxu0 0.0
      %834 = vmatpush2.xpose.msra.mxu0 0.0
      %835 = vmatprep.subr.mxu0 0.0
      %836 = vmatpush2.xpose.msra.mxu0 0.0
      %837 = vmatprep.mubr.f32.mxu0 0.0
      %838 = vmatmul.mubr.f32.gmra.mxu0 %v726
      %v839 = vpop.f32.mrf.mxu0
      %v840 = vadd.f32 0.0, %v839
      %v841 = vpop.f32.mrf.mxu0
      %842 = vmatprep.mubr.f32.mxu0 0.0
      %843 = vmatmul.mubr.f32.gmra.mxu0 %v729
      %v844 = vpop.f32.mrf.mxu0
      %v845 = vadd.f32 0.0, %v844
      %v846 = vpop.f32.mrf.mxu0
      %847 = vmatprep.mubr.f32.mxu0 0.0
      %848 = vmatmul.mubr.f32.gmra.mxu0 %v732
      %v849 = vpop.f32.mrf.mxu0
      %v850 = vadd.f32 0.0, %v849
      %v851 = vpop.f32.mrf.mxu0
      %852 = vmatprep.mubr.f32.mxu0 0.0
      %853 = vmatmul.mubr.f32.gmra.mxu0 %v735
      %v854 = vpop.f32.mrf.mxu0
      %v855 = vadd.f32 0.0, %v854
      %v856 = vpop.f32.mrf.mxu0
      %857 = vmatprep.mubr.f32.mxu0 0.0
      %858 = vmatmul.mubr.f32.gmra.mxu0 %v738
      %v859 = vpop.f32.mrf.mxu0
      %v860 = vadd.f32 0.0, %v859
      %v861 = vpop.f32.mrf.mxu0
      %862 = vmatprep.mubr.f32.mxu0 0.0
      %863 = vmatmul.mubr.f32.gmra.mxu0 %v741
      %v864 = vpop.f32.mrf.mxu0
      %v865 = vadd.f32 0.0, %v864
      %v866 = vpop.f32.mrf.mxu0
      %867 = vmatprep.mubr.f32.mxu0 0.0
      %868 = vmatmul.mubr.f32.gmra.mxu0 %v744
      %v869 = vpop.f32.mrf.mxu0
      %v870 = vadd.f32 0.0, %v869
      %v871 = vpop.f32.mrf.mxu0
      %872 = vmatprep.mubr.f32.mxu0 0.0
      %873 = vmatmul.mubr.f32.gmra.mxu0 %v747
      %v874 = vpop.f32.mrf.mxu0
      %v875 = vadd.f32 0.0, %v874
      %v876 = vpop.f32.mrf.mxu0
      %877 = vdwg.mxu0
      %vm878 = vcmask 523264
      %v879 = vsel %vm878, %v840, inf
      %880 = vmin.xlane.f32.xlu0 %v879
      %v881 = vpop.xlane.xlu0 %880
      %v882 = vsel %vm878, %v845, inf
      %883 = vmin.xlane.f32.xlu0 %v882
      %v884 = vpop.xlane.xlu0 %883
      %v885 = vsel %vm878, %v850, inf
      %886 = vmin.xlane.f32.xlu0 %v885
      %v887 = vpop.xlane.xlu0 %886
      %v888 = vsel %vm878, %v855, inf
      %889 = vmin.xlane.f32.xlu0 %v888
      %v890 = vpop.xlane.xlu0 %889
      %v891 = vsel %vm878, %v860, inf
      %892 = vmin.xlane.f32.xlu0 %v891
      %v893 = vpop.xlane.xlu0 %892
      %v894 = vsel %vm878, %v865, inf
      %895 = vmin.xlane.f32.xlu0 %v894
      %v896 = vpop.xlane.xlu0 %895
      %v897 = vsel %vm878, %v870, inf
      %898 = vmin.xlane.f32.xlu0 %v897
      %v899 = vpop.xlane.xlu0 %898
      %v900 = vsel %vm878, %v875, inf
      %901 = vmin.xlane.f32.xlu0 %v900
      %v902 = vpop.xlane.xlu0 %901
      %vm903 = vcmp.le.f32.partialorder %v840, %v881
      %vm904 = vcmp.le.f32.partialorder %v845, %v884
      %vm905 = vcmp.le.f32.partialorder %v850, %v887
      %vm906 = vcmp.le.f32.partialorder %v855, %v890
      %vm907 = vcmp.le.f32.partialorder %v860, %v893
      %vm908 = vcmp.le.f32.partialorder %v865, %v896
      %vm909 = vcmp.le.f32.partialorder %v870, %v899
      %vm910 = vcmp.le.f32.partialorder %v875, %v902
      %v911 = vsel %vm903, %v254, 64.0
      %v912 = vsel %vm904, %v254, 64.0
      %v913 = vsel %vm905, %v254, 64.0
      %v914 = vsel %vm906, %v254, 64.0
      %v915 = vsel %vm907, %v254, 64.0
      %v916 = vsel %vm908, %v254, 64.0
      %v917 = vsel %vm909, %v254, 64.0
      %v918 = vsel %vm910, %v254, 64.0
      %v919 = vsel %vm878, %v911, inf
      %920 = vmin.xlane.f32.xlu0 %v919
      %v921 = vpop.xlane.xlu0 %920
      %v922 = vsel %vm878, %v912, inf
      %923 = vmin.xlane.f32.xlu0 %v922
      %v924 = vpop.xlane.xlu0 %923
      %v925 = vsel %vm878, %v913, inf
      %926 = vmin.xlane.f32.xlu0 %v925
      %v927 = vpop.xlane.xlu0 %926
      %v928 = vsel %vm878, %v914, inf
      %929 = vmin.xlane.f32.xlu0 %v928
      %v930 = vpop.xlane.xlu0 %929
      %v931 = vsel %vm878, %v915, inf
      %932 = vmin.xlane.f32.xlu0 %v931
      %v933 = vpop.xlane.xlu0 %932
      %v934 = vsel %vm878, %v916, inf
      %935 = vmin.xlane.f32.xlu0 %v934
      %v936 = vpop.xlane.xlu0 %935
      %v937 = vsel %vm878, %v917, inf
      %938 = vmin.xlane.f32.xlu0 %v937
      %v939 = vpop.xlane.xlu0 %938
      %v940 = vsel %vm878, %v918, inf
      %941 = vmin.xlane.f32.xlu0 %v940
      %v942 = vpop.xlane.xlu0 %941
      %vm943 = vcmp.eq.f32.partialorder %v254, %v921
      %vm944 = vcmp.eq.f32.partialorder %v254, %v924
      %vm945 = vcmp.eq.f32.partialorder %v254, %v927
      %vm946 = vcmp.eq.f32.partialorder %v254, %v930
      %vm947 = vcmp.eq.f32.partialorder %v254, %v933
      %vm948 = vcmp.eq.f32.partialorder %v254, %v936
      %vm949 = vcmp.eq.f32.partialorder %v254, %v939
      %vm950 = vcmp.eq.f32.partialorder %v254, %v942
      %v951 = vsel %vm943, 1, 0
      %v952 = vsel %vm944, 1, 0
      %v953 = vsel %vm945, 1, 0
      %v954 = vsel %vm946, 1, 0
      %v955 = vsel %vm947, 1, 0
      %v956 = vsel %vm948, 1, 0
      %v957 = vsel %vm949, 1, 0
      %v958 = vsel %vm950, 1, 0
      %v959 = vcvt.s32.f32 %v951
      %v960 = vcvt.s32.f32 %v952
      %v961 = vcvt.s32.f32 %v953
      %v962 = vcvt.s32.f32 %v954
      %v963 = vcvt.s32.f32 %v955
      %v964 = vcvt.s32.f32 %v956
      %v965 = vcvt.s32.f32 %v957
      %v966 = vcvt.s32.f32 %v958
      %v967 = vsel %vm943, inf, %v840
      %v968 = vsel %vm944, inf, %v845
      %v969 = vsel %vm945, inf, %v850
      %v970 = vsel %vm946, inf, %v855
      %v971 = vsel %vm947, inf, %v860
      %v972 = vsel %vm948, inf, %v865
      %v973 = vsel %vm949, inf, %v870
      %v974 = vsel %vm950, inf, %v875
      %v975 = vsel %vm878, %v967, inf
      %976 = vmin.xlane.f32.xlu0 %v975
      %v977 = vpop.xlane.xlu0 %976
      %v978 = vsel %vm878, %v968, inf
      %979 = vmin.xlane.f32.xlu0 %v978
      %v980 = vpop.xlane.xlu0 %979
      %v981 = vsel %vm878, %v969, inf
      %982 = vmin.xlane.f32.xlu0 %v981
      %v983 = vpop.xlane.xlu0 %982
      %v984 = vsel %vm878, %v970, inf
      %985 = vmin.xlane.f32.xlu0 %v984
      %v986 = vpop.xlane.xlu0 %985
      %v987 = vsel %vm878, %v971, inf
      %988 = vmin.xlane.f32.xlu0 %v987
      %v989 = vpop.xlane.xlu0 %988
      %v990 = vsel %vm878, %v972, inf
      %991 = vmin.xlane.f32.xlu0 %v990
      %v992 = vpop.xlane.xlu0 %991
      %v993 = vsel %vm878, %v973, inf
      %994 = vmin.xlane.f32.xlu0 %v993
      %v995 = vpop.xlane.xlu0 %994
      %v996 = vsel %vm878, %v974, inf
      %997 = vmin.xlane.f32.xlu0 %v996
      %v998 = vpop.xlane.xlu0 %997
      %vm999 = vcmp.le.f32.partialorder %v967, %v977
      %vm1000 = vcmp.le.f32.partialorder %v968, %v980
      %vm1001 = vcmp.le.f32.partialorder %v969, %v983
      %vm1002 = vcmp.le.f32.partialorder %v970, %v986
      %vm1003 = vcmp.le.f32.partialorder %v971, %v989
      %vm1004 = vcmp.le.f32.partialorder %v972, %v992
      %vm1005 = vcmp.le.f32.partialorder %v973, %v995
      %vm1006 = vcmp.le.f32.partialorder %v974, %v998
      %v1007 = vsel %vm999, %v254, 64.0
      %v1008 = vsel %vm1000, %v254, 64.0
      %v1009 = vsel %vm1001, %v254, 64.0
      %v1010 = vsel %vm1002, %v254, 64.0
      %v1011 = vsel %vm1003, %v254, 64.0
      %v1012 = vsel %vm1004, %v254, 64.0
      %v1013 = vsel %vm1005, %v254, 64.0
      %v1014 = vsel %vm1006, %v254, 64.0
      %v1015 = vsel %vm878, %v1007, inf
      %1016 = vmin.xlane.f32.xlu0 %v1015
      %v1017 = vpop.xlane.xlu0 %1016
      %v1018 = vsel %vm878, %v1008, inf
      %1019 = vmin.xlane.f32.xlu0 %v1018
      %v1020 = vpop.xlane.xlu0 %1019
      %v1021 = vsel %vm878, %v1009, inf
      %1022 = vmin.xlane.f32.xlu0 %v1021
      %v1023 = vpop.xlane.xlu0 %1022
      %v1024 = vsel %vm878, %v1010, inf
      %1025 = vmin.xlane.f32.xlu0 %v1024
      %v1026 = vpop.xlane.xlu0 %1025
      %v1027 = vsel %vm878, %v1011, inf
      %1028 = vmin.xlane.f32.xlu0 %v1027
      %v1029 = vpop.xlane.xlu0 %1028
      %v1030 = vsel %vm878, %v1012, inf
      %1031 = vmin.xlane.f32.xlu0 %v1030
      %v1032 = vpop.xlane.xlu0 %1031
      %v1033 = vsel %vm878, %v1013, inf
      %1034 = vmin.xlane.f32.xlu0 %v1033
      %v1035 = vpop.xlane.xlu0 %1034
      %v1036 = vsel %vm878, %v1014, inf
      %1037 = vmin.xlane.f32.xlu0 %v1036
      %v1038 = vpop.xlane.xlu0 %1037
      %vm1039 = vcmp.eq.f32.partialorder %v254, %v1017
      %vm1040 = vcmp.eq.f32.partialorder %v254, %v1020
      %vm1041 = vcmp.eq.f32.partialorder %v254, %v1023
      %vm1042 = vcmp.eq.f32.partialorder %v254, %v1026
      %vm1043 = vcmp.eq.f32.partialorder %v254, %v1029
      %vm1044 = vcmp.eq.f32.partialorder %v254, %v1032
      %vm1045 = vcmp.eq.f32.partialorder %v254, %v1035
      %vm1046 = vcmp.eq.f32.partialorder %v254, %v1038
      %v1047 = vsel %vm1039, 1, 0
      %v1048 = vsel %vm1040, 1, 0
      %v1049 = vsel %vm1041, 1, 0
      %v1050 = vsel %vm1042, 1, 0
      %v1051 = vsel %vm1043, 1, 0
      %v1052 = vsel %vm1044, 1, 0
      %v1053 = vsel %vm1045, 1, 0
      %v1054 = vsel %vm1046, 1, 0
      %v1055 = vcvt.s32.f32 %v1047
      %v1056 = vcvt.s32.f32 %v1048
      %v1057 = vcvt.s32.f32 %v1049
      %v1058 = vcvt.s32.f32 %v1050
      %v1059 = vcvt.s32.f32 %v1051
      %v1060 = vcvt.s32.f32 %v1052
      %v1061 = vcvt.s32.f32 %v1053
      %v1062 = vcvt.s32.f32 %v1054
      %v1063 = vsel %vm1039, inf, %v967
      %v1064 = vsel %vm1040, inf, %v968
      %v1065 = vsel %vm1041, inf, %v969
      %v1066 = vsel %vm1042, inf, %v970
      %v1067 = vsel %vm1043, inf, %v971
      %v1068 = vsel %vm1044, inf, %v972
      %v1069 = vsel %vm1045, inf, %v973
      %v1070 = vsel %vm1046, inf, %v974
      %v1071 = vsel %vm878, %v1063, inf
      %1072 = vmin.xlane.f32.xlu0 %v1071
      %v1073 = vpop.xlane.xlu0 %1072
      %v1074 = vsel %vm878, %v1064, inf
      %1075 = vmin.xlane.f32.xlu0 %v1074
      %v1076 = vpop.xlane.xlu0 %1075
      %v1077 = vsel %vm878, %v1065, inf
      %1078 = vmin.xlane.f32.xlu0 %v1077
      %v1079 = vpop.xlane.xlu0 %1078
      %v1080 = vsel %vm878, %v1066, inf
      %1081 = vmin.xlane.f32.xlu0 %v1080
      %v1082 = vpop.xlane.xlu0 %1081
      %v1083 = vsel %vm878, %v1067, inf
      %1084 = vmin.xlane.f32.xlu0 %v1083
      %v1085 = vpop.xlane.xlu0 %1084
      %v1086 = vsel %vm878, %v1068, inf
      %1087 = vmin.xlane.f32.xlu0 %v1086
      %v1088 = vpop.xlane.xlu0 %1087
      %v1089 = vsel %vm878, %v1069, inf
      %1090 = vmin.xlane.f32.xlu0 %v1089
      %v1091 = vpop.xlane.xlu0 %1090
      %v1092 = vsel %vm878, %v1070, inf
      %1093 = vmin.xlane.f32.xlu0 %v1092
      %v1094 = vpop.xlane.xlu0 %1093
      %vm1095 = vcmp.le.f32.partialorder %v1063, %v1073
      %vm1096 = vcmp.le.f32.partialorder %v1064, %v1076
      %vm1097 = vcmp.le.f32.partialorder %v1065, %v1079
      %vm1098 = vcmp.le.f32.partialorder %v1066, %v1082
      %vm1099 = vcmp.le.f32.partialorder %v1067, %v1085
      %vm1100 = vcmp.le.f32.partialorder %v1068, %v1088
      %vm1101 = vcmp.le.f32.partialorder %v1069, %v1091
      %vm1102 = vcmp.le.f32.partialorder %v1070, %v1094
      %v1103 = vsel %vm1095, %v254, 64.0
      %v1104 = vsel %vm1096, %v254, 64.0
      %v1105 = vsel %vm1097, %v254, 64.0
      %v1106 = vsel %vm1098, %v254, 64.0
      %v1107 = vsel %vm1099, %v254, 64.0
      %v1108 = vsel %vm1100, %v254, 64.0
      %v1109 = vsel %vm1101, %v254, 64.0
      %v1110 = vsel %vm1102, %v254, 64.0
      %v1111 = vsel %vm878, %v1103, inf
      %1112 = vmin.xlane.f32.xlu0 %v1111
      %v1113 = vpop.xlane.xlu0 %1112
      %v1114 = vsel %vm878, %v1104, inf
      %1115 = vmin.xlane.f32.xlu0 %v1114
      %v1116 = vpop.xlane.xlu0 %1115
      %v1117 = vsel %vm878, %v1105, inf
      %1118 = vmin.xlane.f32.xlu0 %v1117
      %v1119 = vpop.xlane.xlu0 %1118
      %v1120 = vsel %vm878, %v1106, inf
      %1121 = vmin.xlane.f32.xlu0 %v1120
      %v1122 = vpop.xlane.xlu0 %1121
      %v1123 = vsel %vm878, %v1107, inf
      %1124 = vmin.xlane.f32.xlu0 %v1123
      %v1125 = vpop.xlane.xlu0 %1124
      %v1126 = vsel %vm878, %v1108, inf
      %1127 = vmin.xlane.f32.xlu0 %v1126
      %v1128 = vpop.xlane.xlu0 %1127
      %v1129 = vsel %vm878, %v1109, inf
      %1130 = vmin.xlane.f32.xlu0 %v1129
      %v1131 = vpop.xlane.xlu0 %1130
      %v1132 = vsel %vm878, %v1110, inf
      %1133 = vmin.xlane.f32.xlu0 %v1132
      %v1134 = vpop.xlane.xlu0 %1133
      %vm1135 = vcmp.eq.f32.partialorder %v254, %v1113
      %vm1136 = vcmp.eq.f32.partialorder %v254, %v1116
      %vm1137 = vcmp.eq.f32.partialorder %v254, %v1119
      %vm1138 = vcmp.eq.f32.partialorder %v254, %v1122
      %vm1139 = vcmp.eq.f32.partialorder %v254, %v1125
      %vm1140 = vcmp.eq.f32.partialorder %v254, %v1128
      %vm1141 = vcmp.eq.f32.partialorder %v254, %v1131
      %vm1142 = vcmp.eq.f32.partialorder %v254, %v1134
      %v1143 = vsel %vm1135, 1, 0
      %v1144 = vsel %vm1136, 1, 0
      %v1145 = vsel %vm1137, 1, 0
      %v1146 = vsel %vm1138, 1, 0
      %v1147 = vsel %vm1139, 1, 0
      %v1148 = vsel %vm1140, 1, 0
      %v1149 = vsel %vm1141, 1, 0
      %v1150 = vsel %vm1142, 1, 0
      %v1151 = vcvt.s32.f32 %v1143
      %v1152 = vcvt.s32.f32 %v1144
      %v1153 = vcvt.s32.f32 %v1145
      %v1154 = vcvt.s32.f32 %v1146
      %v1155 = vcvt.s32.f32 %v1147
      %v1156 = vcvt.s32.f32 %v1148
      %v1157 = vcvt.s32.f32 %v1149
      %v1158 = vcvt.s32.f32 %v1150
      %v1159 = vsel %vm1135, inf, %v1063
      %v1160 = vsel %vm1136, inf, %v1064
      %v1161 = vsel %vm1137, inf, %v1065
      %v1162 = vsel %vm1138, inf, %v1066
      %v1163 = vsel %vm1139, inf, %v1067
      %v1164 = vsel %vm1140, inf, %v1068
      %v1165 = vsel %vm1141, inf, %v1069
      %v1166 = vsel %vm1142, inf, %v1070
      %v1167 = vsel %vm878, %v1159, inf
      %1168 = vmin.xlane.f32.xlu0 %v1167
      %v1169 = vpop.xlane.xlu0 %1168
      %v1170 = vsel %vm878, %v1160, inf
      %1171 = vmin.xlane.f32.xlu0 %v1170
      %v1172 = vpop.xlane.xlu0 %1171
      %v1173 = vsel %vm878, %v1161, inf
      %1174 = vmin.xlane.f32.xlu0 %v1173
      %v1175 = vpop.xlane.xlu0 %1174
      %v1176 = vsel %vm878, %v1162, inf
      %1177 = vmin.xlane.f32.xlu0 %v1176
      %v1178 = vpop.xlane.xlu0 %1177
      %v1179 = vsel %vm878, %v1163, inf
      %1180 = vmin.xlane.f32.xlu0 %v1179
      %v1181 = vpop.xlane.xlu0 %1180
      %v1182 = vsel %vm878, %v1164, inf
      %1183 = vmin.xlane.f32.xlu0 %v1182
      %v1184 = vpop.xlane.xlu0 %1183
      %v1185 = vsel %vm878, %v1165, inf
      %1186 = vmin.xlane.f32.xlu0 %v1185
      %v1187 = vpop.xlane.xlu0 %1186
      %v1188 = vsel %vm878, %v1166, inf
      %1189 = vmin.xlane.f32.xlu0 %v1188
      %v1190 = vpop.xlane.xlu0 %1189
      %vm1191 = vcmp.le.f32.partialorder %v1159, %v1169
      %vm1192 = vcmp.le.f32.partialorder %v1160, %v1172
      %vm1193 = vcmp.le.f32.partialorder %v1161, %v1175
      %vm1194 = vcmp.le.f32.partialorder %v1162, %v1178
      %vm1195 = vcmp.le.f32.partialorder %v1163, %v1181
      %vm1196 = vcmp.le.f32.partialorder %v1164, %v1184
      %vm1197 = vcmp.le.f32.partialorder %v1165, %v1187
      %vm1198 = vcmp.le.f32.partialorder %v1166, %v1190
      %v1199 = vsel %vm1191, %v254, 64.0
      %v1200 = vsel %vm1192, %v254, 64.0
      %v1201 = vsel %vm1193, %v254, 64.0
      %v1202 = vsel %vm1194, %v254, 64.0
      %v1203 = vsel %vm1195, %v254, 64.0
      %v1204 = vsel %vm1196, %v254, 64.0
      %v1205 = vsel %vm1197, %v254, 64.0
      %v1206 = vsel %vm1198, %v254, 64.0
      %v1207 = vsel %vm878, %v1199, inf
      %1208 = vmin.xlane.f32.xlu0 %v1207
      %v1209 = vpop.xlane.xlu0 %1208
      %v1210 = vsel %vm878, %v1200, inf
      %1211 = vmin.xlane.f32.xlu0 %v1210
      %v1212 = vpop.xlane.xlu0 %1211
      %v1213 = vsel %vm878, %v1201, inf
      %1214 = vmin.xlane.f32.xlu0 %v1213
      %v1215 = vpop.xlane.xlu0 %1214
      %v1216 = vsel %vm878, %v1202, inf
      %1217 = vmin.xlane.f32.xlu0 %v1216
      %v1218 = vpop.xlane.xlu0 %1217
      %v1219 = vsel %vm878, %v1203, inf
      %1220 = vmin.xlane.f32.xlu0 %v1219
      %v1221 = vpop.xlane.xlu0 %1220
      %v1222 = vsel %vm878, %v1204, inf
      %1223 = vmin.xlane.f32.xlu0 %v1222
      %v1224 = vpop.xlane.xlu0 %1223
      %v1225 = vsel %vm878, %v1205, inf
      %1226 = vmin.xlane.f32.xlu0 %v1225
      %v1227 = vpop.xlane.xlu0 %1226
      %v1228 = vsel %vm878, %v1206, inf
      %1229 = vmin.xlane.f32.xlu0 %v1228
      %v1230 = vpop.xlane.xlu0 %1229
      %vm1231 = vcmp.eq.f32.partialorder %v254, %v1209
      %vm1232 = vcmp.eq.f32.partialorder %v254, %v1212
      %vm1233 = vcmp.eq.f32.partialorder %v254, %v1215
      %vm1234 = vcmp.eq.f32.partialorder %v254, %v1218
      %vm1235 = vcmp.eq.f32.partialorder %v254, %v1221
      %vm1236 = vcmp.eq.f32.partialorder %v254, %v1224
      %vm1237 = vcmp.eq.f32.partialorder %v254, %v1227
      %vm1238 = vcmp.eq.f32.partialorder %v254, %v1230
      %v1239 = vsel %vm1231, 1, 0
      %v1240 = vsel %vm1232, 1, 0
      %v1241 = vsel %vm1233, 1, 0
      %v1242 = vsel %vm1234, 1, 0
      %v1243 = vsel %vm1235, 1, 0
      %v1244 = vsel %vm1236, 1, 0
      %v1245 = vsel %vm1237, 1, 0
      %v1246 = vsel %vm1238, 1, 0
      %v1247 = vcvt.s32.f32 %v1239
      %v1248 = vcvt.s32.f32 %v1240
      %v1249 = vcvt.s32.f32 %v1241
      %v1250 = vcvt.s32.f32 %v1242
      %v1251 = vcvt.s32.f32 %v1243
      %v1252 = vcvt.s32.f32 %v1244
      %v1253 = vcvt.s32.f32 %v1245
      %v1254 = vcvt.s32.f32 %v1246
      %v1256 = vsel %vm878, %v959, 0
      %v1259 = vsel %vm878, %v960, 0
      %v1262 = vsel %vm878, %v961, 0
      %v1265 = vsel %vm878, %v962, 0
      %v1268 = vsel %vm878, %v963, 0
      %v1271 = vsel %vm878, %v964, 0
      %v1274 = vsel %vm878, %v965, 0
      %v1277 = vsel %vm878, %v966, 0
      %v1280 = vsel %vm878, %v1055, 0
      %v1283 = vsel %vm878, %v1056, 0
      %v1286 = vsel %vm878, %v1057, 0
      %v1289 = vsel %vm878, %v1058, 0
      %v1292 = vsel %vm878, %v1059, 0
      %v1295 = vsel %vm878, %v1060, 0
      %v1298 = vsel %vm878, %v1061, 0
      %v1301 = vsel %vm878, %v1062, 0
      %v1304 = vsel %vm878, %v1151, 0
      %v1307 = vsel %vm878, %v1152, 0
      %v1310 = vsel %vm878, %v1153, 0
      %v1313 = vsel %vm878, %v1154, 0
      %v1316 = vsel %vm878, %v1155, 0
      %v1319 = vsel %vm878, %v1156, 0
      %v1322 = vsel %vm878, %v1157, 0
      %v1325 = vsel %vm878, %v1158, 0
      %v1328 = vsel %vm878, %v1247, 0
      %v1331 = vsel %vm878, %v1248, 0
      %v1334 = vsel %vm878, %v1249, 0
      %v1337 = vsel %vm878, %v1250, 0
      %v1340 = vsel %vm878, %v1251, 0
      %v1343 = vsel %vm878, %v1252, 0
      %v1346 = vsel %vm878, %v1253, 0
      %v1349 = vsel %vm878, %v1254, 0
      %1351 = vmatprep.subr.mxu0 0.0
      %1352 = vmatpush1.msra.mxu0 0.0
      %1353 = vmatprep.subr.mxu0 0.0
      %1354 = vmatpush1.msra.mxu0 0.0
      %1355 = vmatprep.subr.mxu0 0.0
      %1356 = vmatpush1.msra.mxu0 0.0
      %1357 = vmatprep.subr.mxu0 0.0
      %1358 = vmatpush1.msra.mxu0 0.0
      %1359 = vmatprep.subr.mxu0 0.0
      %1360 = vmatpush1.msra.mxu0 0.0
      %1361 = vmatprep.subr.mxu0 0.0
      %1362 = vmatpush1.msra.mxu0 0.0
      %1363 = vmatprep.subr.mxu0 0.0
      %1364 = vmatpush1.msra.mxu0 0.0
      %1365 = vmatprep.subr.mxu0 0.0
      %1366 = vmatpush1.msra.mxu0 0.0
      %1367 = vmatprep.subr.mxu0 0.0
      %1368 = vmatpush1.msra.mxu0 %v657
      %1369 = vmatprep.subr.mxu0 0.0
      %1370 = vmatpush1.msra.mxu0 %v652
      %1371 = vmatprep.subr.mxu0 0.0
      %1372 = vmatpush1.msra.mxu0 %v647
      %1373 = vmatprep.subr.mxu0 0.0
      %1374 = vmatpush1.msra.mxu0 %v642
      %1375 = vmatprep.subr.mxu0 0.0
      %1376 = vmatpush1.msra.mxu0 %v637
      %1377 = vmatprep.subr.mxu0 0.0
      %1378 = vmatpush1.msra.mxu0 %v632
      %1379 = vmatprep.subr.mxu0 0.0
      %1380 = vmatpush1.msra.mxu0 %v627
      %1381 = vmatprep.subr.mxu0 0.0
      %1382 = vmatpush1.msra.mxu0 %v622
      %1383 = vmatprep.subr.mxu0 0.0
      %1384 = vmatpush2.msra.mxu0 0.0
      %1385 = vmatprep.subr.mxu0 0.0
      %1386 = vmatpush2.msra.mxu0 0.0
      %1387 = vmatprep.subr.mxu0 0.0
      %1388 = vmatpush2.msra.mxu0 0.0
      %1389 = vmatprep.subr.mxu0 0.0
      %1390 = vmatpush2.msra.mxu0 0.0
      %1391 = vmatprep.subr.mxu0 0.0
      %1392 = vmatpush2.msra.mxu0 0.0
      %1393 = vmatprep.subr.mxu0 0.0
      %1394 = vmatpush2.msra.mxu0 0.0
      %1395 = vmatprep.subr.mxu0 0.0
      %1396 = vmatpush2.msra.mxu0 0.0
      %1397 = vmatprep.subr.mxu0 0.0
      %1398 = vmatpush2.msra.mxu0 0.0
      %1399 = vmatprep.subr.mxu0 0.0
      %1400 = vmatpush2.msra.mxu0 0.0
      %1401 = vmatprep.subr.mxu0 0.0
      %1402 = vmatpush2.msra.mxu0 0.0
      %1403 = vmatprep.subr.mxu0 0.0
      %1404 = vmatpush2.msra.mxu0 0.0
      %1405 = vmatprep.subr.mxu0 0.0
      %1406 = vmatpush2.msra.mxu0 0.0
      %1407 = vmatprep.subr.mxu0 0.0
      %1408 = vmatpush2.msra.mxu0 0.0
      %1409 = vmatprep.subr.mxu0 0.0
      %1410 = vmatpush2.msra.mxu0 0.0
      %1411 = vmatprep.subr.mxu0 0.0
      %1412 = vmatpush2.msra.mxu0 0.0
      %1413 = vmatprep.subr.mxu0 0.0
      %1414 = vmatpush2.msra.mxu0 0.0
      %1415 = vmatprep.mubr.f32.mxu0 0.0
      %1416 = vmatmul.mubr.f32.gmra.mxu0 %v1256
      %v1417 = vpop.f32.mrf.mxu0
      %v1418 = vadd.f32 0.0, %v1417
      %v1419 = vpop.f32.mrf.mxu0
      %1420 = vmatprep.mubr.f32.mxu0 0.0
      %1421 = vmatmul.mubr.f32.gmra.mxu0 %v1259
      %v1422 = vpop.f32.mrf.mxu0
      %v1423 = vadd.f32 0.0, %v1422
      %v1424 = vpop.f32.mrf.mxu0
      %1425 = vmatprep.mubr.f32.mxu0 0.0
      %1426 = vmatmul.mubr.f32.gmra.mxu0 %v1262
      %v1427 = vpop.f32.mrf.mxu0
      %v1428 = vadd.f32 0.0, %v1427
      %v1429 = vpop.f32.mrf.mxu0
      %1430 = vmatprep.mubr.f32.mxu0 0.0
      %1431 = vmatmul.mubr.f32.gmra.mxu0 %v1265
      %v1432 = vpop.f32.mrf.mxu0
      %v1433 = vadd.f32 0.0, %v1432
      %v1434 = vpop.f32.mrf.mxu0
      %1435 = vmatprep.mubr.f32.mxu0 0.0
      %1436 = vmatmul.mubr.f32.gmra.mxu0 %v1268
      %v1437 = vpop.f32.mrf.mxu0
      %v1438 = vadd.f32 0.0, %v1437
      %v1439 = vpop.f32.mrf.mxu0
      %1440 = vmatprep.mubr.f32.mxu0 0.0
      %1441 = vmatmul.mubr.f32.gmra.mxu0 %v1271
      %v1442 = vpop.f32.mrf.mxu0
      %v1443 = vadd.f32 0.0, %v1442
      %v1444 = vpop.f32.mrf.mxu0
      %1445 = vmatprep.mubr.f32.mxu0 0.0
      %1446 = vmatmul.mubr.f32.gmra.mxu0 %v1274
      %v1447 = vpop.f32.mrf.mxu0
      %v1448 = vadd.f32 0.0, %v1447
      %v1449 = vpop.f32.mrf.mxu0
      %1450 = vmatprep.mubr.f32.mxu0 0.0
      %1451 = vmatmul.mubr.f32.gmra.mxu0 %v1277
      %v1452 = vpop.f32.mrf.mxu0
      %v1453 = vadd.f32 0.0, %v1452
      %v1454 = vpop.f32.mrf.mxu0
      %1455 = vmatprep.mubr.f32.mxu0 0.0
      %1456 = vmatmul.mubr.f32.gmra.mxu0 %v1280
      %v1457 = vpop.f32.mrf.mxu0
      %v1458 = vadd.f32 0.0, %v1457
      %v1459 = vpop.f32.mrf.mxu0
      %1460 = vmatprep.mubr.f32.mxu0 0.0
      %1461 = vmatmul.mubr.f32.gmra.mxu0 %v1283
      %v1462 = vpop.f32.mrf.mxu0
      %v1463 = vadd.f32 0.0, %v1462
      %v1464 = vpop.f32.mrf.mxu0
      %1465 = vmatprep.mubr.f32.mxu0 0.0
      %1466 = vmatmul.mubr.f32.gmra.mxu0 %v1286
      %v1467 = vpop.f32.mrf.mxu0
      %v1468 = vadd.f32 0.0, %v1467
      %v1469 = vpop.f32.mrf.mxu0
      %1470 = vmatprep.mubr.f32.mxu0 0.0
      %1471 = vmatmul.mubr.f32.gmra.mxu0 %v1289
      %v1472 = vpop.f32.mrf.mxu0
      %v1473 = vadd.f32 0.0, %v1472
      %v1474 = vpop.f32.mrf.mxu0
      %1475 = vmatprep.mubr.f32.mxu0 0.0
      %1476 = vmatmul.mubr.f32.gmra.mxu0 %v1292
      %v1477 = vpop.f32.mrf.mxu0
      %v1478 = vadd.f32 0.0, %v1477
      %v1479 = vpop.f32.mrf.mxu0
      %1480 = vmatprep.mubr.f32.mxu0 0.0
      %1481 = vmatmul.mubr.f32.gmra.mxu0 %v1295
      %v1482 = vpop.f32.mrf.mxu0
      %v1483 = vadd.f32 0.0, %v1482
      %v1484 = vpop.f32.mrf.mxu0
      %1485 = vmatprep.mubr.f32.mxu0 0.0
      %1486 = vmatmul.mubr.f32.gmra.mxu0 %v1298
      %v1487 = vpop.f32.mrf.mxu0
      %v1488 = vadd.f32 0.0, %v1487
      %v1489 = vpop.f32.mrf.mxu0
      %1490 = vmatprep.mubr.f32.mxu0 0.0
      %1491 = vmatmul.mubr.f32.gmra.mxu0 %v1301
      %v1492 = vpop.f32.mrf.mxu0
      %v1493 = vadd.f32 0.0, %v1492
      %v1494 = vpop.f32.mrf.mxu0
      %1495 = vmatprep.mubr.f32.mxu0 0.0
      %1496 = vmatmul.mubr.f32.gmra.mxu0 %v1304
      %v1497 = vpop.f32.mrf.mxu0
      %v1498 = vadd.f32 0.0, %v1497
      %v1499 = vpop.f32.mrf.mxu0
      %1500 = vmatprep.mubr.f32.mxu0 0.0
      %1501 = vmatmul.mubr.f32.gmra.mxu0 %v1307
      %v1502 = vpop.f32.mrf.mxu0
      %v1503 = vadd.f32 0.0, %v1502
      %v1504 = vpop.f32.mrf.mxu0
      %1505 = vmatprep.mubr.f32.mxu0 0.0
      %1506 = vmatmul.mubr.f32.gmra.mxu0 %v1310
      %v1507 = vpop.f32.mrf.mxu0
      %v1508 = vadd.f32 0.0, %v1507
      %v1509 = vpop.f32.mrf.mxu0
      %1510 = vmatprep.mubr.f32.mxu0 0.0
      %1511 = vmatmul.mubr.f32.gmra.mxu0 %v1313
      %v1512 = vpop.f32.mrf.mxu0
      %v1513 = vadd.f32 0.0, %v1512
      %v1514 = vpop.f32.mrf.mxu0
      %1515 = vmatprep.mubr.f32.mxu0 0.0
      %1516 = vmatmul.mubr.f32.gmra.mxu0 %v1316
      %v1517 = vpop.f32.mrf.mxu0
      %v1518 = vadd.f32 0.0, %v1517
      %v1519 = vpop.f32.mrf.mxu0
      %1520 = vmatprep.mubr.f32.mxu0 0.0
      %1521 = vmatmul.mubr.f32.gmra.mxu0 %v1319
      %v1522 = vpop.f32.mrf.mxu0
      %v1523 = vadd.f32 0.0, %v1522
      %v1524 = vpop.f32.mrf.mxu0
      %1525 = vmatprep.mubr.f32.mxu0 0.0
      %1526 = vmatmul.mubr.f32.gmra.mxu0 %v1322
      %v1527 = vpop.f32.mrf.mxu0
      %v1528 = vadd.f32 0.0, %v1527
      %v1529 = vpop.f32.mrf.mxu0
      %1530 = vmatprep.mubr.f32.mxu0 0.0
      %1531 = vmatmul.mubr.f32.gmra.mxu0 %v1325
      %v1532 = vpop.f32.mrf.mxu0
      %v1533 = vadd.f32 0.0, %v1532
      %v1534 = vpop.f32.mrf.mxu0
      %1535 = vmatprep.mubr.f32.mxu0 0.0
      %1536 = vmatmul.mubr.f32.gmra.mxu0 %v1328
      %v1537 = vpop.f32.mrf.mxu0
      %v1538 = vadd.f32 0.0, %v1537
      %v1539 = vpop.f32.mrf.mxu0
      %1540 = vmatprep.mubr.f32.mxu0 0.0
      %1541 = vmatmul.mubr.f32.gmra.mxu0 %v1331
      %v1542 = vpop.f32.mrf.mxu0
      %v1543 = vadd.f32 0.0, %v1542
      %v1544 = vpop.f32.mrf.mxu0
      %1545 = vmatprep.mubr.f32.mxu0 0.0
      %1546 = vmatmul.mubr.f32.gmra.mxu0 %v1334
      %v1547 = vpop.f32.mrf.mxu0
      %v1548 = vadd.f32 0.0, %v1547
      %v1549 = vpop.f32.mrf.mxu0
      %1550 = vmatprep.mubr.f32.mxu0 0.0
      %1551 = vmatmul.mubr.f32.gmra.mxu0 %v1337
      %v1552 = vpop.f32.mrf.mxu0
      %v1553 = vadd.f32 0.0, %v1552
      %v1554 = vpop.f32.mrf.mxu0
      %1555 = vmatprep.mubr.f32.mxu0 0.0
      %1556 = vmatmul.mubr.f32.gmra.mxu0 %v1340
      %v1557 = vpop.f32.mrf.mxu0
      %v1558 = vadd.f32 0.0, %v1557
      %v1559 = vpop.f32.mrf.mxu0
      %1560 = vmatprep.mubr.f32.mxu0 0.0
      %1561 = vmatmul.mubr.f32.gmra.mxu0 %v1343
      %v1562 = vpop.f32.mrf.mxu0
      %v1563 = vadd.f32 0.0, %v1562
      %v1564 = vpop.f32.mrf.mxu0
      %1565 = vmatprep.mubr.f32.mxu0 0.0
      %1566 = vmatmul.mubr.f32.gmra.mxu0 %v1346
      %v1567 = vpop.f32.mrf.mxu0
      %v1568 = vadd.f32 0.0, %v1567
      %v1569 = vpop.f32.mrf.mxu0
      %1570 = vmatprep.mubr.f32.mxu0 0.0
      %1571 = vmatmul.mubr.f32.gmra.mxu0 %v1349
      %v1572 = vpop.f32.mrf.mxu0
      %v1573 = vadd.f32 0.0, %v1572
      %v1574 = vpop.f32.mrf.mxu0
      %1575 = vdwg.mxu0
      %v1576 = vmax.f32 %v1418, %v1458
      %v1577 = vmax.f32 %v1423, %v1463
      %v1578 = vmax.f32 %v1428, %v1468
      %v1579 = vmax.f32 %v1433, %v1473
      %v1580 = vmax.f32 %v1438, %v1478
      %v1581 = vmax.f32 %v1443, %v1483
      %v1582 = vmax.f32 %v1448, %v1488
      %v1583 = vmax.f32 %v1453, %v1493
      %v1584 = vmax.f32 %v1576, %v1498
      %v1585 = vmax.f32 %v1577, %v1503
      %v1586 = vmax.f32 %v1578, %v1508
      %v1587 = vmax.f32 %v1579, %v1513
      %v1588 = vmax.f32 %v1580, %v1518
      %v1589 = vmax.f32 %v1581, %v1523
      %v1590 = vmax.f32 %v1582, %v1528
      %v1591 = vmax.f32 %v1583, %v1533
      %v1592 = vmax.f32 %v1584, %v1538
      %v1593 = vmax.f32 %v1585, %v1543
      %v1594 = vmax.f32 %v1586, %v1548
      %v1595 = vmax.f32 %v1587, %v1553
      %v1596 = vmax.f32 %v1588, %v1558
      %v1597 = vmax.f32 %v1589, %v1563
      %v1598 = vmax.f32 %v1590, %v1568
      %v1599 = vmax.f32 %v1591, %v1573
      %v1600 = vadd.f32 %v660, %v1592
      %v1601 = vadd.f32 %v661, %v1593
      %v1602 = vadd.f32 %v662, %v1594
      %v1603 = vadd.f32 %v663, %v1595
      %v1604 = vadd.f32 %v664, %v1596
      %v1605 = vadd.f32 %v665, %v1597
      %v1606 = vadd.f32 %v666, %v1598
      %v1607 = vadd.f32 %v667, %v1599
      %v1608 = vmax.f32 %v1600, 0.0
      %v1609 = vmax.f32 %v1601, 0.0
      %v1610 = vmax.f32 %v1602, 0.0
      %v1611 = vmax.f32 %v1603, 0.0
      %v1612 = vmax.f32 %v1604, 0.0
      %v1613 = vmax.f32 %v1605, 0.0
      %v1614 = vmax.f32 %v1606, 0.0
      %v1615 = vmax.f32 %v1607, 0.0
      %v1616 = vld [vmem:[%s5] sm:$0xff]
      %v1617 = vld [vmem:[%s5 + $0x8] sm:$0xff]
      %v1618 = vld [vmem:[%s5 + $0x10] sm:$0xff]
      %v1619 = vld [vmem:[%s5 + $0x18] sm:$0xff]
      %s1620 = scalar_lea.vmem %s3, 64
      %v1621 = vld [vmem:[%s1620] sm:$0xff]
      %v1622 = vld [vmem:[%s1620 + $0x8] sm:$0xff]
      %v1623 = vld [vmem:[%s1620 + $0x10] sm:$0xff]
      %v1624 = vld [vmem:[%s1620 + $0x18] sm:$0xff]
      %v1625 = vld [vmem:[%s1620 + $0x20] sm:$0xff]
      %v1626 = vld [vmem:[%s1620 + $0x28] sm:$0xff]
      %v1627 = vld [vmem:[%s1620 + $0x30] sm:$0xff]
      %v1628 = vld [vmem:[%s1620 + $0x38] sm:$0xff]
      %s1629 = scalar_lea.vmem %s4, 1
      %v1630 = vld [vmem:[%s1629] sm:$0x1]
      %v1632 = vlaneseq
      %v1633 = vshrl.u32 %v1632, 7
      %v1634 = vsub.s32 0, %v1633
      %v1635 = vrot.slane %v1630, %v1634
      %v1638 = vsel %vm425, %v1608, 0
      %v1641 = vsel %vm425, %v1609, 0
      %v1644 = vsel %vm425, %v1610, 0
      %v1647 = vsel %vm425, %v1611, 0
      %v1650 = vsel %vm425, %v1612, 0
      %v1653 = vsel %vm425, %v1613, 0
      %v1656 = vsel %vm425, %v1614, 0
      %v1659 = vsel %vm425, %v1615, 0
      %1661 = vmatprep.subr.mxu0 0.0
      %1662 = vmatpush1.msra.mxu0 0.0
      %1663 = vmatprep.subr.mxu0 0.0
      %1664 = vmatpush1.msra.mxu0 0.0
      %1665 = vmatprep.subr.mxu0 0.0
      %1666 = vmatpush1.msra.mxu0 0.0
      %1667 = vmatprep.subr.mxu0 0.0
      %1668 = vmatpush1.msra.mxu0 0.0
      %1669 = vmatprep.subr.mxu0 0.0
      %1670 = vmatpush1.msra.mxu0 0.0
      %1671 = vmatprep.subr.mxu0 0.0
      %1672 = vmatpush1.msra.mxu0 0.0
      %1673 = vmatprep.subr.mxu0 0.0
      %1674 = vmatpush1.msra.mxu0 0.0
      %1675 = vmatprep.subr.mxu0 0.0
      %1676 = vmatpush1.msra.mxu0 0.0
      %1677 = vmatprep.subr.mxu0 0.0
      %1678 = vmatpush1.msra.mxu0 0.0
      %1679 = vmatprep.subr.mxu0 0.0
      %1680 = vmatpush1.msra.mxu0 0.0
      %1681 = vmatprep.subr.mxu0 0.0
      %1682 = vmatpush1.msra.mxu0 0.0
      %1683 = vmatprep.subr.mxu0 0.0
      %1684 = vmatpush1.msra.mxu0 0.0
      %1685 = vmatprep.subr.mxu0 0.0
      %1686 = vmatpush1.msra.mxu0 %v1624
      %1687 = vmatprep.subr.mxu0 0.0
      %1688 = vmatpush1.msra.mxu0 %v1623
      %1689 = vmatprep.subr.mxu0 0.0
      %1690 = vmatpush1.msra.mxu0 %v1622
      %1691 = vmatprep.subr.mxu0 0.0
      %1692 = vmatpush1.msra.mxu0 %v1621
      %1693 = vmatprep.subr.mxu0 0.0
      %1694 = vmatpush2.msra.mxu0 0.0
      %1695 = vmatprep.subr.mxu0 0.0
      %1696 = vmatpush2.msra.mxu0 0.0
      %1697 = vmatprep.subr.mxu0 0.0
      %1698 = vmatpush2.msra.mxu0 0.0
      %1699 = vmatprep.subr.mxu0 0.0
      %1700 = vmatpush2.msra.mxu0 0.0
      %1701 = vmatprep.subr.mxu0 0.0
      %1702 = vmatpush2.msra.mxu0 0.0
      %1703 = vmatprep.subr.mxu0 0.0
      %1704 = vmatpush2.msra.mxu0 0.0
      %1705 = vmatprep.subr.mxu0 0.0
      %1706 = vmatpush2.msra.mxu0 0.0
      %1707 = vmatprep.subr.mxu0 0.0
      %1708 = vmatpush2.msra.mxu0 0.0
      %1709 = vmatprep.subr.mxu0 0.0
      %1710 = vmatpush2.msra.mxu0 0.0
      %1711 = vmatprep.subr.mxu0 0.0
      %1712 = vmatpush2.msra.mxu0 0.0
      %1713 = vmatprep.subr.mxu0 0.0
      %1714 = vmatpush2.msra.mxu0 0.0
      %1715 = vmatprep.subr.mxu0 0.0
      %1716 = vmatpush2.msra.mxu0 0.0
      %1717 = vmatprep.subr.mxu0 0.0
      %1718 = vmatpush2.msra.mxu0 0.0
      %1719 = vmatprep.subr.mxu0 0.0
      %1720 = vmatpush2.msra.mxu0 0.0
      %1721 = vmatprep.subr.mxu0 0.0
      %1722 = vmatpush2.msra.mxu0 0.0
      %1723 = vmatprep.subr.mxu0 0.0
      %1724 = vmatpush2.msra.mxu0 0.0
      %1725 = vmatprep.mubr.f32.mxu0 0.0
      %1726 = vmatmul.mubr.f32.gmra.mxu0 %v1638
      %v1727 = vpop.f32.mrf.mxu0
      %v1728 = vadd.f32 %v1635, %v1727
      %v1729 = vpop.f32.mrf.mxu0
      %1730 = vmatprep.mubr.f32.mxu0 0.0
      %1731 = vmatmul.mubr.f32.gmra.mxu0 %v1641
      %v1732 = vpop.f32.mrf.mxu0
      %v1733 = vadd.f32 %v1635, %v1732
      %v1734 = vpop.f32.mrf.mxu0
      %1735 = vmatprep.mubr.f32.mxu0 0.0
      %1736 = vmatmul.mubr.f32.gmra.mxu0 %v1644
      %v1737 = vpop.f32.mrf.mxu0
      %v1738 = vadd.f32 %v1635, %v1737
      %v1739 = vpop.f32.mrf.mxu0
      %1740 = vmatprep.mubr.f32.mxu0 0.0
      %1741 = vmatmul.mubr.f32.gmra.mxu0 %v1647
      %v1742 = vpop.f32.mrf.mxu0
      %v1743 = vadd.f32 %v1635, %v1742
      %v1744 = vpop.f32.mrf.mxu0
      %1745 = vmatprep.mubr.f32.mxu0 0.0
      %1746 = vmatmul.mubr.f32.gmra.mxu0 %v1650
      %v1747 = vpop.f32.mrf.mxu0
      %v1748 = vadd.f32 %v1635, %v1747
      %v1749 = vpop.f32.mrf.mxu0
      %1750 = vmatprep.mubr.f32.mxu0 0.0
      %1751 = vmatmul.mubr.f32.gmra.mxu0 %v1653
      %v1752 = vpop.f32.mrf.mxu0
      %v1753 = vadd.f32 %v1635, %v1752
      %v1754 = vpop.f32.mrf.mxu0
      %1755 = vmatprep.mubr.f32.mxu0 0.0
      %1756 = vmatmul.mubr.f32.gmra.mxu0 %v1656
      %v1757 = vpop.f32.mrf.mxu0
      %v1758 = vadd.f32 %v1635, %v1757
      %v1759 = vpop.f32.mrf.mxu0
      %1760 = vmatprep.mubr.f32.mxu0 0.0
      %1761 = vmatmul.mubr.f32.gmra.mxu0 %v1659
      %v1762 = vpop.f32.mrf.mxu0
      %v1763 = vadd.f32 %v1635, %v1762
      %v1764 = vpop.f32.mrf.mxu0
      %1765 = vdwg.mxu0
      %1766 = vmatprep.subr.mxu0 0.0
      %1767 = vmatpush1.msra.mxu0 0.0
      %1768 = vmatprep.subr.mxu0 0.0
      %1769 = vmatpush1.msra.mxu0 0.0
      %1770 = vmatprep.subr.mxu0 0.0
      %1771 = vmatpush1.msra.mxu0 0.0
      %1772 = vmatprep.subr.mxu0 0.0
      %1773 = vmatpush1.msra.mxu0 0.0
      %1774 = vmatprep.subr.mxu0 0.0
      %1775 = vmatpush1.msra.mxu0 0.0
      %1776 = vmatprep.subr.mxu0 0.0
      %1777 = vmatpush1.msra.mxu0 0.0
      %1778 = vmatprep.subr.mxu0 0.0
      %1779 = vmatpush1.msra.mxu0 0.0
      %1780 = vmatprep.subr.mxu0 0.0
      %1781 = vmatpush1.msra.mxu0 0.0
      %1782 = vmatprep.subr.mxu0 0.0
      %1783 = vmatpush1.msra.mxu0 0.0
      %1784 = vmatprep.subr.mxu0 0.0
      %1785 = vmatpush1.msra.mxu0 0.0
      %1786 = vmatprep.subr.mxu0 0.0
      %1787 = vmatpush1.msra.mxu0 0.0
      %1788 = vmatprep.subr.mxu0 0.0
      %1789 = vmatpush1.msra.mxu0 0.0
      %1790 = vmatprep.subr.mxu0 0.0
      %1791 = vmatpush1.msra.mxu0 %v1628
      %1792 = vmatprep.subr.mxu0 0.0
      %1793 = vmatpush1.msra.mxu0 %v1627
      %1794 = vmatprep.subr.mxu0 0.0
      %1795 = vmatpush1.msra.mxu0 %v1626
      %1796 = vmatprep.subr.mxu0 0.0
      %1797 = vmatpush1.msra.mxu0 %v1625
      %1798 = vmatprep.subr.mxu0 0.0
      %1799 = vmatpush2.msra.mxu0 0.0
      %1800 = vmatprep.subr.mxu0 0.0
      %1801 = vmatpush2.msra.mxu0 0.0
      %1802 = vmatprep.subr.mxu0 0.0
      %1803 = vmatpush2.msra.mxu0 0.0
      %1804 = vmatprep.subr.mxu0 0.0
      %1805 = vmatpush2.msra.mxu0 0.0
      %1806 = vmatprep.subr.mxu0 0.0
      %1807 = vmatpush2.msra.mxu0 0.0
      %1808 = vmatprep.subr.mxu0 0.0
      %1809 = vmatpush2.msra.mxu0 0.0
      %1810 = vmatprep.subr.mxu0 0.0
      %1811 = vmatpush2.msra.mxu0 0.0
      %1812 = vmatprep.subr.mxu0 0.0
      %1813 = vmatpush2.msra.mxu0 0.0
      %1814 = vmatprep.subr.mxu0 0.0
      %1815 = vmatpush2.msra.mxu0 0.0
      %1816 = vmatprep.subr.mxu0 0.0
      %1817 = vmatpush2.msra.mxu0 0.0
      %1818 = vmatprep.subr.mxu0 0.0
      %1819 = vmatpush2.msra.mxu0 0.0
      %1820 = vmatprep.subr.mxu0 0.0
      %1821 = vmatpush2.msra.mxu0 0.0
      %1822 = vmatprep.subr.mxu0 0.0
      %1823 = vmatpush2.msra.mxu0 0.0
      %1824 = vmatprep.subr.mxu0 0.0
      %1825 = vmatpush2.msra.mxu0 0.0
      %1826 = vmatprep.subr.mxu0 0.0
      %1827 = vmatpush2.msra.mxu0 0.0
      %1828 = vmatprep.subr.mxu0 0.0
      %1829 = vmatpush2.msra.mxu0 0.0
      %1830 = vmatprep.mubr.f32.mxu0 0.0
      %1831 = vmatmul.mubr.f32.gmra.mxu0 %v1638
      %v1832 = vpop.f32.mrf.mxu0
      %v1833 = vadd.f32 0.0, %v1832
      %v1834 = vpop.f32.mrf.mxu0
      %1835 = vmatprep.mubr.f32.mxu0 0.0
      %1836 = vmatmul.mubr.f32.gmra.mxu0 %v1641
      %v1837 = vpop.f32.mrf.mxu0
      %v1838 = vadd.f32 0.0, %v1837
      %v1839 = vpop.f32.mrf.mxu0
      %1840 = vmatprep.mubr.f32.mxu0 0.0
      %1841 = vmatmul.mubr.f32.gmra.mxu0 %v1644
      %v1842 = vpop.f32.mrf.mxu0
      %v1843 = vadd.f32 0.0, %v1842
      %v1844 = vpop.f32.mrf.mxu0
      %1845 = vmatprep.mubr.f32.mxu0 0.0
      %1846 = vmatmul.mubr.f32.gmra.mxu0 %v1647
      %v1847 = vpop.f32.mrf.mxu0
      %v1848 = vadd.f32 0.0, %v1847
      %v1849 = vpop.f32.mrf.mxu0
      %1850 = vmatprep.mubr.f32.mxu0 0.0
      %1851 = vmatmul.mubr.f32.gmra.mxu0 %v1650
      %v1852 = vpop.f32.mrf.mxu0
      %v1853 = vadd.f32 0.0, %v1852
      %v1854 = vpop.f32.mrf.mxu0
      %1855 = vmatprep.mubr.f32.mxu0 0.0
      %1856 = vmatmul.mubr.f32.gmra.mxu0 %v1653
      %v1857 = vpop.f32.mrf.mxu0
      %v1858 = vadd.f32 0.0, %v1857
      %v1859 = vpop.f32.mrf.mxu0
      %1860 = vmatprep.mubr.f32.mxu0 0.0
      %1861 = vmatmul.mubr.f32.gmra.mxu0 %v1656
      %v1862 = vpop.f32.mrf.mxu0
      %v1863 = vadd.f32 0.0, %v1862
      %v1864 = vpop.f32.mrf.mxu0
      %1865 = vmatprep.mubr.f32.mxu0 0.0
      %1866 = vmatmul.mubr.f32.gmra.mxu0 %v1659
      %v1867 = vpop.f32.mrf.mxu0
      %v1868 = vadd.f32 0.0, %v1867
      %v1869 = vpop.f32.mrf.mxu0
      %1870 = vdwg.mxu0
      %v1871 = vsub.f32 %v1728, %v1833
      %v1872 = vsub.f32 %v1733, %v1838
      %v1873 = vsub.f32 %v1738, %v1843
      %v1874 = vsub.f32 %v1743, %v1848
      %v1875 = vsub.f32 %v1748, %v1853
      %v1876 = vsub.f32 %v1753, %v1858
      %v1877 = vsub.f32 %v1758, %v1863
      %v1878 = vsub.f32 %v1763, %v1868
      %v1879 = vmul.f32 %v1608, %v1608
      %v1880 = vmul.f32 %v1609, %v1609
      %v1881 = vmul.f32 %v1610, %v1610
      %v1882 = vmul.f32 %v1611, %v1611
      %v1883 = vmul.f32 %v1612, %v1612
      %v1884 = vmul.f32 %v1613, %v1613
      %v1885 = vmul.f32 %v1614, %v1614
      %v1886 = vmul.f32 %v1615, %v1615
      %v1887 = vsel %vm425, %v1879, 0.0
      %1888 = vadd.xlane.f32.xlu0 %v1887
      %v1889 = vpop.xlane.xlu0 %1888
      %v1890 = vsel %vm425, %v1880, 0.0
      %1891 = vadd.xlane.f32.xlu0 %v1890
      %v1892 = vpop.xlane.xlu0 %1891
      %v1893 = vsel %vm425, %v1881, 0.0
      %1894 = vadd.xlane.f32.xlu0 %v1893
      %v1895 = vpop.xlane.xlu0 %1894
      %v1896 = vsel %vm425, %v1882, 0.0
      %1897 = vadd.xlane.f32.xlu0 %v1896
      %v1898 = vpop.xlane.xlu0 %1897
      %v1899 = vsel %vm425, %v1883, 0.0
      %1900 = vadd.xlane.f32.xlu0 %v1899
      %v1901 = vpop.xlane.xlu0 %1900
      %v1902 = vsel %vm425, %v1884, 0.0
      %1903 = vadd.xlane.f32.xlu0 %v1902
      %v1904 = vpop.xlane.xlu0 %1903
      %v1905 = vsel %vm425, %v1885, 0.0
      %1906 = vadd.xlane.f32.xlu0 %v1905
      %v1907 = vpop.xlane.xlu0 %1906
      %v1908 = vsel %vm425, %v1886, 0.0
      %1909 = vadd.xlane.f32.xlu0 %v1908
      %v1910 = vpop.xlane.xlu0 %1909
      %v1911 = vmul.f32 %v1608, -2.0
      %v1912 = vmul.f32 %v1609, -2.0
      %v1913 = vmul.f32 %v1610, -2.0
      %v1914 = vmul.f32 %v1611, -2.0
      %v1915 = vmul.f32 %v1612, -2.0
      %v1916 = vmul.f32 %v1613, -2.0
      %v1917 = vmul.f32 %v1614, -2.0
      %v1918 = vmul.f32 %v1615, -2.0
      %v1919 = vsel %vm425, %v1911, 1.0
      %v1920 = vsel %vm425, %v1912, 1.0
      %v1921 = vsel %vm425, %v1913, 1.0
      %v1922 = vsel %vm425, %v1914, 1.0
      %v1923 = vsel %vm425, %v1915, 1.0
      %v1924 = vsel %vm425, %v1916, 1.0
      %v1925 = vsel %vm425, %v1917, 1.0
      %v1926 = vsel %vm425, %v1918, 1.0
      %v1927 = vsel %vm425, %v1608, %v1889
      %v1928 = vsel %vm425, %v1609, %v1892
      %v1929 = vsel %vm425, %v1610, %v1895
      %v1930 = vsel %vm425, %v1611, %v1898
      %v1931 = vsel %vm425, %v1612, %v1901
      %v1932 = vsel %vm425, %v1613, %v1904
      %v1933 = vsel %vm425, %v1614, %v1907
      %v1934 = vsel %vm425, %v1615, %v1910
      %v1936 = vsel %vm724, %v1919, 0
      %v1939 = vsel %vm724, %v1920, 0
      %v1942 = vsel %vm724, %v1921, 0
      %v1945 = vsel %vm724, %v1922, 0
      %v1948 = vsel %vm724, %v1923, 0
      %v1951 = vsel %vm724, %v1924, 0
      %v1954 = vsel %vm724, %v1925, 0
      %v1957 = vsel %vm724, %v1926, 0
      %v1960 = vsel %vm724, %v1927, 0
      %v1963 = vsel %vm724, %v1928, 0
      %v1966 = vsel %vm724, %v1929, 0
      %v1969 = vsel %vm724, %v1930, 0
      %v1972 = vsel %vm724, %v1931, 0
      %v1975 = vsel %vm724, %v1932, 0
      %v1978 = vsel %vm724, %v1933, 0
      %v1981 = vsel %vm724, %v1934, 0
      %1983 = vmatprep.subr.mxu0 0.0
      %1984 = vmatpush1.xpose.msra.mxu0 0.0
      %1985 = vmatprep.subr.mxu0 0.0
      %1986 = vmatpush1.xpose.msra.mxu0 0.0
      %1987 = vmatprep.subr.mxu0 0.0
      %1988 = vmatpush1.xpose.msra.mxu0 0.0
      %1989 = vmatprep.subr.mxu0 0.0
      %1990 = vmatpush1.xpose.msra.mxu0 0.0
      %1991 = vmatprep.subr.mxu0 0.0
      %1992 = vmatpush1.xpose.msra.mxu0 0.0
      %1993 = vmatprep.subr.mxu0 0.0
      %1994 = vmatpush1.xpose.msra.mxu0 0.0
      %1995 = vmatprep.subr.mxu0 0.0
      %1996 = vmatpush1.xpose.msra.mxu0 0.0
      %1997 = vmatprep.subr.mxu0 0.0
      %1998 = vmatpush1.xpose.msra.mxu0 0.0
      %1999 = vmatprep.subr.mxu0 0.0
      %2000 = vmatpush1.xpose.msra.mxu0 %v1981
      %2001 = vmatprep.subr.mxu0 0.0
      %2002 = vmatpush1.xpose.msra.mxu0 %v1978
      %2003 = vmatprep.subr.mxu0 0.0
      %2004 = vmatpush1.xpose.msra.mxu0 %v1975
      %2005 = vmatprep.subr.mxu0 0.0
      %2006 = vmatpush1.xpose.msra.mxu0 %v1972
      %2007 = vmatprep.subr.mxu0 0.0
      %2008 = vmatpush1.xpose.msra.mxu0 %v1969
      %2009 = vmatprep.subr.mxu0 0.0
      %2010 = vmatpush1.xpose.msra.mxu0 %v1966
      %2011 = vmatprep.subr.mxu0 0.0
      %2012 = vmatpush1.xpose.msra.mxu0 %v1963
      %2013 = vmatprep.subr.mxu0 0.0
      %2014 = vmatpush1.xpose.msra.mxu0 %v1960
      %2015 = vmatprep.subr.mxu0 0.0
      %2016 = vmatpush2.xpose.msra.mxu0 0.0
      %2017 = vmatprep.subr.mxu0 0.0
      %2018 = vmatpush2.xpose.msra.mxu0 0.0
      %2019 = vmatprep.subr.mxu0 0.0
      %2020 = vmatpush2.xpose.msra.mxu0 0.0
      %2021 = vmatprep.subr.mxu0 0.0
      %2022 = vmatpush2.xpose.msra.mxu0 0.0
      %2023 = vmatprep.subr.mxu0 0.0
      %2024 = vmatpush2.xpose.msra.mxu0 0.0
      %2025 = vmatprep.subr.mxu0 0.0
      %2026 = vmatpush2.xpose.msra.mxu0 0.0
      %2027 = vmatprep.subr.mxu0 0.0
      %2028 = vmatpush2.xpose.msra.mxu0 0.0
      %2029 = vmatprep.subr.mxu0 0.0
      %2030 = vmatpush2.xpose.msra.mxu0 0.0
      %2031 = vmatprep.subr.mxu0 0.0
      %2032 = vmatpush2.xpose.msra.mxu0 0.0
      %2033 = vmatprep.subr.mxu0 0.0
      %2034 = vmatpush2.xpose.msra.mxu0 0.0
      %2035 = vmatprep.subr.mxu0 0.0
      %2036 = vmatpush2.xpose.msra.mxu0 0.0
      %2037 = vmatprep.subr.mxu0 0.0
      %2038 = vmatpush2.xpose.msra.mxu0 0.0
      %2039 = vmatprep.subr.mxu0 0.0
      %2040 = vmatpush2.xpose.msra.mxu0 0.0
      %2041 = vmatprep.subr.mxu0 0.0
      %2042 = vmatpush2.xpose.msra.mxu0 0.0
      %2043 = vmatprep.subr.mxu0 0.0
      %2044 = vmatpush2.xpose.msra.mxu0 0.0
      %2045 = vmatprep.subr.mxu0 0.0
      %2046 = vmatpush2.xpose.msra.mxu0 0.0
      %2047 = vmatprep.mubr.f32.mxu0 0.0
      %2048 = vmatmul.mubr.f32.gmra.mxu0 %v1936
      %v2049 = vpop.f32.mrf.mxu0
      %v2050 = vadd.f32 0.0, %v2049
      %v2051 = vpop.f32.mrf.mxu0
      %2052 = vmatprep.mubr.f32.mxu0 0.0
      %2053 = vmatmul.mubr.f32.gmra.mxu0 %v1939
      %v2054 = vpop.f32.mrf.mxu0
      %v2055 = vadd.f32 0.0, %v2054
      %v2056 = vpop.f32.mrf.mxu0
      %2057 = vmatprep.mubr.f32.mxu0 0.0
      %2058 = vmatmul.mubr.f32.gmra.mxu0 %v1942
      %v2059 = vpop.f32.mrf.mxu0
      %v2060 = vadd.f32 0.0, %v2059
      %v2061 = vpop.f32.mrf.mxu0
      %2062 = vmatprep.mubr.f32.mxu0 0.0
      %2063 = vmatmul.mubr.f32.gmra.mxu0 %v1945
      %v2064 = vpop.f32.mrf.mxu0
      %v2065 = vadd.f32 0.0, %v2064
      %v2066 = vpop.f32.mrf.mxu0
      %2067 = vmatprep.mubr.f32.mxu0 0.0
      %2068 = vmatmul.mubr.f32.gmra.mxu0 %v1948
      %v2069 = vpop.f32.mrf.mxu0
      %v2070 = vadd.f32 0.0, %v2069
      %v2071 = vpop.f32.mrf.mxu0
      %2072 = vmatprep.mubr.f32.mxu0 0.0
      %2073 = vmatmul.mubr.f32.gmra.mxu0 %v1951
      %v2074 = vpop.f32.mrf.mxu0
      %v2075 = vadd.f32 0.0, %v2074
      %v2076 = vpop.f32.mrf.mxu0
      %2077 = vmatprep.mubr.f32.mxu0 0.0
      %2078 = vmatmul.mubr.f32.gmra.mxu0 %v1954
      %v2079 = vpop.f32.mrf.mxu0
      %v2080 = vadd.f32 0.0, %v2079
      %v2081 = vpop.f32.mrf.mxu0
      %2082 = vmatprep.mubr.f32.mxu0 0.0
      %2083 = vmatmul.mubr.f32.gmra.mxu0 %v1957
      %v2084 = vpop.f32.mrf.mxu0
      %v2085 = vadd.f32 0.0, %v2084
      %v2086 = vpop.f32.mrf.mxu0
      %2087 = vdwg.mxu0
      %v2088 = vsel %vm878, %v2050, inf
      %2089 = vmin.xlane.f32.xlu0 %v2088
      %v2090 = vpop.xlane.xlu0 %2089
      %v2091 = vsel %vm878, %v2055, inf
      %2092 = vmin.xlane.f32.xlu0 %v2091
      %v2093 = vpop.xlane.xlu0 %2092
      %v2094 = vsel %vm878, %v2060, inf
      %2095 = vmin.xlane.f32.xlu0 %v2094
      %v2096 = vpop.xlane.xlu0 %2095
      %v2097 = vsel %vm878, %v2065, inf
      %2098 = vmin.xlane.f32.xlu0 %v2097
      %v2099 = vpop.xlane.xlu0 %2098
      %v2100 = vsel %vm878, %v2070, inf
      %2101 = vmin.xlane.f32.xlu0 %v2100
      %v2102 = vpop.xlane.xlu0 %2101
      %v2103 = vsel %vm878, %v2075, inf
      %2104 = vmin.xlane.f32.xlu0 %v2103
      %v2105 = vpop.xlane.xlu0 %2104
      %v2106 = vsel %vm878, %v2080, inf
      %2107 = vmin.xlane.f32.xlu0 %v2106
      %v2108 = vpop.xlane.xlu0 %2107
      %v2109 = vsel %vm878, %v2085, inf
      %2110 = vmin.xlane.f32.xlu0 %v2109
      %v2111 = vpop.xlane.xlu0 %2110
      %vm2112 = vcmp.le.f32.partialorder %v2050, %v2090
      %vm2113 = vcmp.le.f32.partialorder %v2055, %v2093
      %vm2114 = vcmp.le.f32.partialorder %v2060, %v2096
      %vm2115 = vcmp.le.f32.partialorder %v2065, %v2099
      %vm2116 = vcmp.le.f32.partialorder %v2070, %v2102
      %vm2117 = vcmp.le.f32.partialorder %v2075, %v2105
      %vm2118 = vcmp.le.f32.partialorder %v2080, %v2108
      %vm2119 = vcmp.le.f32.partialorder %v2085, %v2111
      %v2120 = vsel %vm2112, %v254, 64.0
      %v2121 = vsel %vm2113, %v254, 64.0
      %v2122 = vsel %vm2114, %v254, 64.0
      %v2123 = vsel %vm2115, %v254, 64.0
      %v2124 = vsel %vm2116, %v254, 64.0
      %v2125 = vsel %vm2117, %v254, 64.0
      %v2126 = vsel %vm2118, %v254, 64.0
      %v2127 = vsel %vm2119, %v254, 64.0
      %v2128 = vsel %vm878, %v2120, inf
      %2129 = vmin.xlane.f32.xlu0 %v2128
      %v2130 = vpop.xlane.xlu0 %2129
      %v2131 = vsel %vm878, %v2121, inf
      %2132 = vmin.xlane.f32.xlu0 %v2131
      %v2133 = vpop.xlane.xlu0 %2132
      %v2134 = vsel %vm878, %v2122, inf
      %2135 = vmin.xlane.f32.xlu0 %v2134
      %v2136 = vpop.xlane.xlu0 %2135
      %v2137 = vsel %vm878, %v2123, inf
      %2138 = vmin.xlane.f32.xlu0 %v2137
      %v2139 = vpop.xlane.xlu0 %2138
      %v2140 = vsel %vm878, %v2124, inf
      %2141 = vmin.xlane.f32.xlu0 %v2140
      %v2142 = vpop.xlane.xlu0 %2141
      %v2143 = vsel %vm878, %v2125, inf
      %2144 = vmin.xlane.f32.xlu0 %v2143
      %v2145 = vpop.xlane.xlu0 %2144
      %v2146 = vsel %vm878, %v2126, inf
      %2147 = vmin.xlane.f32.xlu0 %v2146
      %v2148 = vpop.xlane.xlu0 %2147
      %v2149 = vsel %vm878, %v2127, inf
      %2150 = vmin.xlane.f32.xlu0 %v2149
      %v2151 = vpop.xlane.xlu0 %2150
      %vm2152 = vcmp.eq.f32.partialorder %v254, %v2130
      %vm2153 = vcmp.eq.f32.partialorder %v254, %v2133
      %vm2154 = vcmp.eq.f32.partialorder %v254, %v2136
      %vm2155 = vcmp.eq.f32.partialorder %v254, %v2139
      %vm2156 = vcmp.eq.f32.partialorder %v254, %v2142
      %vm2157 = vcmp.eq.f32.partialorder %v254, %v2145
      %vm2158 = vcmp.eq.f32.partialorder %v254, %v2148
      %vm2159 = vcmp.eq.f32.partialorder %v254, %v2151
      %v2160 = vsel %vm2152, 1, 0
      %v2161 = vsel %vm2153, 1, 0
      %v2162 = vsel %vm2154, 1, 0
      %v2163 = vsel %vm2155, 1, 0
      %v2164 = vsel %vm2156, 1, 0
      %v2165 = vsel %vm2157, 1, 0
      %v2166 = vsel %vm2158, 1, 0
      %v2167 = vsel %vm2159, 1, 0
      %v2168 = vcvt.s32.f32 %v2160
      %v2169 = vcvt.s32.f32 %v2161
      %v2170 = vcvt.s32.f32 %v2162
      %v2171 = vcvt.s32.f32 %v2163
      %v2172 = vcvt.s32.f32 %v2164
      %v2173 = vcvt.s32.f32 %v2165
      %v2174 = vcvt.s32.f32 %v2166
      %v2175 = vcvt.s32.f32 %v2167
      %v2176 = vsel %vm2152, inf, %v2050
      %v2177 = vsel %vm2153, inf, %v2055
      %v2178 = vsel %vm2154, inf, %v2060
      %v2179 = vsel %vm2155, inf, %v2065
      %v2180 = vsel %vm2156, inf, %v2070
      %v2181 = vsel %vm2157, inf, %v2075
      %v2182 = vsel %vm2158, inf, %v2080
      %v2183 = vsel %vm2159, inf, %v2085
      %v2184 = vsel %vm878, %v2176, inf
      %2185 = vmin.xlane.f32.xlu0 %v2184
      %v2186 = vpop.xlane.xlu0 %2185
      %v2187 = vsel %vm878, %v2177, inf
      %2188 = vmin.xlane.f32.xlu0 %v2187
      %v2189 = vpop.xlane.xlu0 %2188
      %v2190 = vsel %vm878, %v2178, inf
      %2191 = vmin.xlane.f32.xlu0 %v2190
      %v2192 = vpop.xlane.xlu0 %2191
      %v2193 = vsel %vm878, %v2179, inf
      %2194 = vmin.xlane.f32.xlu0 %v2193
      %v2195 = vpop.xlane.xlu0 %2194
      %v2196 = vsel %vm878, %v2180, inf
      %2197 = vmin.xlane.f32.xlu0 %v2196
      %v2198 = vpop.xlane.xlu0 %2197
      %v2199 = vsel %vm878, %v2181, inf
      %2200 = vmin.xlane.f32.xlu0 %v2199
      %v2201 = vpop.xlane.xlu0 %2200
      %v2202 = vsel %vm878, %v2182, inf
      %2203 = vmin.xlane.f32.xlu0 %v2202
      %v2204 = vpop.xlane.xlu0 %2203
      %v2205 = vsel %vm878, %v2183, inf
      %2206 = vmin.xlane.f32.xlu0 %v2205
      %v2207 = vpop.xlane.xlu0 %2206
      %vm2208 = vcmp.le.f32.partialorder %v2176, %v2186
      %vm2209 = vcmp.le.f32.partialorder %v2177, %v2189
      %vm2210 = vcmp.le.f32.partialorder %v2178, %v2192
      %vm2211 = vcmp.le.f32.partialorder %v2179, %v2195
      %vm2212 = vcmp.le.f32.partialorder %v2180, %v2198
      %vm2213 = vcmp.le.f32.partialorder %v2181, %v2201
      %vm2214 = vcmp.le.f32.partialorder %v2182, %v2204
      %vm2215 = vcmp.le.f32.partialorder %v2183, %v2207
      %v2216 = vsel %vm2208, %v254, 64.0
      %v2217 = vsel %vm2209, %v254, 64.0
      %v2218 = vsel %vm2210, %v254, 64.0
      %v2219 = vsel %vm2211, %v254, 64.0
      %v2220 = vsel %vm2212, %v254, 64.0
      %v2221 = vsel %vm2213, %v254, 64.0
      %v2222 = vsel %vm2214, %v254, 64.0
      %v2223 = vsel %vm2215, %v254, 64.0
      %v2224 = vsel %vm878, %v2216, inf
      %2225 = vmin.xlane.f32.xlu0 %v2224
      %v2226 = vpop.xlane.xlu0 %2225
      %v2227 = vsel %vm878, %v2217, inf
      %2228 = vmin.xlane.f32.xlu0 %v2227
      %v2229 = vpop.xlane.xlu0 %2228
      %v2230 = vsel %vm878, %v2218, inf
      %2231 = vmin.xlane.f32.xlu0 %v2230
      %v2232 = vpop.xlane.xlu0 %2231
      %v2233 = vsel %vm878, %v2219, inf
      %2234 = vmin.xlane.f32.xlu0 %v2233
      %v2235 = vpop.xlane.xlu0 %2234
      %v2236 = vsel %vm878, %v2220, inf
      %2237 = vmin.xlane.f32.xlu0 %v2236
      %v2238 = vpop.xlane.xlu0 %2237
      %v2239 = vsel %vm878, %v2221, inf
      %2240 = vmin.xlane.f32.xlu0 %v2239
      %v2241 = vpop.xlane.xlu0 %2240
      %v2242 = vsel %vm878, %v2222, inf
      %2243 = vmin.xlane.f32.xlu0 %v2242
      %v2244 = vpop.xlane.xlu0 %2243
      %v2245 = vsel %vm878, %v2223, inf
      %2246 = vmin.xlane.f32.xlu0 %v2245
      %v2247 = vpop.xlane.xlu0 %2246
      %vm2248 = vcmp.eq.f32.partialorder %v254, %v2226
      %vm2249 = vcmp.eq.f32.partialorder %v254, %v2229
      %vm2250 = vcmp.eq.f32.partialorder %v254, %v2232
      %vm2251 = vcmp.eq.f32.partialorder %v254, %v2235
      %vm2252 = vcmp.eq.f32.partialorder %v254, %v2238
      %vm2253 = vcmp.eq.f32.partialorder %v254, %v2241
      %vm2254 = vcmp.eq.f32.partialorder %v254, %v2244
      %vm2255 = vcmp.eq.f32.partialorder %v254, %v2247
      %v2256 = vsel %vm2248, 1, 0
      %v2257 = vsel %vm2249, 1, 0
      %v2258 = vsel %vm2250, 1, 0
      %v2259 = vsel %vm2251, 1, 0
      %v2260 = vsel %vm2252, 1, 0
      %v2261 = vsel %vm2253, 1, 0
      %v2262 = vsel %vm2254, 1, 0
      %v2263 = vsel %vm2255, 1, 0
      %v2264 = vcvt.s32.f32 %v2256
      %v2265 = vcvt.s32.f32 %v2257
      %v2266 = vcvt.s32.f32 %v2258
      %v2267 = vcvt.s32.f32 %v2259
      %v2268 = vcvt.s32.f32 %v2260
      %v2269 = vcvt.s32.f32 %v2261
      %v2270 = vcvt.s32.f32 %v2262
      %v2271 = vcvt.s32.f32 %v2263
      %v2272 = vsel %vm2248, inf, %v2176
      %v2273 = vsel %vm2249, inf, %v2177
      %v2274 = vsel %vm2250, inf, %v2178
      %v2275 = vsel %vm2251, inf, %v2179
      %v2276 = vsel %vm2252, inf, %v2180
      %v2277 = vsel %vm2253, inf, %v2181
      %v2278 = vsel %vm2254, inf, %v2182
      %v2279 = vsel %vm2255, inf, %v2183
      %v2280 = vsel %vm878, %v2272, inf
      %2281 = vmin.xlane.f32.xlu0 %v2280
      %v2282 = vpop.xlane.xlu0 %2281
      %v2283 = vsel %vm878, %v2273, inf
      %2284 = vmin.xlane.f32.xlu0 %v2283
      %v2285 = vpop.xlane.xlu0 %2284
      %v2286 = vsel %vm878, %v2274, inf
      %2287 = vmin.xlane.f32.xlu0 %v2286
      %v2288 = vpop.xlane.xlu0 %2287
      %v2289 = vsel %vm878, %v2275, inf
      %2290 = vmin.xlane.f32.xlu0 %v2289
      %v2291 = vpop.xlane.xlu0 %2290
      %v2292 = vsel %vm878, %v2276, inf
      %2293 = vmin.xlane.f32.xlu0 %v2292
      %v2294 = vpop.xlane.xlu0 %2293
      %v2295 = vsel %vm878, %v2277, inf
      %2296 = vmin.xlane.f32.xlu0 %v2295
      %v2297 = vpop.xlane.xlu0 %2296
      %v2298 = vsel %vm878, %v2278, inf
      %2299 = vmin.xlane.f32.xlu0 %v2298
      %v2300 = vpop.xlane.xlu0 %2299
      %v2301 = vsel %vm878, %v2279, inf
      %2302 = vmin.xlane.f32.xlu0 %v2301
      %v2303 = vpop.xlane.xlu0 %2302
      %vm2304 = vcmp.le.f32.partialorder %v2272, %v2282
      %vm2305 = vcmp.le.f32.partialorder %v2273, %v2285
      %vm2306 = vcmp.le.f32.partialorder %v2274, %v2288
      %vm2307 = vcmp.le.f32.partialorder %v2275, %v2291
      %vm2308 = vcmp.le.f32.partialorder %v2276, %v2294
      %vm2309 = vcmp.le.f32.partialorder %v2277, %v2297
      %vm2310 = vcmp.le.f32.partialorder %v2278, %v2300
      %vm2311 = vcmp.le.f32.partialorder %v2279, %v2303
      %v2312 = vsel %vm2304, %v254, 64.0
      %v2313 = vsel %vm2305, %v254, 64.0
      %v2314 = vsel %vm2306, %v254, 64.0
      %v2315 = vsel %vm2307, %v254, 64.0
      %v2316 = vsel %vm2308, %v254, 64.0
      %v2317 = vsel %vm2309, %v254, 64.0
      %v2318 = vsel %vm2310, %v254, 64.0
      %v2319 = vsel %vm2311, %v254, 64.0
      %v2320 = vsel %vm878, %v2312, inf
      %2321 = vmin.xlane.f32.xlu0 %v2320
      %v2322 = vpop.xlane.xlu0 %2321
      %v2323 = vsel %vm878, %v2313, inf
      %2324 = vmin.xlane.f32.xlu0 %v2323
      %v2325 = vpop.xlane.xlu0 %2324
      %v2326 = vsel %vm878, %v2314, inf
      %2327 = vmin.xlane.f32.xlu0 %v2326
      %v2328 = vpop.xlane.xlu0 %2327
      %v2329 = vsel %vm878, %v2315, inf
      %2330 = vmin.xlane.f32.xlu0 %v2329
      %v2331 = vpop.xlane.xlu0 %2330
      %v2332 = vsel %vm878, %v2316, inf
      %2333 = vmin.xlane.f32.xlu0 %v2332
      %v2334 = vpop.xlane.xlu0 %2333
      %v2335 = vsel %vm878, %v2317, inf
      %2336 = vmin.xlane.f32.xlu0 %v2335
      %v2337 = vpop.xlane.xlu0 %2336
      %v2338 = vsel %vm878, %v2318, inf
      %2339 = vmin.xlane.f32.xlu0 %v2338
      %v2340 = vpop.xlane.xlu0 %2339
      %v2341 = vsel %vm878, %v2319, inf
      %2342 = vmin.xlane.f32.xlu0 %v2341
      %v2343 = vpop.xlane.xlu0 %2342
      %vm2344 = vcmp.eq.f32.partialorder %v254, %v2322
      %vm2345 = vcmp.eq.f32.partialorder %v254, %v2325
      %vm2346 = vcmp.eq.f32.partialorder %v254, %v2328
      %vm2347 = vcmp.eq.f32.partialorder %v254, %v2331
      %vm2348 = vcmp.eq.f32.partialorder %v254, %v2334
      %vm2349 = vcmp.eq.f32.partialorder %v254, %v2337
      %vm2350 = vcmp.eq.f32.partialorder %v254, %v2340
      %vm2351 = vcmp.eq.f32.partialorder %v254, %v2343
      %v2352 = vsel %vm2344, 1, 0
      %v2353 = vsel %vm2345, 1, 0
      %v2354 = vsel %vm2346, 1, 0
      %v2355 = vsel %vm2347, 1, 0
      %v2356 = vsel %vm2348, 1, 0
      %v2357 = vsel %vm2349, 1, 0
      %v2358 = vsel %vm2350, 1, 0
      %v2359 = vsel %vm2351, 1, 0
      %v2360 = vcvt.s32.f32 %v2352
      %v2361 = vcvt.s32.f32 %v2353
      %v2362 = vcvt.s32.f32 %v2354
      %v2363 = vcvt.s32.f32 %v2355
      %v2364 = vcvt.s32.f32 %v2356
      %v2365 = vcvt.s32.f32 %v2357
      %v2366 = vcvt.s32.f32 %v2358
      %v2367 = vcvt.s32.f32 %v2359
      %v2368 = vsel %vm2344, inf, %v2272
      %v2369 = vsel %vm2345, inf, %v2273
      %v2370 = vsel %vm2346, inf, %v2274
      %v2371 = vsel %vm2347, inf, %v2275
      %v2372 = vsel %vm2348, inf, %v2276
      %v2373 = vsel %vm2349, inf, %v2277
      %v2374 = vsel %vm2350, inf, %v2278
      %v2375 = vsel %vm2351, inf, %v2279
      %v2376 = vsel %vm878, %v2368, inf
      %2377 = vmin.xlane.f32.xlu0 %v2376
      %v2378 = vpop.xlane.xlu0 %2377
      %v2379 = vsel %vm878, %v2369, inf
      %2380 = vmin.xlane.f32.xlu0 %v2379
      %v2381 = vpop.xlane.xlu0 %2380
      %v2382 = vsel %vm878, %v2370, inf
      %2383 = vmin.xlane.f32.xlu0 %v2382
      %v2384 = vpop.xlane.xlu0 %2383
      %v2385 = vsel %vm878, %v2371, inf
      %2386 = vmin.xlane.f32.xlu0 %v2385
      %v2387 = vpop.xlane.xlu0 %2386
      %v2388 = vsel %vm878, %v2372, inf
      %2389 = vmin.xlane.f32.xlu0 %v2388
      %v2390 = vpop.xlane.xlu0 %2389
      %v2391 = vsel %vm878, %v2373, inf
      %2392 = vmin.xlane.f32.xlu0 %v2391
      %v2393 = vpop.xlane.xlu0 %2392
      %v2394 = vsel %vm878, %v2374, inf
      %2395 = vmin.xlane.f32.xlu0 %v2394
      %v2396 = vpop.xlane.xlu0 %2395
      %v2397 = vsel %vm878, %v2375, inf
      %2398 = vmin.xlane.f32.xlu0 %v2397
      %v2399 = vpop.xlane.xlu0 %2398
      %vm2400 = vcmp.le.f32.partialorder %v2368, %v2378
      %vm2401 = vcmp.le.f32.partialorder %v2369, %v2381
      %vm2402 = vcmp.le.f32.partialorder %v2370, %v2384
      %vm2403 = vcmp.le.f32.partialorder %v2371, %v2387
      %vm2404 = vcmp.le.f32.partialorder %v2372, %v2390
      %vm2405 = vcmp.le.f32.partialorder %v2373, %v2393
      %vm2406 = vcmp.le.f32.partialorder %v2374, %v2396
      %vm2407 = vcmp.le.f32.partialorder %v2375, %v2399
      %v2408 = vsel %vm2400, %v254, 64.0
      %v2409 = vsel %vm2401, %v254, 64.0
      %v2410 = vsel %vm2402, %v254, 64.0
      %v2411 = vsel %vm2403, %v254, 64.0
      %v2412 = vsel %vm2404, %v254, 64.0
      %v2413 = vsel %vm2405, %v254, 64.0
      %v2414 = vsel %vm2406, %v254, 64.0
      %v2415 = vsel %vm2407, %v254, 64.0
      %v2416 = vsel %vm878, %v2408, inf
      %2417 = vmin.xlane.f32.xlu0 %v2416
      %v2418 = vpop.xlane.xlu0 %2417
      %v2419 = vsel %vm878, %v2409, inf
      %2420 = vmin.xlane.f32.xlu0 %v2419
      %v2421 = vpop.xlane.xlu0 %2420
      %v2422 = vsel %vm878, %v2410, inf
      %2423 = vmin.xlane.f32.xlu0 %v2422
      %v2424 = vpop.xlane.xlu0 %2423
      %v2425 = vsel %vm878, %v2411, inf
      %2426 = vmin.xlane.f32.xlu0 %v2425
      %v2427 = vpop.xlane.xlu0 %2426
      %v2428 = vsel %vm878, %v2412, inf
      %2429 = vmin.xlane.f32.xlu0 %v2428
      %v2430 = vpop.xlane.xlu0 %2429
      %v2431 = vsel %vm878, %v2413, inf
      %2432 = vmin.xlane.f32.xlu0 %v2431
      %v2433 = vpop.xlane.xlu0 %2432
      %v2434 = vsel %vm878, %v2414, inf
      %2435 = vmin.xlane.f32.xlu0 %v2434
      %v2436 = vpop.xlane.xlu0 %2435
      %v2437 = vsel %vm878, %v2415, inf
      %2438 = vmin.xlane.f32.xlu0 %v2437
      %v2439 = vpop.xlane.xlu0 %2438
      %vm2440 = vcmp.eq.f32.partialorder %v254, %v2418
      %vm2441 = vcmp.eq.f32.partialorder %v254, %v2421
      %vm2442 = vcmp.eq.f32.partialorder %v254, %v2424
      %vm2443 = vcmp.eq.f32.partialorder %v254, %v2427
      %vm2444 = vcmp.eq.f32.partialorder %v254, %v2430
      %vm2445 = vcmp.eq.f32.partialorder %v254, %v2433
      %vm2446 = vcmp.eq.f32.partialorder %v254, %v2436
      %vm2447 = vcmp.eq.f32.partialorder %v254, %v2439
      %v2448 = vsel %vm2440, 1, 0
      %v2449 = vsel %vm2441, 1, 0
      %v2450 = vsel %vm2442, 1, 0
      %v2451 = vsel %vm2443, 1, 0
      %v2452 = vsel %vm2444, 1, 0
      %v2453 = vsel %vm2445, 1, 0
      %v2454 = vsel %vm2446, 1, 0
      %v2455 = vsel %vm2447, 1, 0
      %v2456 = vcvt.s32.f32 %v2448
      %v2457 = vcvt.s32.f32 %v2449
      %v2458 = vcvt.s32.f32 %v2450
      %v2459 = vcvt.s32.f32 %v2451
      %v2460 = vcvt.s32.f32 %v2452
      %v2461 = vcvt.s32.f32 %v2453
      %v2462 = vcvt.s32.f32 %v2454
      %v2463 = vcvt.s32.f32 %v2455
      %v2465 = vsel %vm878, %v2168, 0
      %v2468 = vsel %vm878, %v2169, 0
      %v2471 = vsel %vm878, %v2170, 0
      %v2474 = vsel %vm878, %v2171, 0
      %v2477 = vsel %vm878, %v2172, 0
      %v2480 = vsel %vm878, %v2173, 0
      %v2483 = vsel %vm878, %v2174, 0
      %v2486 = vsel %vm878, %v2175, 0
      %v2489 = vsel %vm878, %v2264, 0
      %v2492 = vsel %vm878, %v2265, 0
      %v2495 = vsel %vm878, %v2266, 0
      %v2498 = vsel %vm878, %v2267, 0
      %v2501 = vsel %vm878, %v2268, 0
      %v2504 = vsel %vm878, %v2269, 0
      %v2507 = vsel %vm878, %v2270, 0
      %v2510 = vsel %vm878, %v2271, 0
      %v2513 = vsel %vm878, %v2360, 0
      %v2516 = vsel %vm878, %v2361, 0
      %v2519 = vsel %vm878, %v2362, 0
      %v2522 = vsel %vm878, %v2363, 0
      %v2525 = vsel %vm878, %v2364, 0
      %v2528 = vsel %vm878, %v2365, 0
      %v2531 = vsel %vm878, %v2366, 0
      %v2534 = vsel %vm878, %v2367, 0
      %v2537 = vsel %vm878, %v2456, 0
      %v2540 = vsel %vm878, %v2457, 0
      %v2543 = vsel %vm878, %v2458, 0
      %v2546 = vsel %vm878, %v2459, 0
      %v2549 = vsel %vm878, %v2460, 0
      %v2552 = vsel %vm878, %v2461, 0
      %v2555 = vsel %vm878, %v2462, 0
      %v2558 = vsel %vm878, %v2463, 0
      %2560 = vmatprep.subr.mxu0 0.0
      %2561 = vmatpush1.msra.mxu0 0.0
      %2562 = vmatprep.subr.mxu0 0.0
      %2563 = vmatpush1.msra.mxu0 0.0
      %2564 = vmatprep.subr.mxu0 0.0
      %2565 = vmatpush1.msra.mxu0 0.0
      %2566 = vmatprep.subr.mxu0 0.0
      %2567 = vmatpush1.msra.mxu0 0.0
      %2568 = vmatprep.subr.mxu0 0.0
      %2569 = vmatpush1.msra.mxu0 0.0
      %2570 = vmatprep.subr.mxu0 0.0
      %2571 = vmatpush1.msra.mxu0 0.0
      %2572 = vmatprep.subr.mxu0 0.0
      %2573 = vmatpush1.msra.mxu0 0.0
      %2574 = vmatprep.subr.mxu0 0.0
      %2575 = vmatpush1.msra.mxu0 0.0
      %2576 = vmatprep.subr.mxu0 0.0
      %2577 = vmatpush1.msra.mxu0 %v1868
      %2578 = vmatprep.subr.mxu0 0.0
      %2579 = vmatpush1.msra.mxu0 %v1863
      %2580 = vmatprep.subr.mxu0 0.0
      %2581 = vmatpush1.msra.mxu0 %v1858
      %2582 = vmatprep.subr.mxu0 0.0
      %2583 = vmatpush1.msra.mxu0 %v1853
      %2584 = vmatprep.subr.mxu0 0.0
      %2585 = vmatpush1.msra.mxu0 %v1848
      %2586 = vmatprep.subr.mxu0 0.0
      %2587 = vmatpush1.msra.mxu0 %v1843
      %2588 = vmatprep.subr.mxu0 0.0
      %2589 = vmatpush1.msra.mxu0 %v1838
      %2590 = vmatprep.subr.mxu0 0.0
      %2591 = vmatpush1.msra.mxu0 %v1833
      %2592 = vmatprep.subr.mxu0 0.0
      %2593 = vmatpush2.msra.mxu0 0.0
      %2594 = vmatprep.subr.mxu0 0.0
      %2595 = vmatpush2.msra.mxu0 0.0
      %2596 = vmatprep.subr.mxu0 0.0
      %2597 = vmatpush2.msra.mxu0 0.0
      %2598 = vmatprep.subr.mxu0 0.0
      %2599 = vmatpush2.msra.mxu0 0.0
      %2600 = vmatprep.subr.mxu0 0.0
      %2601 = vmatpush2.msra.mxu0 0.0
      %2602 = vmatprep.subr.mxu0 0.0
      %2603 = vmatpush2.msra.mxu0 0.0
      %2604 = vmatprep.subr.mxu0 0.0
      %2605 = vmatpush2.msra.mxu0 0.0
      %2606 = vmatprep.subr.mxu0 0.0
      %2607 = vmatpush2.msra.mxu0 0.0
      %2608 = vmatprep.subr.mxu0 0.0
      %2609 = vmatpush2.msra.mxu0 0.0
      %2610 = vmatprep.subr.mxu0 0.0
      %2611 = vmatpush2.msra.mxu0 0.0
      %2612 = vmatprep.subr.mxu0 0.0
      %2613 = vmatpush2.msra.mxu0 0.0
      %2614 = vmatprep.subr.mxu0 0.0
      %2615 = vmatpush2.msra.mxu0 0.0
      %2616 = vmatprep.subr.mxu0 0.0
      %2617 = vmatpush2.msra.mxu0 0.0
      %2618 = vmatprep.subr.mxu0 0.0
      %2619 = vmatpush2.msra.mxu0 0.0
      %2620 = vmatprep.subr.mxu0 0.0
      %2621 = vmatpush2.msra.mxu0 0.0
      %2622 = vmatprep.subr.mxu0 0.0
      %2623 = vmatpush2.msra.mxu0 0.0
      %2624 = vmatprep.mubr.f32.mxu0 0.0
      %2625 = vmatmul.mubr.f32.gmra.mxu0 %v2465
      %v2626 = vpop.f32.mrf.mxu0
      %v2627 = vadd.f32 0.0, %v2626
      %v2628 = vpop.f32.mrf.mxu0
      %2629 = vmatprep.mubr.f32.mxu0 0.0
      %2630 = vmatmul.mubr.f32.gmra.mxu0 %v2468
      %v2631 = vpop.f32.mrf.mxu0
      %v2632 = vadd.f32 0.0, %v2631
      %v2633 = vpop.f32.mrf.mxu0
      %2634 = vmatprep.mubr.f32.mxu0 0.0
      %2635 = vmatmul.mubr.f32.gmra.mxu0 %v2471
      %v2636 = vpop.f32.mrf.mxu0
      %v2637 = vadd.f32 0.0, %v2636
      %v2638 = vpop.f32.mrf.mxu0
      %2639 = vmatprep.mubr.f32.mxu0 0.0
      %2640 = vmatmul.mubr.f32.gmra.mxu0 %v2474
      %v2641 = vpop.f32.mrf.mxu0
      %v2642 = vadd.f32 0.0, %v2641
      %v2643 = vpop.f32.mrf.mxu0
      %2644 = vmatprep.mubr.f32.mxu0 0.0
      %2645 = vmatmul.mubr.f32.gmra.mxu0 %v2477
      %v2646 = vpop.f32.mrf.mxu0
      %v2647 = vadd.f32 0.0, %v2646
      %v2648 = vpop.f32.mrf.mxu0
      %2649 = vmatprep.mubr.f32.mxu0 0.0
      %2650 = vmatmul.mubr.f32.gmra.mxu0 %v2480
      %v2651 = vpop.f32.mrf.mxu0
      %v2652 = vadd.f32 0.0, %v2651
      %v2653 = vpop.f32.mrf.mxu0
      %2654 = vmatprep.mubr.f32.mxu0 0.0
      %2655 = vmatmul.mubr.f32.gmra.mxu0 %v2483
      %v2656 = vpop.f32.mrf.mxu0
      %v2657 = vadd.f32 0.0, %v2656
      %v2658 = vpop.f32.mrf.mxu0
      %2659 = vmatprep.mubr.f32.mxu0 0.0
      %2660 = vmatmul.mubr.f32.gmra.mxu0 %v2486
      %v2661 = vpop.f32.mrf.mxu0
      %v2662 = vadd.f32 0.0, %v2661
      %v2663 = vpop.f32.mrf.mxu0
      %2664 = vmatprep.mubr.f32.mxu0 0.0
      %2665 = vmatmul.mubr.f32.gmra.mxu0 %v2489
      %v2666 = vpop.f32.mrf.mxu0
      %v2667 = vadd.f32 0.0, %v2666
      %v2668 = vpop.f32.mrf.mxu0
      %2669 = vmatprep.mubr.f32.mxu0 0.0
      %2670 = vmatmul.mubr.f32.gmra.mxu0 %v2492
      %v2671 = vpop.f32.mrf.mxu0
      %v2672 = vadd.f32 0.0, %v2671
      %v2673 = vpop.f32.mrf.mxu0
      %2674 = vmatprep.mubr.f32.mxu0 0.0
      %2675 = vmatmul.mubr.f32.gmra.mxu0 %v2495
      %v2676 = vpop.f32.mrf.mxu0
      %v2677 = vadd.f32 0.0, %v2676
      %v2678 = vpop.f32.mrf.mxu0
      %2679 = vmatprep.mubr.f32.mxu0 0.0
      %2680 = vmatmul.mubr.f32.gmra.mxu0 %v2498
      %v2681 = vpop.f32.mrf.mxu0
      %v2682 = vadd.f32 0.0, %v2681
      %v2683 = vpop.f32.mrf.mxu0
      %2684 = vmatprep.mubr.f32.mxu0 0.0
      %2685 = vmatmul.mubr.f32.gmra.mxu0 %v2501
      %v2686 = vpop.f32.mrf.mxu0
      %v2687 = vadd.f32 0.0, %v2686
      %v2688 = vpop.f32.mrf.mxu0
      %2689 = vmatprep.mubr.f32.mxu0 0.0
      %2690 = vmatmul.mubr.f32.gmra.mxu0 %v2504
      %v2691 = vpop.f32.mrf.mxu0
      %v2692 = vadd.f32 0.0, %v2691
      %v2693 = vpop.f32.mrf.mxu0
      %2694 = vmatprep.mubr.f32.mxu0 0.0
      %2695 = vmatmul.mubr.f32.gmra.mxu0 %v2507
      %v2696 = vpop.f32.mrf.mxu0
      %v2697 = vadd.f32 0.0, %v2696
      %v2698 = vpop.f32.mrf.mxu0
      %2699 = vmatprep.mubr.f32.mxu0 0.0
      %2700 = vmatmul.mubr.f32.gmra.mxu0 %v2510
      %v2701 = vpop.f32.mrf.mxu0
      %v2702 = vadd.f32 0.0, %v2701
      %v2703 = vpop.f32.mrf.mxu0
      %2704 = vmatprep.mubr.f32.mxu0 0.0
      %2705 = vmatmul.mubr.f32.gmra.mxu0 %v2513
      %v2706 = vpop.f32.mrf.mxu0
      %v2707 = vadd.f32 0.0, %v2706
      %v2708 = vpop.f32.mrf.mxu0
      %2709 = vmatprep.mubr.f32.mxu0 0.0
      %2710 = vmatmul.mubr.f32.gmra.mxu0 %v2516
      %v2711 = vpop.f32.mrf.mxu0
      %v2712 = vadd.f32 0.0, %v2711
      %v2713 = vpop.f32.mrf.mxu0
      %2714 = vmatprep.mubr.f32.mxu0 0.0
      %2715 = vmatmul.mubr.f32.gmra.mxu0 %v2519
      %v2716 = vpop.f32.mrf.mxu0
      %v2717 = vadd.f32 0.0, %v2716
      %v2718 = vpop.f32.mrf.mxu0
      %2719 = vmatprep.mubr.f32.mxu0 0.0
      %2720 = vmatmul.mubr.f32.gmra.mxu0 %v2522
      %v2721 = vpop.f32.mrf.mxu0
      %v2722 = vadd.f32 0.0, %v2721
      %v2723 = vpop.f32.mrf.mxu0
      %2724 = vmatprep.mubr.f32.mxu0 0.0
      %2725 = vmatmul.mubr.f32.gmra.mxu0 %v2525
      %v2726 = vpop.f32.mrf.mxu0
      %v2727 = vadd.f32 0.0, %v2726
      %v2728 = vpop.f32.mrf.mxu0
      %2729 = vmatprep.mubr.f32.mxu0 0.0
      %2730 = vmatmul.mubr.f32.gmra.mxu0 %v2528
      %v2731 = vpop.f32.mrf.mxu0
      %v2732 = vadd.f32 0.0, %v2731
      %v2733 = vpop.f32.mrf.mxu0
      %2734 = vmatprep.mubr.f32.mxu0 0.0
      %2735 = vmatmul.mubr.f32.gmra.mxu0 %v2531
      %v2736 = vpop.f32.mrf.mxu0
      %v2737 = vadd.f32 0.0, %v2736
      %v2738 = vpop.f32.mrf.mxu0
      %2739 = vmatprep.mubr.f32.mxu0 0.0
      %2740 = vmatmul.mubr.f32.gmra.mxu0 %v2534
      %v2741 = vpop.f32.mrf.mxu0
      %v2742 = vadd.f32 0.0, %v2741
      %v2743 = vpop.f32.mrf.mxu0
      %2744 = vmatprep.mubr.f32.mxu0 0.0
      %2745 = vmatmul.mubr.f32.gmra.mxu0 %v2537
      %v2746 = vpop.f32.mrf.mxu0
      %v2747 = vadd.f32 0.0, %v2746
      %v2748 = vpop.f32.mrf.mxu0
      %2749 = vmatprep.mubr.f32.mxu0 0.0
      %2750 = vmatmul.mubr.f32.gmra.mxu0 %v2540
      %v2751 = vpop.f32.mrf.mxu0
      %v2752 = vadd.f32 0.0, %v2751
      %v2753 = vpop.f32.mrf.mxu0
      %2754 = vmatprep.mubr.f32.mxu0 0.0
      %2755 = vmatmul.mubr.f32.gmra.mxu0 %v2543
      %v2756 = vpop.f32.mrf.mxu0
      %v2757 = vadd.f32 0.0, %v2756
      %v2758 = vpop.f32.mrf.mxu0
      %2759 = vmatprep.mubr.f32.mxu0 0.0
      %2760 = vmatmul.mubr.f32.gmra.mxu0 %v2546
      %v2761 = vpop.f32.mrf.mxu0
      %v2762 = vadd.f32 0.0, %v2761
      %v2763 = vpop.f32.mrf.mxu0
      %2764 = vmatprep.mubr.f32.mxu0 0.0
      %2765 = vmatmul.mubr.f32.gmra.mxu0 %v2549
      %v2766 = vpop.f32.mrf.mxu0
      %v2767 = vadd.f32 0.0, %v2766
      %v2768 = vpop.f32.mrf.mxu0
      %2769 = vmatprep.mubr.f32.mxu0 0.0
      %2770 = vmatmul.mubr.f32.gmra.mxu0 %v2552
      %v2771 = vpop.f32.mrf.mxu0
      %v2772 = vadd.f32 0.0, %v2771
      %v2773 = vpop.f32.mrf.mxu0
      %2774 = vmatprep.mubr.f32.mxu0 0.0
      %2775 = vmatmul.mubr.f32.gmra.mxu0 %v2555
      %v2776 = vpop.f32.mrf.mxu0
      %v2777 = vadd.f32 0.0, %v2776
      %v2778 = vpop.f32.mrf.mxu0
      %2779 = vmatprep.mubr.f32.mxu0 0.0
      %2780 = vmatmul.mubr.f32.gmra.mxu0 %v2558
      %v2781 = vpop.f32.mrf.mxu0
      %v2782 = vadd.f32 0.0, %v2781
      %v2783 = vpop.f32.mrf.mxu0
      %2784 = vdwg.mxu0
      %v2785 = vmax.f32 %v2627, %v2667
      %v2786 = vmax.f32 %v2632, %v2672
      %v2787 = vmax.f32 %v2637, %v2677
      %v2788 = vmax.f32 %v2642, %v2682
      %v2789 = vmax.f32 %v2647, %v2687
      %v2790 = vmax.f32 %v2652, %v2692
      %v2791 = vmax.f32 %v2657, %v2697
      %v2792 = vmax.f32 %v2662, %v2702
      %v2793 = vmax.f32 %v2785, %v2707
      %v2794 = vmax.f32 %v2786, %v2712
      %v2795 = vmax.f32 %v2787, %v2717
      %v2796 = vmax.f32 %v2788, %v2722
      %v2797 = vmax.f32 %v2789, %v2727
      %v2798 = vmax.f32 %v2790, %v2732
      %v2799 = vmax.f32 %v2791, %v2737
      %v2800 = vmax.f32 %v2792, %v2742
      %v2801 = vmax.f32 %v2793, %v2747
      %v2802 = vmax.f32 %v2794, %v2752
      %v2803 = vmax.f32 %v2795, %v2757
      %v2804 = vmax.f32 %v2796, %v2762
      %v2805 = vmax.f32 %v2797, %v2767
      %v2806 = vmax.f32 %v2798, %v2772
      %v2807 = vmax.f32 %v2799, %v2777
      %v2808 = vmax.f32 %v2800, %v2782
      %v2809 = vadd.f32 %v1871, %v2801
      %v2810 = vadd.f32 %v1872, %v2802
      %v2811 = vadd.f32 %v1873, %v2803
      %v2812 = vadd.f32 %v1874, %v2804
      %v2813 = vadd.f32 %v1875, %v2805
      %v2814 = vadd.f32 %v1876, %v2806
      %v2815 = vadd.f32 %v1877, %v2807
      %v2816 = vadd.f32 %v1878, %v2808
      %v2817 = vmax.f32 %v2809, 0.0
      %v2818 = vmax.f32 %v2810, 0.0
      %v2819 = vmax.f32 %v2811, 0.0
      %v2820 = vmax.f32 %v2812, 0.0
      %v2821 = vmax.f32 %v2813, 0.0
      %v2822 = vmax.f32 %v2814, 0.0
      %v2823 = vmax.f32 %v2815, 0.0
      %v2824 = vmax.f32 %v2816, 0.0
      %v2825 = vadd.f32 %v1608, %v2817
      %v2826 = vadd.f32 %v1609, %v2818
      %v2827 = vadd.f32 %v1610, %v2819
      %v2828 = vadd.f32 %v1611, %v2820
      %v2829 = vadd.f32 %v1612, %v2821
      %v2830 = vadd.f32 %v1613, %v2822
      %v2831 = vadd.f32 %v1614, %v2823
      %v2832 = vadd.f32 %v1615, %v2824
      %v2833 = vld [vmem:[%s5 + $0x20] sm:$0xff]
      %v2834 = vld [vmem:[%s5 + $0x28] sm:$0xff]
      %v2835 = vld [vmem:[%s5 + $0x30] sm:$0xff]
      %v2836 = vld [vmem:[%s5 + $0x38] sm:$0xff]
      %v2838 = vsel %vm425, %v2825, 0
      %v2841 = vsel %vm425, %v2826, 0
      %v2844 = vsel %vm425, %v2827, 0
      %v2847 = vsel %vm425, %v2828, 0
      %v2850 = vsel %vm425, %v2829, 0
      %v2853 = vsel %vm425, %v2830, 0
      %v2856 = vsel %vm425, %v2831, 0
      %v2859 = vsel %vm425, %v2832, 0
      %2861 = vmatprep.subr.mxu0 0.0
      %2862 = vmatpush1.msra.mxu0 0.0
      %2863 = vmatprep.subr.mxu0 0.0
      %2864 = vmatpush1.msra.mxu0 0.0
      %2865 = vmatprep.subr.mxu0 0.0
      %2866 = vmatpush1.msra.mxu0 0.0
      %2867 = vmatprep.subr.mxu0 0.0
      %2868 = vmatpush1.msra.mxu0 0.0
      %2869 = vmatprep.subr.mxu0 0.0
      %2870 = vmatpush1.msra.mxu0 0.0
      %2871 = vmatprep.subr.mxu0 0.0
      %2872 = vmatpush1.msra.mxu0 0.0
      %2873 = vmatprep.subr.mxu0 0.0
      %2874 = vmatpush1.msra.mxu0 0.0
      %2875 = vmatprep.subr.mxu0 0.0
      %2876 = vmatpush1.msra.mxu0 0.0
      %2877 = vmatprep.subr.mxu0 0.0
      %2878 = vmatpush1.msra.mxu0 0.0
      %2879 = vmatprep.subr.mxu0 0.0
      %2880 = vmatpush1.msra.mxu0 0.0
      %2881 = vmatprep.subr.mxu0 0.0
      %2882 = vmatpush1.msra.mxu0 0.0
      %2883 = vmatprep.subr.mxu0 0.0
      %2884 = vmatpush1.msra.mxu0 0.0
      %2885 = vmatprep.subr.mxu0 0.0
      %2886 = vmatpush1.msra.mxu0 %v2836
      %2887 = vmatprep.subr.mxu0 0.0
      %2888 = vmatpush1.msra.mxu0 %v2835
      %2889 = vmatprep.subr.mxu0 0.0
      %2890 = vmatpush1.msra.mxu0 %v2834
      %2891 = vmatprep.subr.mxu0 0.0
      %2892 = vmatpush1.msra.mxu0 %v2833
      %2893 = vmatprep.subr.mxu0 0.0
      %2894 = vmatpush2.msra.mxu0 0.0
      %2895 = vmatprep.subr.mxu0 0.0
      %2896 = vmatpush2.msra.mxu0 0.0
      %2897 = vmatprep.subr.mxu0 0.0
      %2898 = vmatpush2.msra.mxu0 0.0
      %2899 = vmatprep.subr.mxu0 0.0
      %2900 = vmatpush2.msra.mxu0 0.0
      %2901 = vmatprep.subr.mxu0 0.0
      %2902 = vmatpush2.msra.mxu0 0.0
      %2903 = vmatprep.subr.mxu0 0.0
      %2904 = vmatpush2.msra.mxu0 0.0
      %2905 = vmatprep.subr.mxu0 0.0
      %2906 = vmatpush2.msra.mxu0 0.0
      %2907 = vmatprep.subr.mxu0 0.0
      %2908 = vmatpush2.msra.mxu0 0.0
      %2909 = vmatprep.subr.mxu0 0.0
      %2910 = vmatpush2.msra.mxu0 0.0
      %2911 = vmatprep.subr.mxu0 0.0
      %2912 = vmatpush2.msra.mxu0 0.0
      %2913 = vmatprep.subr.mxu0 0.0
      %2914 = vmatpush2.msra.mxu0 0.0
      %2915 = vmatprep.subr.mxu0 0.0
      %2916 = vmatpush2.msra.mxu0 0.0
      %2917 = vmatprep.subr.mxu0 0.0
      %2918 = vmatpush2.msra.mxu0 0.0
      %2919 = vmatprep.subr.mxu0 0.0
      %2920 = vmatpush2.msra.mxu0 0.0
      %2921 = vmatprep.subr.mxu0 0.0
      %2922 = vmatpush2.msra.mxu0 0.0
      %2923 = vmatprep.subr.mxu0 0.0
      %2924 = vmatpush2.msra.mxu0 0.0
      %2925 = vmatprep.mubr.f32.mxu0 0.0
      %2926 = vmatmul.mubr.f32.gmra.mxu0 %v2838
      %v2927 = vpop.f32.mrf.mxu0
      %v2928 = vadd.f32 0.0, %v2927
      %v2929 = vpop.f32.mrf.mxu0
      %2930 = vmatprep.mubr.f32.mxu0 0.0
      %2931 = vmatmul.mubr.f32.gmra.mxu0 %v2841
      %v2932 = vpop.f32.mrf.mxu0
      %v2933 = vadd.f32 0.0, %v2932
      %v2934 = vpop.f32.mrf.mxu0
      %2935 = vmatprep.mubr.f32.mxu0 0.0
      %2936 = vmatmul.mubr.f32.gmra.mxu0 %v2844
      %v2937 = vpop.f32.mrf.mxu0
      %v2938 = vadd.f32 0.0, %v2937
      %v2939 = vpop.f32.mrf.mxu0
      %2940 = vmatprep.mubr.f32.mxu0 0.0
      %2941 = vmatmul.mubr.f32.gmra.mxu0 %v2847
      %v2942 = vpop.f32.mrf.mxu0
      %v2943 = vadd.f32 0.0, %v2942
      %v2944 = vpop.f32.mrf.mxu0
      %2945 = vmatprep.mubr.f32.mxu0 0.0
      %2946 = vmatmul.mubr.f32.gmra.mxu0 %v2850
      %v2947 = vpop.f32.mrf.mxu0
      %v2948 = vadd.f32 0.0, %v2947
      %v2949 = vpop.f32.mrf.mxu0
      %2950 = vmatprep.mubr.f32.mxu0 0.0
      %2951 = vmatmul.mubr.f32.gmra.mxu0 %v2853
      %v2952 = vpop.f32.mrf.mxu0
      %v2953 = vadd.f32 0.0, %v2952
      %v2954 = vpop.f32.mrf.mxu0
      %2955 = vmatprep.mubr.f32.mxu0 0.0
      %2956 = vmatmul.mubr.f32.gmra.mxu0 %v2856
      %v2957 = vpop.f32.mrf.mxu0
      %v2958 = vadd.f32 0.0, %v2957
      %v2959 = vpop.f32.mrf.mxu0
      %2960 = vmatprep.mubr.f32.mxu0 0.0
      %2961 = vmatmul.mubr.f32.gmra.mxu0 %v2859
      %v2962 = vpop.f32.mrf.mxu0
      %v2963 = vadd.f32 0.0, %v2962
      %v2964 = vpop.f32.mrf.mxu0
      %2965 = vdwg.mxu0
      %2966 = vmatprep.subr.mxu0 0.0
      %2967 = vmatpush1.msra.mxu0 0.0
      %2968 = vmatprep.subr.mxu0 0.0
      %2969 = vmatpush1.msra.mxu0 0.0
      %2970 = vmatprep.subr.mxu0 0.0
      %2971 = vmatpush1.msra.mxu0 0.0
      %2972 = vmatprep.subr.mxu0 0.0
      %2973 = vmatpush1.msra.mxu0 0.0
      %2974 = vmatprep.subr.mxu0 0.0
      %2975 = vmatpush1.msra.mxu0 0.0
      %2976 = vmatprep.subr.mxu0 0.0
      %2977 = vmatpush1.msra.mxu0 0.0
      %2978 = vmatprep.subr.mxu0 0.0
      %2979 = vmatpush1.msra.mxu0 0.0
      %2980 = vmatprep.subr.mxu0 0.0
      %2981 = vmatpush1.msra.mxu0 0.0
      %2982 = vmatprep.subr.mxu0 0.0
      %2983 = vmatpush1.msra.mxu0 0.0
      %2984 = vmatprep.subr.mxu0 0.0
      %2985 = vmatpush1.msra.mxu0 0.0
      %2986 = vmatprep.subr.mxu0 0.0
      %2987 = vmatpush1.msra.mxu0 0.0
      %2988 = vmatprep.subr.mxu0 0.0
      %2989 = vmatpush1.msra.mxu0 0.0
      %2990 = vmatprep.subr.mxu0 0.0
      %2991 = vmatpush1.msra.mxu0 %v1619
      %2992 = vmatprep.subr.mxu0 0.0
      %2993 = vmatpush1.msra.mxu0 %v1618
      %2994 = vmatprep.subr.mxu0 0.0
      %2995 = vmatpush1.msra.mxu0 %v1617
      %2996 = vmatprep.subr.mxu0 0.0
      %2997 = vmatpush1.msra.mxu0 %v1616
      %2998 = vmatprep.subr.mxu0 0.0
      %2999 = vmatpush2.msra.mxu0 0.0
      %3000 = vmatprep.subr.mxu0 0.0
      %3001 = vmatpush2.msra.mxu0 0.0
      %3002 = vmatprep.subr.mxu0 0.0
      %3003 = vmatpush2.msra.mxu0 0.0
      %3004 = vmatprep.subr.mxu0 0.0
      %3005 = vmatpush2.msra.mxu0 0.0
      %3006 = vmatprep.subr.mxu0 0.0
      %3007 = vmatpush2.msra.mxu0 0.0
      %3008 = vmatprep.subr.mxu0 0.0
      %3009 = vmatpush2.msra.mxu0 0.0
      %3010 = vmatprep.subr.mxu0 0.0
      %3011 = vmatpush2.msra.mxu0 0.0
      %3012 = vmatprep.subr.mxu0 0.0
      %3013 = vmatpush2.msra.mxu0 0.0
      %3014 = vmatprep.subr.mxu0 0.0
      %3015 = vmatpush2.msra.mxu0 0.0
      %3016 = vmatprep.subr.mxu0 0.0
      %3017 = vmatpush2.msra.mxu0 0.0
      %3018 = vmatprep.subr.mxu0 0.0
      %3019 = vmatpush2.msra.mxu0 0.0
      %3020 = vmatprep.subr.mxu0 0.0
      %3021 = vmatpush2.msra.mxu0 0.0
      %3022 = vmatprep.subr.mxu0 0.0
      %3023 = vmatpush2.msra.mxu0 0.0
      %3024 = vmatprep.subr.mxu0 0.0
      %3025 = vmatpush2.msra.mxu0 0.0
      %3026 = vmatprep.subr.mxu0 0.0
      %3027 = vmatpush2.msra.mxu0 0.0
      %3028 = vmatprep.subr.mxu0 0.0
      %3029 = vmatpush2.msra.mxu0 0.0
      %3030 = vmatprep.mubr.f32.mxu0 0.0
      %3031 = vmatmul.mubr.f32.gmra.mxu0 %v1638
      %v3032 = vpop.f32.mrf.mxu0
      %v3033 = vadd.f32 %v2928, %v3032
      %v3034 = vpop.f32.mrf.mxu0
      %3035 = vmatprep.mubr.f32.mxu0 0.0
      %3036 = vmatmul.mubr.f32.gmra.mxu0 %v1641
      %v3037 = vpop.f32.mrf.mxu0
      %v3038 = vadd.f32 %v2933, %v3037
      %v3039 = vpop.f32.mrf.mxu0
      %3040 = vmatprep.mubr.f32.mxu0 0.0
      %3041 = vmatmul.mubr.f32.gmra.mxu0 %v1644
      %v3042 = vpop.f32.mrf.mxu0
      %v3043 = vadd.f32 %v2938, %v3042
      %v3044 = vpop.f32.mrf.mxu0
      %3045 = vmatprep.mubr.f32.mxu0 0.0
      %3046 = vmatmul.mubr.f32.gmra.mxu0 %v1647
      %v3047 = vpop.f32.mrf.mxu0
      %v3048 = vadd.f32 %v2943, %v3047
      %v3049 = vpop.f32.mrf.mxu0
      %3050 = vmatprep.mubr.f32.mxu0 0.0
      %3051 = vmatmul.mubr.f32.gmra.mxu0 %v1650
      %v3052 = vpop.f32.mrf.mxu0
      %v3053 = vadd.f32 %v2948, %v3052
      %v3054 = vpop.f32.mrf.mxu0
      %3055 = vmatprep.mubr.f32.mxu0 0.0
      %3056 = vmatmul.mubr.f32.gmra.mxu0 %v1653
      %v3057 = vpop.f32.mrf.mxu0
      %v3058 = vadd.f32 %v2953, %v3057
      %v3059 = vpop.f32.mrf.mxu0
      %3060 = vmatprep.mubr.f32.mxu0 0.0
      %3061 = vmatmul.mubr.f32.gmra.mxu0 %v1656
      %v3062 = vpop.f32.mrf.mxu0
      %v3063 = vadd.f32 %v2958, %v3062
      %v3064 = vpop.f32.mrf.mxu0
      %3065 = vmatprep.mubr.f32.mxu0 0.0
      %3066 = vmatmul.mubr.f32.gmra.mxu0 %v1659
      %v3067 = vpop.f32.mrf.mxu0
      %v3068 = vadd.f32 %v2963, %v3067
      %v3069 = vpop.f32.mrf.mxu0
      %3070 = vdwg.mxu0
      %s3071 = scalar_lea.vmem %s3, 128
      %v3072 = vld [vmem:[%s3071] sm:$0xff]
      %v3073 = vld [vmem:[%s3071 + $0x8] sm:$0xff]
      %v3074 = vld [vmem:[%s3071 + $0x10] sm:$0xff]
      %v3075 = vld [vmem:[%s3071 + $0x18] sm:$0xff]
      %v3076 = vld [vmem:[%s3071 + $0x20] sm:$0xff]
      %v3077 = vld [vmem:[%s3071 + $0x28] sm:$0xff]
      %v3078 = vld [vmem:[%s3071 + $0x30] sm:$0xff]
      %v3079 = vld [vmem:[%s3071 + $0x38] sm:$0xff]
      %s3080 = scalar_lea.vmem %s4, 2
      %v3081 = vld [vmem:[%s3080] sm:$0x1]
      %v3083 = vlaneseq
      %v3084 = vshrl.u32 %v3083, 7
      %v3085 = vsub.s32 0, %v3084
      %v3086 = vrot.slane %v3081, %v3085
      %3088 = vmatprep.subr.mxu0 0.0
      %3089 = vmatpush1.msra.mxu0 0.0
      %3090 = vmatprep.subr.mxu0 0.0
      %3091 = vmatpush1.msra.mxu0 0.0
      %3092 = vmatprep.subr.mxu0 0.0
      %3093 = vmatpush1.msra.mxu0 0.0
      %3094 = vmatprep.subr.mxu0 0.0
      %3095 = vmatpush1.msra.mxu0 0.0
      %3096 = vmatprep.subr.mxu0 0.0
      %3097 = vmatpush1.msra.mxu0 0.0
      %3098 = vmatprep.subr.mxu0 0.0
      %3099 = vmatpush1.msra.mxu0 0.0
      %3100 = vmatprep.subr.mxu0 0.0
      %3101 = vmatpush1.msra.mxu0 0.0
      %3102 = vmatprep.subr.mxu0 0.0
      %3103 = vmatpush1.msra.mxu0 0.0
      %3104 = vmatprep.subr.mxu0 0.0
      %3105 = vmatpush1.msra.mxu0 0.0
      %3106 = vmatprep.subr.mxu0 0.0
      %3107 = vmatpush1.msra.mxu0 0.0
      %3108 = vmatprep.subr.mxu0 0.0
      %3109 = vmatpush1.msra.mxu0 0.0
      %3110 = vmatprep.subr.mxu0 0.0
      %3111 = vmatpush1.msra.mxu0 0.0
      %3112 = vmatprep.subr.mxu0 0.0
      %3113 = vmatpush1.msra.mxu0 %v3075
      %3114 = vmatprep.subr.mxu0 0.0
      %3115 = vmatpush1.msra.mxu0 %v3074
      %3116 = vmatprep.subr.mxu0 0.0
      %3117 = vmatpush1.msra.mxu0 %v3073
      %3118 = vmatprep.subr.mxu0 0.0
      %3119 = vmatpush1.msra.mxu0 %v3072
      %3120 = vmatprep.subr.mxu0 0.0
      %3121 = vmatpush2.msra.mxu0 0.0
      %3122 = vmatprep.subr.mxu0 0.0
      %3123 = vmatpush2.msra.mxu0 0.0
      %3124 = vmatprep.subr.mxu0 0.0
      %3125 = vmatpush2.msra.mxu0 0.0
      %3126 = vmatprep.subr.mxu0 0.0
      %3127 = vmatpush2.msra.mxu0 0.0
      %3128 = vmatprep.subr.mxu0 0.0
      %3129 = vmatpush2.msra.mxu0 0.0
      %3130 = vmatprep.subr.mxu0 0.0
      %3131 = vmatpush2.msra.mxu0 0.0
      %3132 = vmatprep.subr.mxu0 0.0
      %3133 = vmatpush2.msra.mxu0 0.0
      %3134 = vmatprep.subr.mxu0 0.0
      %3135 = vmatpush2.msra.mxu0 0.0
      %3136 = vmatprep.subr.mxu0 0.0
      %3137 = vmatpush2.msra.mxu0 0.0
      %3138 = vmatprep.subr.mxu0 0.0
      %3139 = vmatpush2.msra.mxu0 0.0
      %3140 = vmatprep.subr.mxu0 0.0
      %3141 = vmatpush2.msra.mxu0 0.0
      %3142 = vmatprep.subr.mxu0 0.0
      %3143 = vmatpush2.msra.mxu0 0.0
      %3144 = vmatprep.subr.mxu0 0.0
      %3145 = vmatpush2.msra.mxu0 0.0
      %3146 = vmatprep.subr.mxu0 0.0
      %3147 = vmatpush2.msra.mxu0 0.0
      %3148 = vmatprep.subr.mxu0 0.0
      %3149 = vmatpush2.msra.mxu0 0.0
      %3150 = vmatprep.subr.mxu0 0.0
      %3151 = vmatpush2.msra.mxu0 0.0
      %3152 = vmatprep.mubr.f32.mxu0 0.0
      %3153 = vmatmul.mubr.f32.gmra.mxu0 %v2838
      %v3154 = vpop.f32.mrf.mxu0
      %v3155 = vadd.f32 %v3086, %v3154
      %v3156 = vpop.f32.mrf.mxu0
      %3157 = vmatprep.mubr.f32.mxu0 0.0
      %3158 = vmatmul.mubr.f32.gmra.mxu0 %v2841
      %v3159 = vpop.f32.mrf.mxu0
      %v3160 = vadd.f32 %v3086, %v3159
      %v3161 = vpop.f32.mrf.mxu0
      %3162 = vmatprep.mubr.f32.mxu0 0.0
      %3163 = vmatmul.mubr.f32.gmra.mxu0 %v2844
      %v3164 = vpop.f32.mrf.mxu0
      %v3165 = vadd.f32 %v3086, %v3164
      %v3166 = vpop.f32.mrf.mxu0
      %3167 = vmatprep.mubr.f32.mxu0 0.0
      %3168 = vmatmul.mubr.f32.gmra.mxu0 %v2847
      %v3169 = vpop.f32.mrf.mxu0
      %v3170 = vadd.f32 %v3086, %v3169
      %v3171 = vpop.f32.mrf.mxu0
      %3172 = vmatprep.mubr.f32.mxu0 0.0
      %3173 = vmatmul.mubr.f32.gmra.mxu0 %v2850
      %v3174 = vpop.f32.mrf.mxu0
      %v3175 = vadd.f32 %v3086, %v3174
      %v3176 = vpop.f32.mrf.mxu0
      %3177 = vmatprep.mubr.f32.mxu0 0.0
      %3178 = vmatmul.mubr.f32.gmra.mxu0 %v2853
      %v3179 = vpop.f32.mrf.mxu0
      %v3180 = vadd.f32 %v3086, %v3179
      %v3181 = vpop.f32.mrf.mxu0
      %3182 = vmatprep.mubr.f32.mxu0 0.0
      %3183 = vmatmul.mubr.f32.gmra.mxu0 %v2856
      %v3184 = vpop.f32.mrf.mxu0
      %v3185 = vadd.f32 %v3086, %v3184
      %v3186 = vpop.f32.mrf.mxu0
      %3187 = vmatprep.mubr.f32.mxu0 0.0
      %3188 = vmatmul.mubr.f32.gmra.mxu0 %v2859
      %v3189 = vpop.f32.mrf.mxu0
      %v3190 = vadd.f32 %v3086, %v3189
      %v3191 = vpop.f32.mrf.mxu0
      %3192 = vdwg.mxu0
      %3193 = vmatprep.subr.mxu0 0.0
      %3194 = vmatpush1.msra.mxu0 0.0
      %3195 = vmatprep.subr.mxu0 0.0
      %3196 = vmatpush1.msra.mxu0 0.0
      %3197 = vmatprep.subr.mxu0 0.0
      %3198 = vmatpush1.msra.mxu0 0.0
      %3199 = vmatprep.subr.mxu0 0.0
      %3200 = vmatpush1.msra.mxu0 0.0
      %3201 = vmatprep.subr.mxu0 0.0
      %3202 = vmatpush1.msra.mxu0 0.0
      %3203 = vmatprep.subr.mxu0 0.0
      %3204 = vmatpush1.msra.mxu0 0.0
      %3205 = vmatprep.subr.mxu0 0.0
      %3206 = vmatpush1.msra.mxu0 0.0
      %3207 = vmatprep.subr.mxu0 0.0
      %3208 = vmatpush1.msra.mxu0 0.0
      %3209 = vmatprep.subr.mxu0 0.0
      %3210 = vmatpush1.msra.mxu0 0.0
      %3211 = vmatprep.subr.mxu0 0.0
      %3212 = vmatpush1.msra.mxu0 0.0
      %3213 = vmatprep.subr.mxu0 0.0
      %3214 = vmatpush1.msra.mxu0 0.0
      %3215 = vmatprep.subr.mxu0 0.0
      %3216 = vmatpush1.msra.mxu0 0.0
      %3217 = vmatprep.subr.mxu0 0.0
      %3218 = vmatpush1.msra.mxu0 %v3079
      %3219 = vmatprep.subr.mxu0 0.0
      %3220 = vmatpush1.msra.mxu0 %v3078
      %3221 = vmatprep.subr.mxu0 0.0
      %3222 = vmatpush1.msra.mxu0 %v3077
      %3223 = vmatprep.subr.mxu0 0.0
      %3224 = vmatpush1.msra.mxu0 %v3076
      %3225 = vmatprep.subr.mxu0 0.0
      %3226 = vmatpush2.msra.mxu0 0.0
      %3227 = vmatprep.subr.mxu0 0.0
      %3228 = vmatpush2.msra.mxu0 0.0
      %3229 = vmatprep.subr.mxu0 0.0
      %3230 = vmatpush2.msra.mxu0 0.0
      %3231 = vmatprep.subr.mxu0 0.0
      %3232 = vmatpush2.msra.mxu0 0.0
      %3233 = vmatprep.subr.mxu0 0.0
      %3234 = vmatpush2.msra.mxu0 0.0
      %3235 = vmatprep.subr.mxu0 0.0
      %3236 = vmatpush2.msra.mxu0 0.0
      %3237 = vmatprep.subr.mxu0 0.0
      %3238 = vmatpush2.msra.mxu0 0.0
      %3239 = vmatprep.subr.mxu0 0.0
      %3240 = vmatpush2.msra.mxu0 0.0
      %3241 = vmatprep.subr.mxu0 0.0
      %3242 = vmatpush2.msra.mxu0 0.0
      %3243 = vmatprep.subr.mxu0 0.0
      %3244 = vmatpush2.msra.mxu0 0.0
      %3245 = vmatprep.subr.mxu0 0.0
      %3246 = vmatpush2.msra.mxu0 0.0
      %3247 = vmatprep.subr.mxu0 0.0
      %3248 = vmatpush2.msra.mxu0 0.0
      %3249 = vmatprep.subr.mxu0 0.0
      %3250 = vmatpush2.msra.mxu0 0.0
      %3251 = vmatprep.subr.mxu0 0.0
      %3252 = vmatpush2.msra.mxu0 0.0
      %3253 = vmatprep.subr.mxu0 0.0
      %3254 = vmatpush2.msra.mxu0 0.0
      %3255 = vmatprep.subr.mxu0 0.0
      %3256 = vmatpush2.msra.mxu0 0.0
      %3257 = vmatprep.mubr.f32.mxu0 0.0
      %3258 = vmatmul.mubr.f32.gmra.mxu0 %v2838
      %v3259 = vpop.f32.mrf.mxu0
      %v3260 = vadd.f32 0.0, %v3259
      %v3261 = vpop.f32.mrf.mxu0
      %3262 = vmatprep.mubr.f32.mxu0 0.0
      %3263 = vmatmul.mubr.f32.gmra.mxu0 %v2841
      %v3264 = vpop.f32.mrf.mxu0
      %v3265 = vadd.f32 0.0, %v3264
      %v3266 = vpop.f32.mrf.mxu0
      %3267 = vmatprep.mubr.f32.mxu0 0.0
      %3268 = vmatmul.mubr.f32.gmra.mxu0 %v2844
      %v3269 = vpop.f32.mrf.mxu0
      %v3270 = vadd.f32 0.0, %v3269
      %v3271 = vpop.f32.mrf.mxu0
      %3272 = vmatprep.mubr.f32.mxu0 0.0
      %3273 = vmatmul.mubr.f32.gmra.mxu0 %v2847
      %v3274 = vpop.f32.mrf.mxu0
      %v3275 = vadd.f32 0.0, %v3274
      %v3276 = vpop.f32.mrf.mxu0
      %3277 = vmatprep.mubr.f32.mxu0 0.0
      %3278 = vmatmul.mubr.f32.gmra.mxu0 %v2850
      %v3279 = vpop.f32.mrf.mxu0
      %v3280 = vadd.f32 0.0, %v3279
      %v3281 = vpop.f32.mrf.mxu0
      %3282 = vmatprep.mubr.f32.mxu0 0.0
      %3283 = vmatmul.mubr.f32.gmra.mxu0 %v2853
      %v3284 = vpop.f32.mrf.mxu0
      %v3285 = vadd.f32 0.0, %v3284
      %v3286 = vpop.f32.mrf.mxu0
      %3287 = vmatprep.mubr.f32.mxu0 0.0
      %3288 = vmatmul.mubr.f32.gmra.mxu0 %v2856
      %v3289 = vpop.f32.mrf.mxu0
      %v3290 = vadd.f32 0.0, %v3289
      %v3291 = vpop.f32.mrf.mxu0
      %3292 = vmatprep.mubr.f32.mxu0 0.0
      %3293 = vmatmul.mubr.f32.gmra.mxu0 %v2859
      %v3294 = vpop.f32.mrf.mxu0
      %v3295 = vadd.f32 0.0, %v3294
      %v3296 = vpop.f32.mrf.mxu0
      %3297 = vdwg.mxu0
      %v3298 = vsub.f32 %v3155, %v3260
      %v3299 = vsub.f32 %v3160, %v3265
      %v3300 = vsub.f32 %v3165, %v3270
      %v3301 = vsub.f32 %v3170, %v3275
      %v3302 = vsub.f32 %v3175, %v3280
      %v3303 = vsub.f32 %v3180, %v3285
      %v3304 = vsub.f32 %v3185, %v3290
      %v3305 = vsub.f32 %v3190, %v3295
      %v3306 = vmul.f32 %v2825, %v2825
      %v3307 = vmul.f32 %v2826, %v2826
      %v3308 = vmul.f32 %v2827, %v2827
      %v3309 = vmul.f32 %v2828, %v2828
      %v3310 = vmul.f32 %v2829, %v2829
      %v3311 = vmul.f32 %v2830, %v2830
      %v3312 = vmul.f32 %v2831, %v2831
      %v3313 = vmul.f32 %v2832, %v2832
      %v3314 = vsel %vm425, %v3306, 0.0
      %3315 = vadd.xlane.f32.xlu0 %v3314
      %v3316 = vpop.xlane.xlu0 %3315
      %v3317 = vsel %vm425, %v3307, 0.0
      %3318 = vadd.xlane.f32.xlu0 %v3317
      %v3319 = vpop.xlane.xlu0 %3318
      %v3320 = vsel %vm425, %v3308, 0.0
      %3321 = vadd.xlane.f32.xlu0 %v3320
      %v3322 = vpop.xlane.xlu0 %3321
      %v3323 = vsel %vm425, %v3309, 0.0
      %3324 = vadd.xlane.f32.xlu0 %v3323
      %v3325 = vpop.xlane.xlu0 %3324
      %v3326 = vsel %vm425, %v3310, 0.0
      %3327 = vadd.xlane.f32.xlu0 %v3326
      %v3328 = vpop.xlane.xlu0 %3327
      %v3329 = vsel %vm425, %v3311, 0.0
      %3330 = vadd.xlane.f32.xlu0 %v3329
      %v3331 = vpop.xlane.xlu0 %3330
      %v3332 = vsel %vm425, %v3312, 0.0
      %3333 = vadd.xlane.f32.xlu0 %v3332
      %v3334 = vpop.xlane.xlu0 %3333
      %v3335 = vsel %vm425, %v3313, 0.0
      %3336 = vadd.xlane.f32.xlu0 %v3335
      %v3337 = vpop.xlane.xlu0 %3336
      %v3338 = vmul.f32 %v2825, -2.0
      %v3339 = vmul.f32 %v2826, -2.0
      %v3340 = vmul.f32 %v2827, -2.0
      %v3341 = vmul.f32 %v2828, -2.0
      %v3342 = vmul.f32 %v2829, -2.0
      %v3343 = vmul.f32 %v2830, -2.0
      %v3344 = vmul.f32 %v2831, -2.0
      %v3345 = vmul.f32 %v2832, -2.0
      %v3346 = vsel %vm425, %v3338, 1.0
      %v3347 = vsel %vm425, %v3339, 1.0
      %v3348 = vsel %vm425, %v3340, 1.0
      %v3349 = vsel %vm425, %v3341, 1.0
      %v3350 = vsel %vm425, %v3342, 1.0
      %v3351 = vsel %vm425, %v3343, 1.0
      %v3352 = vsel %vm425, %v3344, 1.0
      %v3353 = vsel %vm425, %v3345, 1.0
      %v3354 = vsel %vm425, %v2825, %v3316
      %v3355 = vsel %vm425, %v2826, %v3319
      %v3356 = vsel %vm425, %v2827, %v3322
      %v3357 = vsel %vm425, %v2828, %v3325
      %v3358 = vsel %vm425, %v2829, %v3328
      %v3359 = vsel %vm425, %v2830, %v3331
      %v3360 = vsel %vm425, %v2831, %v3334
      %v3361 = vsel %vm425, %v2832, %v3337
      %v3363 = vsel %vm724, %v3346, 0
      %v3366 = vsel %vm724, %v3347, 0
      %v3369 = vsel %vm724, %v3348, 0
      %v3372 = vsel %vm724, %v3349, 0
      %v3375 = vsel %vm724, %v3350, 0
      %v3378 = vsel %vm724, %v3351, 0
      %v3381 = vsel %vm724, %v3352, 0
      %v3384 = vsel %vm724, %v3353, 0
      %v3387 = vsel %vm724, %v3354, 0
      %v3390 = vsel %vm724, %v3355, 0
      %v3393 = vsel %vm724, %v3356, 0
      %v3396 = vsel %vm724, %v3357, 0
      %v3399 = vsel %vm724, %v3358, 0
      %v3402 = vsel %vm724, %v3359, 0
      %v3405 = vsel %vm724, %v3360, 0
      %v3408 = vsel %vm724, %v3361, 0
      %3410 = vmatprep.subr.mxu0 0.0
      %3411 = vmatpush1.xpose.msra.mxu0 0.0
      %3412 = vmatprep.subr.mxu0 0.0
      %3413 = vmatpush1.xpose.msra.mxu0 0.0
      %3414 = vmatprep.subr.mxu0 0.0
      %3415 = vmatpush1.xpose.msra.mxu0 0.0
      %3416 = vmatprep.subr.mxu0 0.0
      %3417 = vmatpush1.xpose.msra.mxu0 0.0
      %3418 = vmatprep.subr.mxu0 0.0
      %3419 = vmatpush1.xpose.msra.mxu0 0.0
      %3420 = vmatprep.subr.mxu0 0.0
      %3421 = vmatpush1.xpose.msra.mxu0 0.0
      %3422 = vmatprep.subr.mxu0 0.0
      %3423 = vmatpush1.xpose.msra.mxu0 0.0
      %3424 = vmatprep.subr.mxu0 0.0
      %3425 = vmatpush1.xpose.msra.mxu0 0.0
      %3426 = vmatprep.subr.mxu0 0.0
      %3427 = vmatpush1.xpose.msra.mxu0 %v3408
      %3428 = vmatprep.subr.mxu0 0.0
      %3429 = vmatpush1.xpose.msra.mxu0 %v3405
      %3430 = vmatprep.subr.mxu0 0.0
      %3431 = vmatpush1.xpose.msra.mxu0 %v3402
      %3432 = vmatprep.subr.mxu0 0.0
      %3433 = vmatpush1.xpose.msra.mxu0 %v3399
      %3434 = vmatprep.subr.mxu0 0.0
      %3435 = vmatpush1.xpose.msra.mxu0 %v3396
      %3436 = vmatprep.subr.mxu0 0.0
      %3437 = vmatpush1.xpose.msra.mxu0 %v3393
      %3438 = vmatprep.subr.mxu0 0.0
      %3439 = vmatpush1.xpose.msra.mxu0 %v3390
      %3440 = vmatprep.subr.mxu0 0.0
      %3441 = vmatpush1.xpose.msra.mxu0 %v3387
      %3442 = vmatprep.subr.mxu0 0.0
      %3443 = vmatpush2.xpose.msra.mxu0 0.0
      %3444 = vmatprep.subr.mxu0 0.0
      %3445 = vmatpush2.xpose.msra.mxu0 0.0
      %3446 = vmatprep.subr.mxu0 0.0
      %3447 = vmatpush2.xpose.msra.mxu0 0.0
      %3448 = vmatprep.subr.mxu0 0.0
      %3449 = vmatpush2.xpose.msra.mxu0 0.0
      %3450 = vmatprep.subr.mxu0 0.0
      %3451 = vmatpush2.xpose.msra.mxu0 0.0
      %3452 = vmatprep.subr.mxu0 0.0
      %3453 = vmatpush2.xpose.msra.mxu0 0.0
      %3454 = vmatprep.subr.mxu0 0.0
      %3455 = vmatpush2.xpose.msra.mxu0 0.0
      %3456 = vmatprep.subr.mxu0 0.0
      %3457 = vmatpush2.xpose.msra.mxu0 0.0
      %3458 = vmatprep.subr.mxu0 0.0
      %3459 = vmatpush2.xpose.msra.mxu0 0.0
      %3460 = vmatprep.subr.mxu0 0.0
      %3461 = vmatpush2.xpose.msra.mxu0 0.0
      %3462 = vmatprep.subr.mxu0 0.0
      %3463 = vmatpush2.xpose.msra.mxu0 0.0
      %3464 = vmatprep.subr.mxu0 0.0
      %3465 = vmatpush2.xpose.msra.mxu0 0.0
      %3466 = vmatprep.subr.mxu0 0.0
      %3467 = vmatpush2.xpose.msra.mxu0 0.0
      %3468 = vmatprep.subr.mxu0 0.0
      %3469 = vmatpush2.xpose.msra.mxu0 0.0
      %3470 = vmatprep.subr.mxu0 0.0
      %3471 = vmatpush2.xpose.msra.mxu0 0.0
      %3472 = vmatprep.subr.mxu0 0.0
      %3473 = vmatpush2.xpose.msra.mxu0 0.0
      %3474 = vmatprep.mubr.f32.mxu0 0.0
      %3475 = vmatmul.mubr.f32.gmra.mxu0 %v3363
      %v3476 = vpop.f32.mrf.mxu0
      %v3477 = vadd.f32 0.0, %v3476
      %v3478 = vpop.f32.mrf.mxu0
      %3479 = vmatprep.mubr.f32.mxu0 0.0
      %3480 = vmatmul.mubr.f32.gmra.mxu0 %v3366
      %v3481 = vpop.f32.mrf.mxu0
      %v3482 = vadd.f32 0.0, %v3481
      %v3483 = vpop.f32.mrf.mxu0
      %3484 = vmatprep.mubr.f32.mxu0 0.0
      %3485 = vmatmul.mubr.f32.gmra.mxu0 %v3369
      %v3486 = vpop.f32.mrf.mxu0
      %v3487 = vadd.f32 0.0, %v3486
      %v3488 = vpop.f32.mrf.mxu0
      %3489 = vmatprep.mubr.f32.mxu0 0.0
      %3490 = vmatmul.mubr.f32.gmra.mxu0 %v3372
      %v3491 = vpop.f32.mrf.mxu0
      %v3492 = vadd.f32 0.0, %v3491
      %v3493 = vpop.f32.mrf.mxu0
      %3494 = vmatprep.mubr.f32.mxu0 0.0
      %3495 = vmatmul.mubr.f32.gmra.mxu0 %v3375
      %v3496 = vpop.f32.mrf.mxu0
      %v3497 = vadd.f32 0.0, %v3496
      %v3498 = vpop.f32.mrf.mxu0
      %3499 = vmatprep.mubr.f32.mxu0 0.0
      %3500 = vmatmul.mubr.f32.gmra.mxu0 %v3378
      %v3501 = vpop.f32.mrf.mxu0
      %v3502 = vadd.f32 0.0, %v3501
      %v3503 = vpop.f32.mrf.mxu0
      %3504 = vmatprep.mubr.f32.mxu0 0.0
      %3505 = vmatmul.mubr.f32.gmra.mxu0 %v3381
      %v3506 = vpop.f32.mrf.mxu0
      %v3507 = vadd.f32 0.0, %v3506
      %v3508 = vpop.f32.mrf.mxu0
      %3509 = vmatprep.mubr.f32.mxu0 0.0
      %3510 = vmatmul.mubr.f32.gmra.mxu0 %v3384
      %v3511 = vpop.f32.mrf.mxu0
      %v3512 = vadd.f32 0.0, %v3511
      %v3513 = vpop.f32.mrf.mxu0
      %3514 = vdwg.mxu0
      %v3515 = vsel %vm878, %v3477, inf
      %3516 = vmin.xlane.f32.xlu0 %v3515
      %v3517 = vpop.xlane.xlu0 %3516
      %v3518 = vsel %vm878, %v3482, inf
      %3519 = vmin.xlane.f32.xlu0 %v3518
      %v3520 = vpop.xlane.xlu0 %3519
      %v3521 = vsel %vm878, %v3487, inf
      %3522 = vmin.xlane.f32.xlu0 %v3521
      %v3523 = vpop.xlane.xlu0 %3522
      %v3524 = vsel %vm878, %v3492, inf
      %3525 = vmin.xlane.f32.xlu0 %v3524
      %v3526 = vpop.xlane.xlu0 %3525
      %v3527 = vsel %vm878, %v3497, inf
      %3528 = vmin.xlane.f32.xlu0 %v3527
      %v3529 = vpop.xlane.xlu0 %3528
      %v3530 = vsel %vm878, %v3502, inf
      %3531 = vmin.xlane.f32.xlu0 %v3530
      %v3532 = vpop.xlane.xlu0 %3531
      %v3533 = vsel %vm878, %v3507, inf
      %3534 = vmin.xlane.f32.xlu0 %v3533
      %v3535 = vpop.xlane.xlu0 %3534
      %v3536 = vsel %vm878, %v3512, inf
      %3537 = vmin.xlane.f32.xlu0 %v3536
      %v3538 = vpop.xlane.xlu0 %3537
      %vm3539 = vcmp.le.f32.partialorder %v3477, %v3517
      %vm3540 = vcmp.le.f32.partialorder %v3482, %v3520
      %vm3541 = vcmp.le.f32.partialorder %v3487, %v3523
      %vm3542 = vcmp.le.f32.partialorder %v3492, %v3526
      %vm3543 = vcmp.le.f32.partialorder %v3497, %v3529
      %vm3544 = vcmp.le.f32.partialorder %v3502, %v3532
      %vm3545 = vcmp.le.f32.partialorder %v3507, %v3535
      %vm3546 = vcmp.le.f32.partialorder %v3512, %v3538
      %v3547 = vsel %vm3539, %v254, 64.0
      %v3548 = vsel %vm3540, %v254, 64.0
      %v3549 = vsel %vm3541, %v254, 64.0
      %v3550 = vsel %vm3542, %v254, 64.0
      %v3551 = vsel %vm3543, %v254, 64.0
      %v3552 = vsel %vm3544, %v254, 64.0
      %v3553 = vsel %vm3545, %v254, 64.0
      %v3554 = vsel %vm3546, %v254, 64.0
      %v3555 = vsel %vm878, %v3547, inf
      %3556 = vmin.xlane.f32.xlu0 %v3555
      %v3557 = vpop.xlane.xlu0 %3556
      %v3558 = vsel %vm878, %v3548, inf
      %3559 = vmin.xlane.f32.xlu0 %v3558
      %v3560 = vpop.xlane.xlu0 %3559
      %v3561 = vsel %vm878, %v3549, inf
      %3562 = vmin.xlane.f32.xlu0 %v3561
      %v3563 = vpop.xlane.xlu0 %3562
      %v3564 = vsel %vm878, %v3550, inf
      %3565 = vmin.xlane.f32.xlu0 %v3564
      %v3566 = vpop.xlane.xlu0 %3565
      %v3567 = vsel %vm878, %v3551, inf
      %3568 = vmin.xlane.f32.xlu0 %v3567
      %v3569 = vpop.xlane.xlu0 %3568
      %v3570 = vsel %vm878, %v3552, inf
      %3571 = vmin.xlane.f32.xlu0 %v3570
      %v3572 = vpop.xlane.xlu0 %3571
      %v3573 = vsel %vm878, %v3553, inf
      %3574 = vmin.xlane.f32.xlu0 %v3573
      %v3575 = vpop.xlane.xlu0 %3574
      %v3576 = vsel %vm878, %v3554, inf
      %3577 = vmin.xlane.f32.xlu0 %v3576
      %v3578 = vpop.xlane.xlu0 %3577
      %vm3579 = vcmp.eq.f32.partialorder %v254, %v3557
      %vm3580 = vcmp.eq.f32.partialorder %v254, %v3560
      %vm3581 = vcmp.eq.f32.partialorder %v254, %v3563
      %vm3582 = vcmp.eq.f32.partialorder %v254, %v3566
      %vm3583 = vcmp.eq.f32.partialorder %v254, %v3569
      %vm3584 = vcmp.eq.f32.partialorder %v254, %v3572
      %vm3585 = vcmp.eq.f32.partialorder %v254, %v3575
      %vm3586 = vcmp.eq.f32.partialorder %v254, %v3578
      %v3587 = vsel %vm3579, 1, 0
      %v3588 = vsel %vm3580, 1, 0
      %v3589 = vsel %vm3581, 1, 0
      %v3590 = vsel %vm3582, 1, 0
      %v3591 = vsel %vm3583, 1, 0
      %v3592 = vsel %vm3584, 1, 0
      %v3593 = vsel %vm3585, 1, 0
      %v3594 = vsel %vm3586, 1, 0
      %v3595 = vcvt.s32.f32 %v3587
      %v3596 = vcvt.s32.f32 %v3588
      %v3597 = vcvt.s32.f32 %v3589
      %v3598 = vcvt.s32.f32 %v3590
      %v3599 = vcvt.s32.f32 %v3591
      %v3600 = vcvt.s32.f32 %v3592
      %v3601 = vcvt.s32.f32 %v3593
      %v3602 = vcvt.s32.f32 %v3594
      %v3603 = vsel %vm3579, inf, %v3477
      %v3604 = vsel %vm3580, inf, %v3482
      %v3605 = vsel %vm3581, inf, %v3487
      %v3606 = vsel %vm3582, inf, %v3492
      %v3607 = vsel %vm3583, inf, %v3497
      %v3608 = vsel %vm3584, inf, %v3502
      %v3609 = vsel %vm3585, inf, %v3507
      %v3610 = vsel %vm3586, inf, %v3512
      %v3611 = vsel %vm878, %v3603, inf
      %3612 = vmin.xlane.f32.xlu0 %v3611
      %v3613 = vpop.xlane.xlu0 %3612
      %v3614 = vsel %vm878, %v3604, inf
      %3615 = vmin.xlane.f32.xlu0 %v3614
      %v3616 = vpop.xlane.xlu0 %3615
      %v3617 = vsel %vm878, %v3605, inf
      %3618 = vmin.xlane.f32.xlu0 %v3617
      %v3619 = vpop.xlane.xlu0 %3618
      %v3620 = vsel %vm878, %v3606, inf
      %3621 = vmin.xlane.f32.xlu0 %v3620
      %v3622 = vpop.xlane.xlu0 %3621
      %v3623 = vsel %vm878, %v3607, inf
      %3624 = vmin.xlane.f32.xlu0 %v3623
      %v3625 = vpop.xlane.xlu0 %3624
      %v3626 = vsel %vm878, %v3608, inf
      %3627 = vmin.xlane.f32.xlu0 %v3626
      %v3628 = vpop.xlane.xlu0 %3627
      %v3629 = vsel %vm878, %v3609, inf
      %3630 = vmin.xlane.f32.xlu0 %v3629
      %v3631 = vpop.xlane.xlu0 %3630
      %v3632 = vsel %vm878, %v3610, inf
      %3633 = vmin.xlane.f32.xlu0 %v3632
      %v3634 = vpop.xlane.xlu0 %3633
      %vm3635 = vcmp.le.f32.partialorder %v3603, %v3613
      %vm3636 = vcmp.le.f32.partialorder %v3604, %v3616
      %vm3637 = vcmp.le.f32.partialorder %v3605, %v3619
      %vm3638 = vcmp.le.f32.partialorder %v3606, %v3622
      %vm3639 = vcmp.le.f32.partialorder %v3607, %v3625
      %vm3640 = vcmp.le.f32.partialorder %v3608, %v3628
      %vm3641 = vcmp.le.f32.partialorder %v3609, %v3631
      %vm3642 = vcmp.le.f32.partialorder %v3610, %v3634
      %v3643 = vsel %vm3635, %v254, 64.0
      %v3644 = vsel %vm3636, %v254, 64.0
      %v3645 = vsel %vm3637, %v254, 64.0
      %v3646 = vsel %vm3638, %v254, 64.0
      %v3647 = vsel %vm3639, %v254, 64.0
      %v3648 = vsel %vm3640, %v254, 64.0
      %v3649 = vsel %vm3641, %v254, 64.0
      %v3650 = vsel %vm3642, %v254, 64.0
      %v3651 = vsel %vm878, %v3643, inf
      %3652 = vmin.xlane.f32.xlu0 %v3651
      %v3653 = vpop.xlane.xlu0 %3652
      %v3654 = vsel %vm878, %v3644, inf
      %3655 = vmin.xlane.f32.xlu0 %v3654
      %v3656 = vpop.xlane.xlu0 %3655
      %v3657 = vsel %vm878, %v3645, inf
      %3658 = vmin.xlane.f32.xlu0 %v3657
      %v3659 = vpop.xlane.xlu0 %3658
      %v3660 = vsel %vm878, %v3646, inf
      %3661 = vmin.xlane.f32.xlu0 %v3660
      %v3662 = vpop.xlane.xlu0 %3661
      %v3663 = vsel %vm878, %v3647, inf
      %3664 = vmin.xlane.f32.xlu0 %v3663
      %v3665 = vpop.xlane.xlu0 %3664
      %v3666 = vsel %vm878, %v3648, inf
      %3667 = vmin.xlane.f32.xlu0 %v3666
      %v3668 = vpop.xlane.xlu0 %3667
      %v3669 = vsel %vm878, %v3649, inf
      %3670 = vmin.xlane.f32.xlu0 %v3669
      %v3671 = vpop.xlane.xlu0 %3670
      %v3672 = vsel %vm878, %v3650, inf
      %3673 = vmin.xlane.f32.xlu0 %v3672
      %v3674 = vpop.xlane.xlu0 %3673
      %vm3675 = vcmp.eq.f32.partialorder %v254, %v3653
      %vm3676 = vcmp.eq.f32.partialorder %v254, %v3656
      %vm3677 = vcmp.eq.f32.partialorder %v254, %v3659
      %vm3678 = vcmp.eq.f32.partialorder %v254, %v3662
      %vm3679 = vcmp.eq.f32.partialorder %v254, %v3665
      %vm3680 = vcmp.eq.f32.partialorder %v254, %v3668
      %vm3681 = vcmp.eq.f32.partialorder %v254, %v3671
      %vm3682 = vcmp.eq.f32.partialorder %v254, %v3674
      %v3683 = vsel %vm3675, 1, 0
      %v3684 = vsel %vm3676, 1, 0
      %v3685 = vsel %vm3677, 1, 0
      %v3686 = vsel %vm3678, 1, 0
      %v3687 = vsel %vm3679, 1, 0
      %v3688 = vsel %vm3680, 1, 0
      %v3689 = vsel %vm3681, 1, 0
      %v3690 = vsel %vm3682, 1, 0
      %v3691 = vcvt.s32.f32 %v3683
      %v3692 = vcvt.s32.f32 %v3684
      %v3693 = vcvt.s32.f32 %v3685
      %v3694 = vcvt.s32.f32 %v3686
      %v3695 = vcvt.s32.f32 %v3687
      %v3696 = vcvt.s32.f32 %v3688
      %v3697 = vcvt.s32.f32 %v3689
      %v3698 = vcvt.s32.f32 %v3690
      %v3699 = vsel %vm3675, inf, %v3603
      %v3700 = vsel %vm3676, inf, %v3604
      %v3701 = vsel %vm3677, inf, %v3605
      %v3702 = vsel %vm3678, inf, %v3606
      %v3703 = vsel %vm3679, inf, %v3607
      %v3704 = vsel %vm3680, inf, %v3608
      %v3705 = vsel %vm3681, inf, %v3609
      %v3706 = vsel %vm3682, inf, %v3610
      %v3707 = vsel %vm878, %v3699, inf
      %3708 = vmin.xlane.f32.xlu0 %v3707
      %v3709 = vpop.xlane.xlu0 %3708
      %v3710 = vsel %vm878, %v3700, inf
      %3711 = vmin.xlane.f32.xlu0 %v3710
      %v3712 = vpop.xlane.xlu0 %3711
      %v3713 = vsel %vm878, %v3701, inf
      %3714 = vmin.xlane.f32.xlu0 %v3713
      %v3715 = vpop.xlane.xlu0 %3714
      %v3716 = vsel %vm878, %v3702, inf
      %3717 = vmin.xlane.f32.xlu0 %v3716
      %v3718 = vpop.xlane.xlu0 %3717
      %v3719 = vsel %vm878, %v3703, inf
      %3720 = vmin.xlane.f32.xlu0 %v3719
      %v3721 = vpop.xlane.xlu0 %3720
      %v3722 = vsel %vm878, %v3704, inf
      %3723 = vmin.xlane.f32.xlu0 %v3722
      %v3724 = vpop.xlane.xlu0 %3723
      %v3725 = vsel %vm878, %v3705, inf
      %3726 = vmin.xlane.f32.xlu0 %v3725
      %v3727 = vpop.xlane.xlu0 %3726
      %v3728 = vsel %vm878, %v3706, inf
      %3729 = vmin.xlane.f32.xlu0 %v3728
      %v3730 = vpop.xlane.xlu0 %3729
      %vm3731 = vcmp.le.f32.partialorder %v3699, %v3709
      %vm3732 = vcmp.le.f32.partialorder %v3700, %v3712
      %vm3733 = vcmp.le.f32.partialorder %v3701, %v3715
      %vm3734 = vcmp.le.f32.partialorder %v3702, %v3718
      %vm3735 = vcmp.le.f32.partialorder %v3703, %v3721
      %vm3736 = vcmp.le.f32.partialorder %v3704, %v3724
      %vm3737 = vcmp.le.f32.partialorder %v3705, %v3727
      %vm3738 = vcmp.le.f32.partialorder %v3706, %v3730
      %v3739 = vsel %vm3731, %v254, 64.0
      %v3740 = vsel %vm3732, %v254, 64.0
      %v3741 = vsel %vm3733, %v254, 64.0
      %v3742 = vsel %vm3734, %v254, 64.0
      %v3743 = vsel %vm3735, %v254, 64.0
      %v3744 = vsel %vm3736, %v254, 64.0
      %v3745 = vsel %vm3737, %v254, 64.0
      %v3746 = vsel %vm3738, %v254, 64.0
      %v3747 = vsel %vm878, %v3739, inf
      %3748 = vmin.xlane.f32.xlu0 %v3747
      %v3749 = vpop.xlane.xlu0 %3748
      %v3750 = vsel %vm878, %v3740, inf
      %3751 = vmin.xlane.f32.xlu0 %v3750
      %v3752 = vpop.xlane.xlu0 %3751
      %v3753 = vsel %vm878, %v3741, inf
      %3754 = vmin.xlane.f32.xlu0 %v3753
      %v3755 = vpop.xlane.xlu0 %3754
      %v3756 = vsel %vm878, %v3742, inf
      %3757 = vmin.xlane.f32.xlu0 %v3756
      %v3758 = vpop.xlane.xlu0 %3757
      %v3759 = vsel %vm878, %v3743, inf
      %3760 = vmin.xlane.f32.xlu0 %v3759
      %v3761 = vpop.xlane.xlu0 %3760
      %v3762 = vsel %vm878, %v3744, inf
      %3763 = vmin.xlane.f32.xlu0 %v3762
      %v3764 = vpop.xlane.xlu0 %3763
      %v3765 = vsel %vm878, %v3745, inf
      %3766 = vmin.xlane.f32.xlu0 %v3765
      %v3767 = vpop.xlane.xlu0 %3766
      %v3768 = vsel %vm878, %v3746, inf
      %3769 = vmin.xlane.f32.xlu0 %v3768
      %v3770 = vpop.xlane.xlu0 %3769
      %vm3771 = vcmp.eq.f32.partialorder %v254, %v3749
      %vm3772 = vcmp.eq.f32.partialorder %v254, %v3752
      %vm3773 = vcmp.eq.f32.partialorder %v254, %v3755
      %vm3774 = vcmp.eq.f32.partialorder %v254, %v3758
      %vm3775 = vcmp.eq.f32.partialorder %v254, %v3761
      %vm3776 = vcmp.eq.f32.partialorder %v254, %v3764
      %vm3777 = vcmp.eq.f32.partialorder %v254, %v3767
      %vm3778 = vcmp.eq.f32.partialorder %v254, %v3770
      %v3779 = vsel %vm3771, 1, 0
      %v3780 = vsel %vm3772, 1, 0
      %v3781 = vsel %vm3773, 1, 0
      %v3782 = vsel %vm3774, 1, 0
      %v3783 = vsel %vm3775, 1, 0
      %v3784 = vsel %vm3776, 1, 0
      %v3785 = vsel %vm3777, 1, 0
      %v3786 = vsel %vm3778, 1, 0
      %v3787 = vcvt.s32.f32 %v3779
      %v3788 = vcvt.s32.f32 %v3780
      %v3789 = vcvt.s32.f32 %v3781
      %v3790 = vcvt.s32.f32 %v3782
      %v3791 = vcvt.s32.f32 %v3783
      %v3792 = vcvt.s32.f32 %v3784
      %v3793 = vcvt.s32.f32 %v3785
      %v3794 = vcvt.s32.f32 %v3786
      %v3795 = vsel %vm3771, inf, %v3699
      %v3796 = vsel %vm3772, inf, %v3700
      %v3797 = vsel %vm3773, inf, %v3701
      %v3798 = vsel %vm3774, inf, %v3702
      %v3799 = vsel %vm3775, inf, %v3703
      %v3800 = vsel %vm3776, inf, %v3704
      %v3801 = vsel %vm3777, inf, %v3705
      %v3802 = vsel %vm3778, inf, %v3706
      %v3803 = vsel %vm878, %v3795, inf
      %3804 = vmin.xlane.f32.xlu0 %v3803
      %v3805 = vpop.xlane.xlu0 %3804
      %v3806 = vsel %vm878, %v3796, inf
      %3807 = vmin.xlane.f32.xlu0 %v3806
      %v3808 = vpop.xlane.xlu0 %3807
      %v3809 = vsel %vm878, %v3797, inf
      %3810 = vmin.xlane.f32.xlu0 %v3809
      %v3811 = vpop.xlane.xlu0 %3810
      %v3812 = vsel %vm878, %v3798, inf
      %3813 = vmin.xlane.f32.xlu0 %v3812
      %v3814 = vpop.xlane.xlu0 %3813
      %v3815 = vsel %vm878, %v3799, inf
      %3816 = vmin.xlane.f32.xlu0 %v3815
      %v3817 = vpop.xlane.xlu0 %3816
      %v3818 = vsel %vm878, %v3800, inf
      %3819 = vmin.xlane.f32.xlu0 %v3818
      %v3820 = vpop.xlane.xlu0 %3819
      %v3821 = vsel %vm878, %v3801, inf
      %3822 = vmin.xlane.f32.xlu0 %v3821
      %v3823 = vpop.xlane.xlu0 %3822
      %v3824 = vsel %vm878, %v3802, inf
      %3825 = vmin.xlane.f32.xlu0 %v3824
      %v3826 = vpop.xlane.xlu0 %3825
      %vm3827 = vcmp.le.f32.partialorder %v3795, %v3805
      %vm3828 = vcmp.le.f32.partialorder %v3796, %v3808
      %vm3829 = vcmp.le.f32.partialorder %v3797, %v3811
      %vm3830 = vcmp.le.f32.partialorder %v3798, %v3814
      %vm3831 = vcmp.le.f32.partialorder %v3799, %v3817
      %vm3832 = vcmp.le.f32.partialorder %v3800, %v3820
      %vm3833 = vcmp.le.f32.partialorder %v3801, %v3823
      %vm3834 = vcmp.le.f32.partialorder %v3802, %v3826
      %v3835 = vsel %vm3827, %v254, 64.0
      %v3836 = vsel %vm3828, %v254, 64.0
      %v3837 = vsel %vm3829, %v254, 64.0
      %v3838 = vsel %vm3830, %v254, 64.0
      %v3839 = vsel %vm3831, %v254, 64.0
      %v3840 = vsel %vm3832, %v254, 64.0
      %v3841 = vsel %vm3833, %v254, 64.0
      %v3842 = vsel %vm3834, %v254, 64.0
      %v3843 = vsel %vm878, %v3835, inf
      %3844 = vmin.xlane.f32.xlu0 %v3843
      %v3845 = vpop.xlane.xlu0 %3844
      %v3846 = vsel %vm878, %v3836, inf
      %3847 = vmin.xlane.f32.xlu0 %v3846
      %v3848 = vpop.xlane.xlu0 %3847
      %v3849 = vsel %vm878, %v3837, inf
      %3850 = vmin.xlane.f32.xlu0 %v3849
      %v3851 = vpop.xlane.xlu0 %3850
      %v3852 = vsel %vm878, %v3838, inf
      %3853 = vmin.xlane.f32.xlu0 %v3852
      %v3854 = vpop.xlane.xlu0 %3853
      %v3855 = vsel %vm878, %v3839, inf
      %3856 = vmin.xlane.f32.xlu0 %v3855
      %v3857 = vpop.xlane.xlu0 %3856
      %v3858 = vsel %vm878, %v3840, inf
      %3859 = vmin.xlane.f32.xlu0 %v3858
      %v3860 = vpop.xlane.xlu0 %3859
      %v3861 = vsel %vm878, %v3841, inf
      %3862 = vmin.xlane.f32.xlu0 %v3861
      %v3863 = vpop.xlane.xlu0 %3862
      %v3864 = vsel %vm878, %v3842, inf
      %3865 = vmin.xlane.f32.xlu0 %v3864
      %v3866 = vpop.xlane.xlu0 %3865
      %vm3867 = vcmp.eq.f32.partialorder %v254, %v3845
      %vm3868 = vcmp.eq.f32.partialorder %v254, %v3848
      %vm3869 = vcmp.eq.f32.partialorder %v254, %v3851
      %vm3870 = vcmp.eq.f32.partialorder %v254, %v3854
      %vm3871 = vcmp.eq.f32.partialorder %v254, %v3857
      %vm3872 = vcmp.eq.f32.partialorder %v254, %v3860
      %vm3873 = vcmp.eq.f32.partialorder %v254, %v3863
      %vm3874 = vcmp.eq.f32.partialorder %v254, %v3866
      %v3875 = vsel %vm3867, 1, 0
      %v3876 = vsel %vm3868, 1, 0
      %v3877 = vsel %vm3869, 1, 0
      %v3878 = vsel %vm3870, 1, 0
      %v3879 = vsel %vm3871, 1, 0
      %v3880 = vsel %vm3872, 1, 0
      %v3881 = vsel %vm3873, 1, 0
      %v3882 = vsel %vm3874, 1, 0
      %v3883 = vcvt.s32.f32 %v3875
      %v3884 = vcvt.s32.f32 %v3876
      %v3885 = vcvt.s32.f32 %v3877
      %v3886 = vcvt.s32.f32 %v3878
      %v3887 = vcvt.s32.f32 %v3879
      %v3888 = vcvt.s32.f32 %v3880
      %v3889 = vcvt.s32.f32 %v3881
      %v3890 = vcvt.s32.f32 %v3882
      %v3892 = vsel %vm878, %v3595, 0
      %v3895 = vsel %vm878, %v3596, 0
      %v3898 = vsel %vm878, %v3597, 0
      %v3901 = vsel %vm878, %v3598, 0
      %v3904 = vsel %vm878, %v3599, 0
      %v3907 = vsel %vm878, %v3600, 0
      %v3910 = vsel %vm878, %v3601, 0
      %v3913 = vsel %vm878, %v3602, 0
      %v3916 = vsel %vm878, %v3691, 0
      %v3919 = vsel %vm878, %v3692, 0
      %v3922 = vsel %vm878, %v3693, 0
      %v3925 = vsel %vm878, %v3694, 0
      %v3928 = vsel %vm878, %v3695, 0
      %v3931 = vsel %vm878, %v3696, 0
      %v3934 = vsel %vm878, %v3697, 0
      %v3937 = vsel %vm878, %v3698, 0
      %v3940 = vsel %vm878, %v3787, 0
      %v3943 = vsel %vm878, %v3788, 0
      %v3946 = vsel %vm878, %v3789, 0
      %v3949 = vsel %vm878, %v3790, 0
      %v3952 = vsel %vm878, %v3791, 0
      %v3955 = vsel %vm878, %v3792, 0
      %v3958 = vsel %vm878, %v3793, 0
      %v3961 = vsel %vm878, %v3794, 0
      %v3964 = vsel %vm878, %v3883, 0
      %v3967 = vsel %vm878, %v3884, 0
      %v3970 = vsel %vm878, %v3885, 0
      %v3973 = vsel %vm878, %v3886, 0
      %v3976 = vsel %vm878, %v3887, 0
      %v3979 = vsel %vm878, %v3888, 0
      %v3982 = vsel %vm878, %v3889, 0
      %v3985 = vsel %vm878, %v3890, 0
      %3987 = vmatprep.subr.mxu0 0.0
      %3988 = vmatpush1.msra.mxu0 0.0
      %3989 = vmatprep.subr.mxu0 0.0
      %3990 = vmatpush1.msra.mxu0 0.0
      %3991 = vmatprep.subr.mxu0 0.0
      %3992 = vmatpush1.msra.mxu0 0.0
      %3993 = vmatprep.subr.mxu0 0.0
      %3994 = vmatpush1.msra.mxu0 0.0
      %3995 = vmatprep.subr.mxu0 0.0
      %3996 = vmatpush1.msra.mxu0 0.0
      %3997 = vmatprep.subr.mxu0 0.0
      %3998 = vmatpush1.msra.mxu0 0.0
      %3999 = vmatprep.subr.mxu0 0.0
      %4000 = vmatpush1.msra.mxu0 0.0
      %4001 = vmatprep.subr.mxu0 0.0
      %4002 = vmatpush1.msra.mxu0 0.0
      %4003 = vmatprep.subr.mxu0 0.0
      %4004 = vmatpush1.msra.mxu0 %v3295
      %4005 = vmatprep.subr.mxu0 0.0
      %4006 = vmatpush1.msra.mxu0 %v3290
      %4007 = vmatprep.subr.mxu0 0.0
      %4008 = vmatpush1.msra.mxu0 %v3285
      %4009 = vmatprep.subr.mxu0 0.0
      %4010 = vmatpush1.msra.mxu0 %v3280
      %4011 = vmatprep.subr.mxu0 0.0
      %4012 = vmatpush1.msra.mxu0 %v3275
      %4013 = vmatprep.subr.mxu0 0.0
      %4014 = vmatpush1.msra.mxu0 %v3270
      %4015 = vmatprep.subr.mxu0 0.0
      %4016 = vmatpush1.msra.mxu0 %v3265
      %4017 = vmatprep.subr.mxu0 0.0
      %4018 = vmatpush1.msra.mxu0 %v3260
      %4019 = vmatprep.subr.mxu0 0.0
      %4020 = vmatpush2.msra.mxu0 0.0
      %4021 = vmatprep.subr.mxu0 0.0
      %4022 = vmatpush2.msra.mxu0 0.0
      %4023 = vmatprep.subr.mxu0 0.0
      %4024 = vmatpush2.msra.mxu0 0.0
      %4025 = vmatprep.subr.mxu0 0.0
      %4026 = vmatpush2.msra.mxu0 0.0
      %4027 = vmatprep.subr.mxu0 0.0
      %4028 = vmatpush2.msra.mxu0 0.0
      %4029 = vmatprep.subr.mxu0 0.0
      %4030 = vmatpush2.msra.mxu0 0.0
      %4031 = vmatprep.subr.mxu0 0.0
      %4032 = vmatpush2.msra.mxu0 0.0
      %4033 = vmatprep.subr.mxu0 0.0
      %4034 = vmatpush2.msra.mxu0 0.0
      %4035 = vmatprep.subr.mxu0 0.0
      %4036 = vmatpush2.msra.mxu0 0.0
      %4037 = vmatprep.subr.mxu0 0.0
      %4038 = vmatpush2.msra.mxu0 0.0
      %4039 = vmatprep.subr.mxu0 0.0
      %4040 = vmatpush2.msra.mxu0 0.0
      %4041 = vmatprep.subr.mxu0 0.0
      %4042 = vmatpush2.msra.mxu0 0.0
      %4043 = vmatprep.subr.mxu0 0.0
      %4044 = vmatpush2.msra.mxu0 0.0
      %4045 = vmatprep.subr.mxu0 0.0
      %4046 = vmatpush2.msra.mxu0 0.0
      %4047 = vmatprep.subr.mxu0 0.0
      %4048 = vmatpush2.msra.mxu0 0.0
      %4049 = vmatprep.subr.mxu0 0.0
      %4050 = vmatpush2.msra.mxu0 0.0
      %4051 = vmatprep.mubr.f32.mxu0 0.0
      %4052 = vmatmul.mubr.f32.gmra.mxu0 %v3892
      %v4053 = vpop.f32.mrf.mxu0
      %v4054 = vadd.f32 0.0, %v4053
      %v4055 = vpop.f32.mrf.mxu0
      %4056 = vmatprep.mubr.f32.mxu0 0.0
      %4057 = vmatmul.mubr.f32.gmra.mxu0 %v3895
      %v4058 = vpop.f32.mrf.mxu0
      %v4059 = vadd.f32 0.0, %v4058
      %v4060 = vpop.f32.mrf.mxu0
      %4061 = vmatprep.mubr.f32.mxu0 0.0
      %4062 = vmatmul.mubr.f32.gmra.mxu0 %v3898
      %v4063 = vpop.f32.mrf.mxu0
      %v4064 = vadd.f32 0.0, %v4063
      %v4065 = vpop.f32.mrf.mxu0
      %4066 = vmatprep.mubr.f32.mxu0 0.0
      %4067 = vmatmul.mubr.f32.gmra.mxu0 %v3901
      %v4068 = vpop.f32.mrf.mxu0
      %v4069 = vadd.f32 0.0, %v4068
      %v4070 = vpop.f32.mrf.mxu0
      %4071 = vmatprep.mubr.f32.mxu0 0.0
      %4072 = vmatmul.mubr.f32.gmra.mxu0 %v3904
      %v4073 = vpop.f32.mrf.mxu0
      %v4074 = vadd.f32 0.0, %v4073
      %v4075 = vpop.f32.mrf.mxu0
      %4076 = vmatprep.mubr.f32.mxu0 0.0
      %4077 = vmatmul.mubr.f32.gmra.mxu0 %v3907
      %v4078 = vpop.f32.mrf.mxu0
      %v4079 = vadd.f32 0.0, %v4078
      %v4080 = vpop.f32.mrf.mxu0
      %4081 = vmatprep.mubr.f32.mxu0 0.0
      %4082 = vmatmul.mubr.f32.gmra.mxu0 %v3910
      %v4083 = vpop.f32.mrf.mxu0
      %v4084 = vadd.f32 0.0, %v4083
      %v4085 = vpop.f32.mrf.mxu0
      %4086 = vmatprep.mubr.f32.mxu0 0.0
      %4087 = vmatmul.mubr.f32.gmra.mxu0 %v3913
      %v4088 = vpop.f32.mrf.mxu0
      %v4089 = vadd.f32 0.0, %v4088
      %v4090 = vpop.f32.mrf.mxu0
      %4091 = vmatprep.mubr.f32.mxu0 0.0
      %4092 = vmatmul.mubr.f32.gmra.mxu0 %v3916
      %v4093 = vpop.f32.mrf.mxu0
      %v4094 = vadd.f32 0.0, %v4093
      %v4095 = vpop.f32.mrf.mxu0
      %4096 = vmatprep.mubr.f32.mxu0 0.0
      %4097 = vmatmul.mubr.f32.gmra.mxu0 %v3919
      %v4098 = vpop.f32.mrf.mxu0
      %v4099 = vadd.f32 0.0, %v4098
      %v4100 = vpop.f32.mrf.mxu0
      %4101 = vmatprep.mubr.f32.mxu0 0.0
      %4102 = vmatmul.mubr.f32.gmra.mxu0 %v3922
      %v4103 = vpop.f32.mrf.mxu0
      %v4104 = vadd.f32 0.0, %v4103
      %v4105 = vpop.f32.mrf.mxu0
      %4106 = vmatprep.mubr.f32.mxu0 0.0
      %4107 = vmatmul.mubr.f32.gmra.mxu0 %v3925
      %v4108 = vpop.f32.mrf.mxu0
      %v4109 = vadd.f32 0.0, %v4108
      %v4110 = vpop.f32.mrf.mxu0
      %4111 = vmatprep.mubr.f32.mxu0 0.0
      %4112 = vmatmul.mubr.f32.gmra.mxu0 %v3928
      %v4113 = vpop.f32.mrf.mxu0
      %v4114 = vadd.f32 0.0, %v4113
      %v4115 = vpop.f32.mrf.mxu0
      %4116 = vmatprep.mubr.f32.mxu0 0.0
      %4117 = vmatmul.mubr.f32.gmra.mxu0 %v3931
      %v4118 = vpop.f32.mrf.mxu0
      %v4119 = vadd.f32 0.0, %v4118
      %v4120 = vpop.f32.mrf.mxu0
      %4121 = vmatprep.mubr.f32.mxu0 0.0
      %4122 = vmatmul.mubr.f32.gmra.mxu0 %v3934
      %v4123 = vpop.f32.mrf.mxu0
      %v4124 = vadd.f32 0.0, %v4123
      %v4125 = vpop.f32.mrf.mxu0
      %4126 = vmatprep.mubr.f32.mxu0 0.0
      %4127 = vmatmul.mubr.f32.gmra.mxu0 %v3937
      %v4128 = vpop.f32.mrf.mxu0
      %v4129 = vadd.f32 0.0, %v4128
      %v4130 = vpop.f32.mrf.mxu0
      %4131 = vmatprep.mubr.f32.mxu0 0.0
      %4132 = vmatmul.mubr.f32.gmra.mxu0 %v3940
      %v4133 = vpop.f32.mrf.mxu0
      %v4134 = vadd.f32 0.0, %v4133
      %v4135 = vpop.f32.mrf.mxu0
      %4136 = vmatprep.mubr.f32.mxu0 0.0
      %4137 = vmatmul.mubr.f32.gmra.mxu0 %v3943
      %v4138 = vpop.f32.mrf.mxu0
      %v4139 = vadd.f32 0.0, %v4138
      %v4140 = vpop.f32.mrf.mxu0
      %4141 = vmatprep.mubr.f32.mxu0 0.0
      %4142 = vmatmul.mubr.f32.gmra.mxu0 %v3946
      %v4143 = vpop.f32.mrf.mxu0
      %v4144 = vadd.f32 0.0, %v4143
      %v4145 = vpop.f32.mrf.mxu0
      %4146 = vmatprep.mubr.f32.mxu0 0.0
      %4147 = vmatmul.mubr.f32.gmra.mxu0 %v3949
      %v4148 = vpop.f32.mrf.mxu0
      %v4149 = vadd.f32 0.0, %v4148
      %v4150 = vpop.f32.mrf.mxu0
      %4151 = vmatprep.mubr.f32.mxu0 0.0
      %4152 = vmatmul.mubr.f32.gmra.mxu0 %v3952
      %v4153 = vpop.f32.mrf.mxu0
      %v4154 = vadd.f32 0.0, %v4153
      %v4155 = vpop.f32.mrf.mxu0
      %4156 = vmatprep.mubr.f32.mxu0 0.0
      %4157 = vmatmul.mubr.f32.gmra.mxu0 %v3955
      %v4158 = vpop.f32.mrf.mxu0
      %v4159 = vadd.f32 0.0, %v4158
      %v4160 = vpop.f32.mrf.mxu0
      %4161 = vmatprep.mubr.f32.mxu0 0.0
      %4162 = vmatmul.mubr.f32.gmra.mxu0 %v3958
      %v4163 = vpop.f32.mrf.mxu0
      %v4164 = vadd.f32 0.0, %v4163
      %v4165 = vpop.f32.mrf.mxu0
      %4166 = vmatprep.mubr.f32.mxu0 0.0
      %4167 = vmatmul.mubr.f32.gmra.mxu0 %v3961
      %v4168 = vpop.f32.mrf.mxu0
      %v4169 = vadd.f32 0.0, %v4168
      %v4170 = vpop.f32.mrf.mxu0
      %4171 = vmatprep.mubr.f32.mxu0 0.0
      %4172 = vmatmul.mubr.f32.gmra.mxu0 %v3964
      %v4173 = vpop.f32.mrf.mxu0
      %v4174 = vadd.f32 0.0, %v4173
      %v4175 = vpop.f32.mrf.mxu0
      %4176 = vmatprep.mubr.f32.mxu0 0.0
      %4177 = vmatmul.mubr.f32.gmra.mxu0 %v3967
      %v4178 = vpop.f32.mrf.mxu0
      %v4179 = vadd.f32 0.0, %v4178
      %v4180 = vpop.f32.mrf.mxu0
      %4181 = vmatprep.mubr.f32.mxu0 0.0
      %4182 = vmatmul.mubr.f32.gmra.mxu0 %v3970
      %v4183 = vpop.f32.mrf.mxu0
      %v4184 = vadd.f32 0.0, %v4183
      %v4185 = vpop.f32.mrf.mxu0
      %4186 = vmatprep.mubr.f32.mxu0 0.0
      %4187 = vmatmul.mubr.f32.gmra.mxu0 %v3973
      %v4188 = vpop.f32.mrf.mxu0
      %v4189 = vadd.f32 0.0, %v4188
      %v4190 = vpop.f32.mrf.mxu0
      %4191 = vmatprep.mubr.f32.mxu0 0.0
      %4192 = vmatmul.mubr.f32.gmra.mxu0 %v3976
      %v4193 = vpop.f32.mrf.mxu0
      %v4194 = vadd.f32 0.0, %v4193
      %v4195 = vpop.f32.mrf.mxu0
      %4196 = vmatprep.mubr.f32.mxu0 0.0
      %4197 = vmatmul.mubr.f32.gmra.mxu0 %v3979
      %v4198 = vpop.f32.mrf.mxu0
      %v4199 = vadd.f32 0.0, %v4198
      %v4200 = vpop.f32.mrf.mxu0
      %4201 = vmatprep.mubr.f32.mxu0 0.0
      %4202 = vmatmul.mubr.f32.gmra.mxu0 %v3982
      %v4203 = vpop.f32.mrf.mxu0
      %v4204 = vadd.f32 0.0, %v4203
      %v4205 = vpop.f32.mrf.mxu0
      %4206 = vmatprep.mubr.f32.mxu0 0.0
      %4207 = vmatmul.mubr.f32.gmra.mxu0 %v3985
      %v4208 = vpop.f32.mrf.mxu0
      %v4209 = vadd.f32 0.0, %v4208
      %v4210 = vpop.f32.mrf.mxu0
      %4211 = vdwg.mxu0
      %v4212 = vmax.f32 %v4054, %v4094
      %v4213 = vmax.f32 %v4059, %v4099
      %v4214 = vmax.f32 %v4064, %v4104
      %v4215 = vmax.f32 %v4069, %v4109
      %v4216 = vmax.f32 %v4074, %v4114
      %v4217 = vmax.f32 %v4079, %v4119
      %v4218 = vmax.f32 %v4084, %v4124
      %v4219 = vmax.f32 %v4089, %v4129
      %v4220 = vmax.f32 %v4212, %v4134
      %v4221 = vmax.f32 %v4213, %v4139
      %v4222 = vmax.f32 %v4214, %v4144
      %v4223 = vmax.f32 %v4215, %v4149
      %v4224 = vmax.f32 %v4216, %v4154
      %v4225 = vmax.f32 %v4217, %v4159
      %v4226 = vmax.f32 %v4218, %v4164
      %v4227 = vmax.f32 %v4219, %v4169
      %v4228 = vmax.f32 %v4220, %v4174
      %v4229 = vmax.f32 %v4221, %v4179
      %v4230 = vmax.f32 %v4222, %v4184
      %v4231 = vmax.f32 %v4223, %v4189
      %v4232 = vmax.f32 %v4224, %v4194
      %v4233 = vmax.f32 %v4225, %v4199
      %v4234 = vmax.f32 %v4226, %v4204
      %v4235 = vmax.f32 %v4227, %v4209
      %v4236 = vadd.f32 %v3298, %v4228
      %v4237 = vadd.f32 %v3299, %v4229
      %v4238 = vadd.f32 %v3300, %v4230
      %v4239 = vadd.f32 %v3301, %v4231
      %v4240 = vadd.f32 %v3302, %v4232
      %v4241 = vadd.f32 %v3303, %v4233
      %v4242 = vadd.f32 %v3304, %v4234
      %v4243 = vadd.f32 %v3305, %v4235
      %v4244 = vmax.f32 %v4236, 0.0
      %v4245 = vmax.f32 %v4237, 0.0
      %v4246 = vmax.f32 %v4238, 0.0
      %v4247 = vmax.f32 %v4239, 0.0
      %v4248 = vmax.f32 %v4240, 0.0
      %v4249 = vmax.f32 %v4241, 0.0
      %v4250 = vmax.f32 %v4242, 0.0
      %v4251 = vmax.f32 %v4243, 0.0
      %v4252 = vadd.f32 %v2825, %v4244
      %v4253 = vadd.f32 %v2826, %v4245
      %v4254 = vadd.f32 %v2827, %v4246
      %v4255 = vadd.f32 %v2828, %v4247
      %v4256 = vadd.f32 %v2829, %v4248
      %v4257 = vadd.f32 %v2830, %v4249
      %v4258 = vadd.f32 %v2831, %v4250
      %v4259 = vadd.f32 %v2832, %v4251
      %v4260 = vld [vmem:[%s5 + $0x40] sm:$0xff]
      %v4261 = vld [vmem:[%s5 + $0x48] sm:$0xff]
      %v4262 = vld [vmem:[%s5 + $0x50] sm:$0xff]
      %v4263 = vld [vmem:[%s5 + $0x58] sm:$0xff]
      %v4265 = vsel %vm425, %v4252, 0
      %v4268 = vsel %vm425, %v4253, 0
      %v4271 = vsel %vm425, %v4254, 0
      %v4274 = vsel %vm425, %v4255, 0
      %v4277 = vsel %vm425, %v4256, 0
      %v4280 = vsel %vm425, %v4257, 0
      %v4283 = vsel %vm425, %v4258, 0
      %v4286 = vsel %vm425, %v4259, 0
      %4288 = vmatprep.subr.mxu0 0.0
      %4289 = vmatpush1.msra.mxu0 0.0
      %4290 = vmatprep.subr.mxu0 0.0
      %4291 = vmatpush1.msra.mxu0 0.0
      %4292 = vmatprep.subr.mxu0 0.0
      %4293 = vmatpush1.msra.mxu0 0.0
      %4294 = vmatprep.subr.mxu0 0.0
      %4295 = vmatpush1.msra.mxu0 0.0
      %4296 = vmatprep.subr.mxu0 0.0
      %4297 = vmatpush1.msra.mxu0 0.0
      %4298 = vmatprep.subr.mxu0 0.0
      %4299 = vmatpush1.msra.mxu0 0.0
      %4300 = vmatprep.subr.mxu0 0.0
      %4301 = vmatpush1.msra.mxu0 0.0
      %4302 = vmatprep.subr.mxu0 0.0
      %4303 = vmatpush1.msra.mxu0 0.0
      %4304 = vmatprep.subr.mxu0 0.0
      %4305 = vmatpush1.msra.mxu0 0.0
      %4306 = vmatprep.subr.mxu0 0.0
      %4307 = vmatpush1.msra.mxu0 0.0
      %4308 = vmatprep.subr.mxu0 0.0
      %4309 = vmatpush1.msra.mxu0 0.0
      %4310 = vmatprep.subr.mxu0 0.0
      %4311 = vmatpush1.msra.mxu0 0.0
      %4312 = vmatprep.subr.mxu0 0.0
      %4313 = vmatpush1.msra.mxu0 %v4263
      %4314 = vmatprep.subr.mxu0 0.0
      %4315 = vmatpush1.msra.mxu0 %v4262
      %4316 = vmatprep.subr.mxu0 0.0
      %4317 = vmatpush1.msra.mxu0 %v4261
      %4318 = vmatprep.subr.mxu0 0.0
      %4319 = vmatpush1.msra.mxu0 %v4260
      %4320 = vmatprep.subr.mxu0 0.0
      %4321 = vmatpush2.msra.mxu0 0.0
      %4322 = vmatprep.subr.mxu0 0.0
      %4323 = vmatpush2.msra.mxu0 0.0
      %4324 = vmatprep.subr.mxu0 0.0
      %4325 = vmatpush2.msra.mxu0 0.0
      %4326 = vmatprep.subr.mxu0 0.0
      %4327 = vmatpush2.msra.mxu0 0.0
      %4328 = vmatprep.subr.mxu0 0.0
      %4329 = vmatpush2.msra.mxu0 0.0
      %4330 = vmatprep.subr.mxu0 0.0
      %4331 = vmatpush2.msra.mxu0 0.0
      %4332 = vmatprep.subr.mxu0 0.0
      %4333 = vmatpush2.msra.mxu0 0.0
      %4334 = vmatprep.subr.mxu0 0.0
      %4335 = vmatpush2.msra.mxu0 0.0
      %4336 = vmatprep.subr.mxu0 0.0
      %4337 = vmatpush2.msra.mxu0 0.0
      %4338 = vmatprep.subr.mxu0 0.0
      %4339 = vmatpush2.msra.mxu0 0.0
      %4340 = vmatprep.subr.mxu0 0.0
      %4341 = vmatpush2.msra.mxu0 0.0
      %4342 = vmatprep.subr.mxu0 0.0
      %4343 = vmatpush2.msra.mxu0 0.0
      %4344 = vmatprep.subr.mxu0 0.0
      %4345 = vmatpush2.msra.mxu0 0.0
      %4346 = vmatprep.subr.mxu0 0.0
      %4347 = vmatpush2.msra.mxu0 0.0
      %4348 = vmatprep.subr.mxu0 0.0
      %4349 = vmatpush2.msra.mxu0 0.0
      %4350 = vmatprep.subr.mxu0 0.0
      %4351 = vmatpush2.msra.mxu0 0.0
      %4352 = vmatprep.mubr.f32.mxu0 0.0
      %4353 = vmatmul.mubr.f32.gmra.mxu0 %v4265
      %v4354 = vpop.f32.mrf.mxu0
      %v4355 = vadd.f32 0.0, %v4354
      %v4356 = vpop.f32.mrf.mxu0
      %4357 = vmatprep.mubr.f32.mxu0 0.0
      %4358 = vmatmul.mubr.f32.gmra.mxu0 %v4268
      %v4359 = vpop.f32.mrf.mxu0
      %v4360 = vadd.f32 0.0, %v4359
      %v4361 = vpop.f32.mrf.mxu0
      %4362 = vmatprep.mubr.f32.mxu0 0.0
      %4363 = vmatmul.mubr.f32.gmra.mxu0 %v4271
      %v4364 = vpop.f32.mrf.mxu0
      %v4365 = vadd.f32 0.0, %v4364
      %v4366 = vpop.f32.mrf.mxu0
      %4367 = vmatprep.mubr.f32.mxu0 0.0
      %4368 = vmatmul.mubr.f32.gmra.mxu0 %v4274
      %v4369 = vpop.f32.mrf.mxu0
      %v4370 = vadd.f32 0.0, %v4369
      %v4371 = vpop.f32.mrf.mxu0
      %4372 = vmatprep.mubr.f32.mxu0 0.0
      %4373 = vmatmul.mubr.f32.gmra.mxu0 %v4277
      %v4374 = vpop.f32.mrf.mxu0
      %v4375 = vadd.f32 0.0, %v4374
      %v4376 = vpop.f32.mrf.mxu0
      %4377 = vmatprep.mubr.f32.mxu0 0.0
      %4378 = vmatmul.mubr.f32.gmra.mxu0 %v4280
      %v4379 = vpop.f32.mrf.mxu0
      %v4380 = vadd.f32 0.0, %v4379
      %v4381 = vpop.f32.mrf.mxu0
      %4382 = vmatprep.mubr.f32.mxu0 0.0
      %4383 = vmatmul.mubr.f32.gmra.mxu0 %v4283
      %v4384 = vpop.f32.mrf.mxu0
      %v4385 = vadd.f32 0.0, %v4384
      %v4386 = vpop.f32.mrf.mxu0
      %4387 = vmatprep.mubr.f32.mxu0 0.0
      %4388 = vmatmul.mubr.f32.gmra.mxu0 %v4286
      %v4389 = vpop.f32.mrf.mxu0
      %v4390 = vadd.f32 0.0, %v4389
      %v4391 = vpop.f32.mrf.mxu0
      %4392 = vdwg.mxu0
      %v4393 = vadd.f32 %v3033, %v4355
      %v4394 = vadd.f32 %v3038, %v4360
      %v4395 = vadd.f32 %v3043, %v4365
      %v4396 = vadd.f32 %v3048, %v4370
      %v4397 = vadd.f32 %v3053, %v4375
      %v4398 = vadd.f32 %v3058, %v4380
      %v4399 = vadd.f32 %v3063, %v4385
      %v4400 = vadd.f32 %v3068, %v4390
      %4401 = vst [vmem:[%s251] sm:$0xff] %v4393
      %4402 = vst [vmem:[%s251 + $0x8] sm:$0xff] %v4394
      %4403 = vst [vmem:[%s251 + $0x10] sm:$0xff] %v4395
      %4404 = vst [vmem:[%s251 + $0x18] sm:$0xff] %v4396
      %4405 = vst [vmem:[%s251 + $0x20] sm:$0xff] %v4397
      %4406 = vst [vmem:[%s251 + $0x28] sm:$0xff] %v4398
      %4407 = vst [vmem:[%s251 + $0x30] sm:$0xff] %v4399
      %4408 = vst [vmem:[%s251 + $0x38] sm:$0xff] %v4400
      %p4409 = scmp.lt.s32.totalorder %s17, 1
      %s4410 = scalar_select %p4409, %s17, 1
      %s4411 = smul.addr %s4410, 8
      %s4412 = smul.addr %s4411, 8
      %s4413 = scalar_lea.vmem %s6, %s4412
      // Predicated region
      $region45: #{gcn_npcic_forward.1} parent=43 // pred_check
        %p4414 = pneg %p166
      $region46: #{gcn_npcic_forward.1} parent=43 // pred_check_branch
        %4416 = sbr.rel (%p4414) target = $region48
      $region47: #{gcn_npcic_forward.1} parent=43 // pred_region
        _
      $region48: #{gcn_npcic_forward.1} parent=43 // pred_fallthru
        _
    $region44: #{gcn_npcic_forward.1} parent=5 // pred_fallthru
      _
    %p4417 = scmp.le.s32.totalorder 2, %s12
    // Predicated region
    $region49: #{gcn_npcic_forward.1} parent=5 // pred_check
      %p4418 = pneg %p4417
    $region50: #{gcn_npcic_forward.1} parent=5 // pred_check_branch
      %4420 = sbr.rel (%p4418) target = $region52
    $region51: #{gcn_npcic_forward.1} parent=5 // pred_region
      %s4421 = ssub.s32 %s12, 2
      // Predicated region
      $region53: #{gcn_npcic_forward.1} parent=51 // pred_check
        %p4422 = pneg %p172
      $region54: #{gcn_npcic_forward.1} parent=51 // pred_check_branch
        %4424 = sbr.rel (%p4422) target = $region56
      $region55: #{gcn_npcic_forward.1} parent=51 // pred_region
        %p4425 = scmp.lt.s32.totalorder %s18, 1
        %s4426 = scalar_select %p4425, %s18, 1
        %s4427 = smul.addr %s4426, 8
        %s4428 = smul.addr %s4427, 8
        %s4429 = scalar_lea.vmem %s6, %s4428
      $region56: #{gcn_npcic_forward.1} parent=51 // pred_fallthru
        _
    $region52: #{gcn_npcic_forward.1} parent=5 // pred_fallthru
      _
  $region6: #{gcn_npcic_forward.1} parent=0 // loop_footer
    %s16 = sadd.s32 1, %s12
  $region7: #{gcn_npcic_forward.1} parent=0 // loop_footer_branch
    %11 = sbr.rel target = $region3
  $region8: #{gcn_npcic_forward.1} parent=0 // loop_exit
    _

</llo_original>
